<compile_context>
chip_gen: v6e
topology: v6e:2x2x1
jax: 0.10.0
libtpu: 0.0.40
codegen_flags: <defaults>
</compile_context>

<pallas_src>
import math

import jax
import jax.numpy as jnp
from jax.experimental import pallas as pl
from jax.experimental.pallas import tpu as pltpu


_HIDDEN_PAD = (1280, 384, 128)   # lane-padded hidden widths (orig 1280/320/32)
_IN_SLAB = 128                   # lane-dense packed input width
_OUT_SLAB = 128                  # lane-dense packed output width


def _slab_cols(z_dim, x_dim, t_dim):
    """Column layout of the 128-wide input slab."""
    x_col = t_dim + 1
    bias_col = x_col + x_dim
    z_col = bias_col + 1
    return x_col, bias_col, z_col


# ----------------------------- Pallas kernel ------------------------------ #

def _build_kernel(bf16_relu):
    if bf16_relu:
        def relu_cast(h):                      # v6e / v7x: bf16 VALU
            return jnp.maximum(h.astype(jnp.bfloat16), 0.0)
    else:
        def relu_cast(h):                      # v5e: no bf16 VALU
            return jnp.maximum(h, 0.0).astype(jnp.bfloat16)

    def kernel(in_ref,
               tw1_ref, tw2_ref, tb2_ref, tw3_ref, tb3_ref, tw4_ref, tb4_ref,
               yw1_ref, yw2_ref, yb2_ref, yw3_ref, yb3_ref, yw4_ref, yb4_ref,
               out_ref):
        """Fused t_net + y_net forward.  Dropout == identity (inference)."""
        a0 = in_ref[...]                       # bf16 (tile_b, 128): [0 | 0 | x | 1 | z | 0]

        # ------------------------------ t head --------------------------- #
        h = jnp.dot(a0, tw1_ref[...], preferred_element_type=jnp.float32)   # bias folded
        h = relu_cast(h)
        h = jnp.dot(h, tw2_ref[...], preferred_element_type=jnp.float32) + tb2_ref[...]
        h = relu_cast(h)
        h = jnp.dot(h, tw3_ref[...], preferred_element_type=jnp.float32) + tb3_ref[...]
        h = relu_cast(h)
        # t_slab: cols [0, t_dim) hold pred_t, all other lanes exactly 0.
        t_slab = jnp.dot(h, tw4_ref[...], preferred_element_type=jnp.float32) + tb4_ref[...]

        # ------------------------------ y head --------------------------- #
        # yt_in = [pred_t | 0 | x | 1 | z | 0]; z columns meet zero rows of YW1.
        yt_in = t_slab.astype(jnp.bfloat16) + a0
        h = jnp.dot(yt_in, yw1_ref[...], preferred_element_type=jnp.float32)  # bias folded
        h = relu_cast(h)
        h = jnp.dot(h, yw2_ref[...], preferred_element_type=jnp.float32) + yb2_ref[...]
        h = relu_cast(h)
        h = jnp.dot(h, yw3_ref[...], preferred_element_type=jnp.float32) + yb3_ref[...]
        h = relu_cast(h)
        # y_slab: col t_dim holds pred_yt, all other lanes exactly 0.
        y_slab = jnp.dot(h, yw4_ref[...], preferred_element_type=jnp.float32) + yb4_ref[...]

        out_ref[...] = (t_slab + y_slab).astype(out_ref.dtype)

    return kernel


# ------------------------------ Host wrapper ------------------------------- #

def _round_up(v, m):
    return (v + m - 1) // m * m


def _device_kind():
    try:
        return jax.devices()[0].device_kind.lower()
    except Exception:
        return ""


def _choose_tile(batch, is_v7):
    max_tile = 1024 if is_v7 else 2048
    steps = -(-batch // max_tile)
    if is_v7 and batch > 32:
        steps = max(steps, 2)          # feed both TensorCores on v7x
    tile = _round_up(-(-batch // steps), 16)
    return max(min(tile, max_tile), 16)


def networks_forward(z, x, kernel_params, t_dim):
    """Reproduces Networks.forward (inference: dropout = identity)."""
    batch, z_dim = z.shape
    x_dim = x.shape[1]
    x_col, bias_col, z_col = _slab_cols(z_dim, x_dim, t_dim)
    assert z_col + z_dim <= _IN_SLAB
    assert t_dim + 1 <= _OUT_SLAB

    kind = _device_kind()
    is_v7 = "v7" in kind
    is_v5 = "v5" in kind

    tile_b = _choose_tile(batch, is_v7)
    padded = _round_up(batch, tile_b)
    grid = (padded // tile_b,)

    # Pack [z | x | 1] into the lane-dense input slab (bf16 halves input DMA).
    in_slab = jnp.zeros((padded, _IN_SLAB), jnp.float32)
    in_slab = in_slab.at[:batch, x_col:x_col + x_dim].set(x)
    in_slab = in_slab.at[:batch, z_col:z_col + z_dim].set(z)
    in_slab = in_slab.at[:batch, bias_col].set(1.0)
    in_slab = in_slab.astype(jnp.bfloat16)

    data_spec = pl.BlockSpec((tile_b, _IN_SLAB), lambda i: (i, 0))
    # Weights/biases: full block, constant index map -> resident across steps.
    weight_specs = [pl.BlockSpec(p.shape, lambda i: (0, 0)) for p in kernel_params]
    out_spec = pl.BlockSpec((tile_b, _OUT_SLAB), lambda i: (i, 0))

    h1, h2, h3 = _HIDDEN_PAD
    per_row_flops = 4 * (_IN_SLAB * h1 + h1 * h2 + h2 * h3 + h3 * _OUT_SLAB)
    weight_bytes = sum(int(p.size) * p.dtype.itemsize for p in kernel_params)
    cost = pl.CostEstimate(
        flops=per_row_flops * padded,
        transcendentals=0,
        bytes_accessed=weight_bytes + padded * (_IN_SLAB * 2 + _OUT_SLAB * 4),
    )

    vmem_limit = (48 if is_v7 else 64) * 1024 * 1024

    out = pl.pallas_call(
        _build_kernel(bf16_relu=not is_v5),
        out_shape=jax.ShapeDtypeStruct((padded, _OUT_SLAB), jnp.float32),
        grid=grid,
        in_specs=[data_spec] + weight_specs,
        out_specs=out_spec,
        compiler_params=pltpu.CompilerParams(
            dimension_semantics=("parallel",),
            vmem_limit_bytes=vmem_limit,
        ),
        cost_estimate=cost,
    )(in_slab, *kernel_params)

    pred_t = out[:batch, :t_dim]
    pred_yt = out[:batch, t_dim:t_dim + 1]
    return pred_t, pred_yt


# --------------------------- Parameter creation ---------------------------- #

def _torch_linear_init(key, fan_in, fan_out):
    """torch.nn.Linear default init: U(-1/sqrt(fan_in), 1/sqrt(fan_in)).

    Weights are rounded to bf16 (kept as f32) so kernel and reference use
    identical weight values.
    """
    kw, kb = jax.random.split(key)
    bound = 1.0 / math.sqrt(fan_in)
    w = jax.random.uniform(kw, (fan_in, fan_out), jnp.float32, -bound, bound)
    b = jax.random.uniform(kb, (fan_out,), jnp.float32, -bound, bound)
    w = w.astype(jnp.bfloat16).astype(jnp.float32)
    return w, b


def _pad_to(arr, shape):
    pads = [(0, s - d) for d, s in zip(arr.shape, shape)]
    return jnp.pad(arr, pads)


def init_networks_params(key, z_dim, x_dim, t_dim):
    x_col, bias_col, z_col = _slab_cols(z_dim, x_dim, t_dim)
    assert z_col + z_dim <= _IN_SLAB
    assert t_dim + 1 <= _OUT_SLAB

    t_in, y_in = z_dim + x_dim, t_dim + x_dim
    t_dims = [t_in, 1280, 320, 32, t_dim]
    y_dims = [y_in, 1280, 320, 32, 1]

    keys = jax.random.split(key, 8)
    t_raw = [_torch_linear_init(keys[i], t_dims[i], t_dims[i + 1]) for i in range(4)]
    y_raw = [_torch_linear_init(keys[4 + i], y_dims[i], y_dims[i + 1]) for i in range(4)]

    # Layer-1 biases ride inside bf16 weight rows -> round them (reference too).
    def _bf16_round(a):
        return a.astype(jnp.bfloat16).astype(jnp.float32)

    tW1, tb1 = t_raw[0]; tb1 = _bf16_round(tb1); t_raw[0] = (tW1, tb1)
    yW1, yb1 = y_raw[0]; yb1 = _bf16_round(yb1); y_raw[0] = (yW1, yb1)
    (_, _), (tW2, tb2), (tW3, tb3), (tW4, tb4) = t_raw
    (_, _), (yW2, yb2), (yW3, yb3), (yW4, yb4) = y_raw

    h1, h2, h3 = _HIDDEN_PAD

    def bf16(a):
        return a.astype(jnp.bfloat16)

    # Combined 128-row layer-1 weights (z rows, x rows, bias row at slab positions).
    TW1 = jnp.zeros((_IN_SLAB, h1), jnp.float32)
    TW1 = TW1.at[z_col:z_col + z_dim, :].set(tW1[:z_dim, :])
    TW1 = TW1.at[x_col:x_col + x_dim, :].set(tW1[z_dim:, :])
    TW1 = TW1.at[bias_col, :].set(tb1)

    YW1 = jnp.zeros((_IN_SLAB, h1), jnp.float32)
    YW1 = YW1.at[:t_dim, :].set(yW1[:t_dim, :])          # consumes pred_t slab cols
    YW1 = YW1.at[x_col:x_col + x_dim, :].set(yW1[t_dim:, :])
    YW1 = YW1.at[bias_col, :].set(yb1)

    kernel_params = (
        # ------ t head ------------------------------------------------------
        bf16(TW1),
        bf16(_pad_to(tW2, (h1, h2))), _pad_to(tb2, (h2,)).reshape(1, h2),
        bf16(_pad_to(tW3, (h2, h3))), _pad_to(tb3, (h3,)).reshape(1, h3),
        bf16(_pad_to(tW4, (h3, _OUT_SLAB))),              # pred_t in cols [0, t_dim)
        _pad_to(tb4, (_OUT_SLAB,)).reshape(1, _OUT_SLAB),
        # ------ y head ------------------------------------------------------
        bf16(YW1),
        bf16(_pad_to(yW2, (h1, h2))), _pad_to(yb2, (h2,)).reshape(1, h2),
        bf16(_pad_to(yW3, (h2, h3))), _pad_to(yb3, (h3,)).reshape(1, h3),
        bf16(jnp.pad(yW4, ((0, h3 - 32), (t_dim, _OUT_SLAB - t_dim - 1)))),  # col t_dim
        jnp.pad(yb4.reshape(1, 1), ((0, 0), (t_dim, _OUT_SLAB - t_dim - 1))),
    )
    return kernel_params, t_raw, y_raw


# ------------------------------- Reference --------------------------------- #

def _networks_ref(z, x, t_raw, y_raw):
    def mlp(h, params):
        for i, (w, b) in enumerate(params):
            h = h @ w + b
            if i < len(params) - 1:
                h = jnp.maximum(h, 0.0)
        return h

    pred_t = mlp(jnp.concatenate([z, x], axis=1), t_raw)
    pred_yt = mlp(jnp.concatenate([pred_t, x], axis=1), y_raw)
    return pred_t, pred_yt


# --------------------------------- Main ------------------------------------ #

if __name__ == "__main__":
    z_dim, x_dim, t_dim = 4, 6, 2
    batch = 8

    key = jax.random.PRNGKey(0)
    kz, kx, kp = jax.random.split(key, 3)
    z = jax.random.normal(kz, (batch, z_dim), jnp.float32)
    x = jax.random.normal(kx, (batch, x_dim), jnp.float32)

    kernel_params, t_raw, y_raw = init_networks_params(kp, z_dim, x_dim, t_dim)

    pred_t, pred_yt = networks_forward(z, x, kernel_params, t_dim)
    pred_t = jax.block_until_ready(pred_t)
    pred_yt = jax.block_until_ready(pred_yt)

    # Pure-JAX f32 reference of the same math (same bf16-rounded weights/biases;
    # only in-kernel bf16 activation rounding differs).
    ref_t, ref_yt = _networks_ref(z, x, t_raw, y_raw)

    assert pred_t.shape == (batch, t_dim)
    assert pred_yt.shape == (batch, 1)
    assert jnp.allclose(pred_t, ref_t, atol=5e-2, rtol=5e-2)
    assert jnp.allclose(pred_yt, ref_yt, atol=5e-2, rtol=5e-2)

    print("KERNEL_OK")
</pallas_src>

<mosaic_0001>
module attributes {stable_mosaic.version = 11 : i64} {
  func.func @kernel(%arg0: i32, %arg1: memref<16x128xbf16, #tpu.memory_space<vmem>>, %arg2: memref<128x1280xbf16, #tpu.memory_space<vmem>>, %arg3: memref<1280x384xbf16, #tpu.memory_space<vmem>>, %arg4: memref<1x384xf32, #tpu.memory_space<vmem>>, %arg5: memref<384x128xbf16, #tpu.memory_space<vmem>>, %arg6: memref<1x128xf32, #tpu.memory_space<vmem>>, %arg7: memref<128x128xbf16, #tpu.memory_space<vmem>>, %arg8: memref<1x128xf32, #tpu.memory_space<vmem>>, %arg9: memref<128x1280xbf16, #tpu.memory_space<vmem>>, %arg10: memref<1280x384xbf16, #tpu.memory_space<vmem>>, %arg11: memref<1x384xf32, #tpu.memory_space<vmem>>, %arg12: memref<384x128xbf16, #tpu.memory_space<vmem>>, %arg13: memref<1x128xf32, #tpu.memory_space<vmem>>, %arg14: memref<128x128xbf16, #tpu.memory_space<vmem>>, %arg15: memref<1x128xf32, #tpu.memory_space<vmem>>, %arg16: memref<16x128xf32, #tpu.memory_space<vmem>>) attributes {dimension_semantics = [#tpu.dimension_semantics<parallel>], iteration_bounds = array<i64: 1>, scalar_prefetch = 0 : i64, scratch_operands = 0 : i64, tpu.core_type = #tpu.core_type<tc>, window_params = [{transform_indices = @transform_0, window_bounds = array<i64: 16, 128>}, {pipeline_mode = #tpu.pipeline_mode<synchronous>, transform_indices = @transform_1, window_bounds = array<i64: 128, 1280>}, {pipeline_mode = #tpu.pipeline_mode<synchronous>, transform_indices = @transform_2, window_bounds = array<i64: 1280, 384>}, {pipeline_mode = #tpu.pipeline_mode<synchronous>, transform_indices = @transform_3, window_bounds = array<i64: 1, 384>}, {pipeline_mode = #tpu.pipeline_mode<synchronous>, transform_indices = @transform_4, window_bounds = array<i64: 384, 128>}, {pipeline_mode = #tpu.pipeline_mode<synchronous>, transform_indices = @transform_5, window_bounds = array<i64: 1, 128>}, {pipeline_mode = #tpu.pipeline_mode<synchronous>, transform_indices = @transform_6, window_bounds = array<i64: 128, 128>}, {pipeline_mode = #tpu.pipeline_mode<synchronous>, transform_indices = @transform_7, window_bounds = array<i64: 1, 128>}, {pipeline_mode = #tpu.pipeline_mode<synchronous>, transform_indices = @transform_8, window_bounds = array<i64: 128, 1280>}, {pipeline_mode = #tpu.pipeline_mode<synchronous>, transform_indices = @transform_9, window_bounds = array<i64: 1280, 384>}, {pipeline_mode = #tpu.pipeline_mode<synchronous>, transform_indices = @transform_10, window_bounds = array<i64: 1, 384>}, {pipeline_mode = #tpu.pipeline_mode<synchronous>, transform_indices = @transform_11, window_bounds = array<i64: 384, 128>}, {pipeline_mode = #tpu.pipeline_mode<synchronous>, transform_indices = @transform_12, window_bounds = array<i64: 1, 128>}, {pipeline_mode = #tpu.pipeline_mode<synchronous>, transform_indices = @transform_13, window_bounds = array<i64: 128, 128>}, {pipeline_mode = #tpu.pipeline_mode<synchronous>, transform_indices = @transform_14, window_bounds = array<i64: 1, 128>}, {transform_indices = @transform_15, window_bounds = array<i64: 16, 128>}]} {
    %c0 = arith.constant 0 : index
    %c0_0 = arith.constant 0 : index
    %0 = vector.load %arg1[%c0, %c0_0] : memref<16x128xbf16, #tpu.memory_space<vmem>>, vector<16x128xbf16>
    %c0_1 = arith.constant 0 : index
    %c0_2 = arith.constant 0 : index
    %1 = vector.load %arg2[%c0_1, %c0_2] : memref<128x1280xbf16, #tpu.memory_space<vmem>>, vector<128x1280xbf16>
    %cst = arith.constant dense<0.000000e+00> : vector<16x1280xf32>
    %2 = tpu.matmul %0, %1, %cst {dimension_numbers = #tpu.dot_dimension_numbers<[1], [0], [0], [1], [0, 0, 1, 1], [], []>} : vector<16x128xbf16>, vector<128x1280xbf16>, vector<16x1280xf32> -> vector<16x1280xf32>
    %3 = arith.truncf %2 : vector<16x1280xf32> to vector<16x1280xbf16>
    %cst_3 = arith.constant 0.000000e+00 : bf16
    %4 = vector.broadcast %cst_3 : bf16 to vector<16x1280xbf16>
    %5 = arith.maximumf %3, %4 : vector<16x1280xbf16>
    %c0_4 = arith.constant 0 : index
    %c0_5 = arith.constant 0 : index
    %6 = vector.load %arg3[%c0_4, %c0_5] : memref<1280x384xbf16, #tpu.memory_space<vmem>>, vector<1280x384xbf16>
    %cst_6 = arith.constant dense<0.000000e+00> : vector<16x384xf32>
    %7 = tpu.matmul %5, %6, %cst_6 {dimension_numbers = #tpu.dot_dimension_numbers<[1], [0], [0], [1], [0, 0, 1, 1], [], []>} : vector<16x1280xbf16>, vector<1280x384xbf16>, vector<16x384xf32> -> vector<16x384xf32>
    %c0_7 = arith.constant 0 : index
    %c0_8 = arith.constant 0 : index
    %8 = vector.load %arg4[%c0_7, %c0_8] : memref<1x384xf32, #tpu.memory_space<vmem>>, vector<1x384xf32>
    %9 = vector.broadcast %8 : vector<1x384xf32> to vector<16x384xf32>
    %10 = arith.addf %7, %9 : vector<16x384xf32>
    %11 = arith.truncf %10 : vector<16x384xf32> to vector<16x384xbf16>
    %cst_9 = arith.constant 0.000000e+00 : bf16
    %12 = vector.broadcast %cst_9 : bf16 to vector<16x384xbf16>
    %13 = arith.maximumf %11, %12 : vector<16x384xbf16>
    %c0_10 = arith.constant 0 : index
    %c0_11 = arith.constant 0 : index
    %14 = vector.load %arg5[%c0_10, %c0_11] : memref<384x128xbf16, #tpu.memory_space<vmem>>, vector<384x128xbf16>
    %cst_12 = arith.constant dense<0.000000e+00> : vector<16x128xf32>
    %15 = tpu.matmul %13, %14, %cst_12 {dimension_numbers = #tpu.dot_dimension_numbers<[1], [0], [0], [1], [0, 0, 1, 1], [], []>} : vector<16x384xbf16>, vector<384x128xbf16>, vector<16x128xf32> -> vector<16x128xf32>
    %c0_13 = arith.constant 0 : index
    %c0_14 = arith.constant 0 : index
    %16 = vector.load %arg6[%c0_13, %c0_14] : memref<1x128xf32, #tpu.memory_space<vmem>>, vector<1x128xf32>
    %17 = vector.broadcast %16 : vector<1x128xf32> to vector<16x128xf32>
    %18 = arith.addf %15, %17 : vector<16x128xf32>
    %19 = arith.truncf %18 : vector<16x128xf32> to vector<16x128xbf16>
    %cst_15 = arith.constant 0.000000e+00 : bf16
    %20 = vector.broadcast %cst_15 : bf16 to vector<16x128xbf16>
    %21 = arith.maximumf %19, %20 : vector<16x128xbf16>
    %c0_16 = arith.constant 0 : index
    %c0_17 = arith.constant 0 : index
    %22 = vector.load %arg7[%c0_16, %c0_17] : memref<128x128xbf16, #tpu.memory_space<vmem>>, vector<128x128xbf16>
    %cst_18 = arith.constant dense<0.000000e+00> : vector<16x128xf32>
    %23 = tpu.matmul %21, %22, %cst_18 {dimension_numbers = #tpu.dot_dimension_numbers<[1], [0], [0], [1], [0, 0, 1, 1], [], []>} : vector<16x128xbf16>, vector<128x128xbf16>, vector<16x128xf32> -> vector<16x128xf32>
    %c0_19 = arith.constant 0 : index
    %c0_20 = arith.constant 0 : index
    %24 = vector.load %arg8[%c0_19, %c0_20] : memref<1x128xf32, #tpu.memory_space<vmem>>, vector<1x128xf32>
    %25 = vector.broadcast %24 : vector<1x128xf32> to vector<16x128xf32>
    %26 = arith.addf %23, %25 : vector<16x128xf32>
    %27 = arith.truncf %26 : vector<16x128xf32> to vector<16x128xbf16>
    %28 = arith.addf %27, %0 : vector<16x128xbf16>
    %c0_21 = arith.constant 0 : index
    %c0_22 = arith.constant 0 : index
    %29 = vector.load %arg9[%c0_21, %c0_22] : memref<128x1280xbf16, #tpu.memory_space<vmem>>, vector<128x1280xbf16>
    %cst_23 = arith.constant dense<0.000000e+00> : vector<16x1280xf32>
    %30 = tpu.matmul %28, %29, %cst_23 {dimension_numbers = #tpu.dot_dimension_numbers<[1], [0], [0], [1], [0, 0, 1, 1], [], []>} : vector<16x128xbf16>, vector<128x1280xbf16>, vector<16x1280xf32> -> vector<16x1280xf32>
    %31 = arith.truncf %30 : vector<16x1280xf32> to vector<16x1280xbf16>
    %cst_24 = arith.constant 0.000000e+00 : bf16
    %32 = vector.broadcast %cst_24 : bf16 to vector<16x1280xbf16>
    %33 = arith.maximumf %31, %32 : vector<16x1280xbf16>
    %c0_25 = arith.constant 0 : index
    %c0_26 = arith.constant 0 : index
    %34 = vector.load %arg10[%c0_25, %c0_26] : memref<1280x384xbf16, #tpu.memory_space<vmem>>, vector<1280x384xbf16>
    %cst_27 = arith.constant dense<0.000000e+00> : vector<16x384xf32>
    %35 = tpu.matmul %33, %34, %cst_27 {dimension_numbers = #tpu.dot_dimension_numbers<[1], [0], [0], [1], [0, 0, 1, 1], [], []>} : vector<16x1280xbf16>, vector<1280x384xbf16>, vector<16x384xf32> -> vector<16x384xf32>
    %c0_28 = arith.constant 0 : index
    %c0_29 = arith.constant 0 : index
    %36 = vector.load %arg11[%c0_28, %c0_29] : memref<1x384xf32, #tpu.memory_space<vmem>>, vector<1x384xf32>
    %37 = vector.broadcast %36 : vector<1x384xf32> to vector<16x384xf32>
    %38 = arith.addf %35, %37 : vector<16x384xf32>
    %39 = arith.truncf %38 : vector<16x384xf32> to vector<16x384xbf16>
    %cst_30 = arith.constant 0.000000e+00 : bf16
    %40 = vector.broadcast %cst_30 : bf16 to vector<16x384xbf16>
    %41 = arith.maximumf %39, %40 : vector<16x384xbf16>
    %c0_31 = arith.constant 0 : index
    %c0_32 = arith.constant 0 : index
    %42 = vector.load %arg12[%c0_31, %c0_32] : memref<384x128xbf16, #tpu.memory_space<vmem>>, vector<384x128xbf16>
    %cst_33 = arith.constant dense<0.000000e+00> : vector<16x128xf32>
    %43 = tpu.matmul %41, %42, %cst_33 {dimension_numbers = #tpu.dot_dimension_numbers<[1], [0], [0], [1], [0, 0, 1, 1], [], []>} : vector<16x384xbf16>, vector<384x128xbf16>, vector<16x128xf32> -> vector<16x128xf32>
    %c0_34 = arith.constant 0 : index
    %c0_35 = arith.constant 0 : index
    %44 = vector.load %arg13[%c0_34, %c0_35] : memref<1x128xf32, #tpu.memory_space<vmem>>, vector<1x128xf32>
    %45 = vector.broadcast %44 : vector<1x128xf32> to vector<16x128xf32>
    %46 = arith.addf %43, %45 : vector<16x128xf32>
    %47 = arith.truncf %46 : vector<16x128xf32> to vector<16x128xbf16>
    %cst_36 = arith.constant 0.000000e+00 : bf16
    %48 = vector.broadcast %cst_36 : bf16 to vector<16x128xbf16>
    %49 = arith.maximumf %47, %48 : vector<16x128xbf16>
    %c0_37 = arith.constant 0 : index
    %c0_38 = arith.constant 0 : index
    %50 = vector.load %arg14[%c0_37, %c0_38] : memref<128x128xbf16, #tpu.memory_space<vmem>>, vector<128x128xbf16>
    %cst_39 = arith.constant dense<0.000000e+00> : vector<16x128xf32>
    %51 = tpu.matmul %49, %50, %cst_39 {dimension_numbers = #tpu.dot_dimension_numbers<[1], [0], [0], [1], [0, 0, 1, 1], [], []>} : vector<16x128xbf16>, vector<128x128xbf16>, vector<16x128xf32> -> vector<16x128xf32>
    %c0_40 = arith.constant 0 : index
    %c0_41 = arith.constant 0 : index
    %52 = vector.load %arg15[%c0_40, %c0_41] : memref<1x128xf32, #tpu.memory_space<vmem>>, vector<1x128xf32>
    %53 = vector.broadcast %52 : vector<1x128xf32> to vector<16x128xf32>
    %54 = arith.addf %51, %53 : vector<16x128xf32>
    %55 = arith.addf %26, %54 : vector<16x128xf32>
    %c0_42 = arith.constant 0 : index
    %c0_43 = arith.constant 0 : index
    %56 = vector.load %arg16[%c0_42, %c0_43] : memref<16x128xf32, #tpu.memory_space<vmem>>, vector<16x128xf32>
    tpu.vector_store %arg16[%c0_42, %c0_43], %55 {strides = array<i32>} : memref<16x128xf32, #tpu.memory_space<vmem>>, vector<16x128xf32>,
    return
  }
  func.func @transform_0(%arg0: i32) -> (i32, i32) {
    %c0_i32 = arith.constant 0 : i32
    %c0_i32_0 = arith.constant 0 : i32
    return %arg0, %c0_i32 : i32, i32
  }
  func.func @transform_1(%arg0: i32) -> (i32, i32) {
    %c0_i32 = arith.constant 0 : i32
    %c0_i32_0 = arith.constant 0 : i32
    %c0_i32_1 = arith.constant 0 : i32
    return %c0_i32, %c0_i32_0 : i32, i32
  }
  func.func @transform_2(%arg0: i32) -> (i32, i32) {
    %c0_i32 = arith.constant 0 : i32
    %c0_i32_0 = arith.constant 0 : i32
    %c0_i32_1 = arith.constant 0 : i32
    return %c0_i32, %c0_i32_0 : i32, i32
  }
  func.func @transform_3(%arg0: i32) -> (i32, i32) {
    %c0_i32 = arith.constant 0 : i32
    %c0_i32_0 = arith.constant 0 : i32
    %c0_i32_1 = arith.constant 0 : i32
    return %c0_i32, %c0_i32_0 : i32, i32
  }
  func.func @transform_4(%arg0: i32) -> (i32, i32) {
    %c0_i32 = arith.constant 0 : i32
    %c0_i32_0 = arith.constant 0 : i32
    %c0_i32_1 = arith.constant 0 : i32
    return %c0_i32, %c0_i32_0 : i32, i32
  }
  func.func @transform_5(%arg0: i32) -> (i32, i32) {
    %c0_i32 = arith.constant 0 : i32
    %c0_i32_0 = arith.constant 0 : i32
    %c0_i32_1 = arith.constant 0 : i32
    return %c0_i32, %c0_i32_0 : i32, i32
  }
  func.func @transform_6(%arg0: i32) -> (i32, i32) {
    %c0_i32 = arith.constant 0 : i32
    %c0_i32_0 = arith.constant 0 : i32
    %c0_i32_1 = arith.constant 0 : i32
    return %c0_i32, %c0_i32_0 : i32, i32
  }
  func.func @transform_7(%arg0: i32) -> (i32, i32) {
    %c0_i32 = arith.constant 0 : i32
    %c0_i32_0 = arith.constant 0 : i32
    %c0_i32_1 = arith.constant 0 : i32
    return %c0_i32, %c0_i32_0 : i32, i32
  }
  func.func @transform_8(%arg0: i32) -> (i32, i32) {
    %c0_i32 = arith.constant 0 : i32
    %c0_i32_0 = arith.constant 0 : i32
    %c0_i32_1 = arith.constant 0 : i32
    return %c0_i32, %c0_i32_0 : i32, i32
  }
  func.func @transform_9(%arg0: i32) -> (i32, i32) {
    %c0_i32 = arith.constant 0 : i32
    %c0_i32_0 = arith.constant 0 : i32
    %c0_i32_1 = arith.constant 0 : i32
    return %c0_i32, %c0_i32_0 : i32, i32
  }
  func.func @transform_10(%arg0: i32) -> (i32, i32) {
    %c0_i32 = arith.constant 0 : i32
    %c0_i32_0 = arith.constant 0 : i32
    %c0_i32_1 = arith.constant 0 : i32
    return %c0_i32, %c0_i32_0 : i32, i32
  }
  func.func @transform_11(%arg0: i32) -> (i32, i32) {
    %c0_i32 = arith.constant 0 : i32
    %c0_i32_0 = arith.constant 0 : i32
    %c0_i32_1 = arith.constant 0 : i32
    return %c0_i32, %c0_i32_0 : i32, i32
  }
  func.func @transform_12(%arg0: i32) -> (i32, i32) {
    %c0_i32 = arith.constant 0 : i32
    %c0_i32_0 = arith.constant 0 : i32
    %c0_i32_1 = arith.constant 0 : i32
    return %c0_i32, %c0_i32_0 : i32, i32
  }
  func.func @transform_13(%arg0: i32) -> (i32, i32) {
    %c0_i32 = arith.constant 0 : i32
    %c0_i32_0 = arith.constant 0 : i32
    %c0_i32_1 = arith.constant 0 : i32
    return %c0_i32, %c0_i32_0 : i32, i32
  }
  func.func @transform_14(%arg0: i32) -> (i32, i32) {
    %c0_i32 = arith.constant 0 : i32
    %c0_i32_0 = arith.constant 0 : i32
    %c0_i32_1 = arith.constant 0 : i32
    return %c0_i32, %c0_i32_0 : i32, i32
  }
  func.func @transform_15(%arg0: i32) -> (i32, i32) {
    %c0_i32 = arith.constant 0 : i32
    %c0_i32_0 = arith.constant 0 : i32
    return %arg0, %c0_i32 : i32, i32
  }
}

</mosaic_0001>

<llo_original>
// kernel: tpu_custom_call.1
$region0: #{tpu_custom_call.1}
  #allocation0 [shape = 'u32[]', space=smem, size = 0x4, offset = 0x4, fixed_abs, tag = 'smem constant byte address 0x4 - core index']
  #allocation1 [shape = 'u32[144,128]{1,0:T(1,128)}', space=vmem, size = 0x12000, scoped, tag = 'internal scratch']
  %s0 = inlined_call_operand.hbm [shape: bf16[16,128], index: 0, kind: input, shape index: {}]
  %s1 = inlined_call_operand.hbm [shape: bf16[128,1280], index: 1, kind: input, shape index: {}]
  %s2 = inlined_call_operand.hbm [shape: bf16[1280,384], index: 2, kind: input, shape index: {}]
  %s3 = inlined_call_operand.vmem [shape: f32[1,384], index: 3, kind: input, shape index: {}]
  %s4 = inlined_call_operand.hbm [shape: bf16[384,128], index: 4, kind: input, shape index: {}]
  %s5 = inlined_call_operand.vmem [shape: f32[1,128], index: 5, kind: input, shape index: {}]
  %s6 = inlined_call_operand.hbm [shape: bf16[128,128], index: 6, kind: input, shape index: {}]
  %s7 = inlined_call_operand.vmem [shape: f32[1,128], index: 7, kind: input, shape index: {}]
  %s8 = inlined_call_operand.hbm [shape: bf16[128,1280], index: 8, kind: input, shape index: {}]
  %s9 = inlined_call_operand.hbm [shape: bf16[1280,384], index: 9, kind: input, shape index: {}]
  %s10 = inlined_call_operand.vmem [shape: f32[1,384], index: 10, kind: input, shape index: {}]
  %s11 = inlined_call_operand.hbm [shape: bf16[384,128], index: 11, kind: input, shape index: {}]
  %s12 = inlined_call_operand.vmem [shape: f32[1,128], index: 12, kind: input, shape index: {}]
  %s13 = inlined_call_operand.hbm [shape: bf16[128,128], index: 13, kind: input, shape index: {}]
  %s14 = inlined_call_operand.vmem [shape: f32[1,128], index: 14, kind: input, shape index: {}]
  %s15 = inlined_call_operand.hbm [shape: f32[16,128], index: 15, kind: output, shape index: {}]
  %s16 = sld [smem:[#allocation0]]
  $region106: #{tpu_custom_call.1} parent=0
    _
  %s18 = ssub.s32 1, %s16
  %s19 = scalar_select 0, %s18, %s16
  $region1: #{tpu_custom_call.1} parent=0
    #allocation2 [shape = 'u8[4096]{0}', space=vmem, size = 0x1000, scoped, tag = 'input window, operand 0, single buffered']
    #allocation3 [shape = 's32[1]{0}', space=sflag, size = 0x4, scoped, tag = 'scoped memory for tpu_custom_call.1']
    #allocation4 [shape = 's32[1]{0}', space=sflag, size = 0x4, scoped, tag = 'scoped memory for tpu_custom_call.1']
    #allocation5 [shape = 'u8[327680]{0}', space=vmem, size = 0x50000, scoped, tag = 'input window, operand 1, single buffered']
    #allocation6 [shape = 's32[1]{0}', space=sflag, size = 0x4, scoped, tag = 'scoped memory for tpu_custom_call.1']
    #allocation7 [shape = 'u8[983040]{0}', space=vmem, size = 0xf0000, scoped, tag = 'input window, operand 2, single buffered']
    #allocation8 [shape = 'u8[98304]{0}', space=vmem, size = 0x18000, scoped, tag = 'input window, operand 4, single buffered']
    #allocation9 [shape = 's32[1]{0}', space=sflag, size = 0x4, scoped, tag = 'scoped memory for tpu_custom_call.1']
    #allocation10 [shape = 'u8[32768]{0}', space=vmem, size = 0x8000, scoped, tag = 'input window, operand 6, single buffered']
    #allocation11 [shape = 'u8[327680]{0}', space=vmem, size = 0x50000, scoped, tag = 'input window, operand 8, single buffered']
    #allocation12 [shape = 's32[1]{0}', space=sflag, size = 0x4, scoped, tag = 'scoped memory for tpu_custom_call.1']
    #allocation13 [shape = 'u8[983040]{0}', space=vmem, size = 0xf0000, scoped, tag = 'input window, operand 9, single buffered']
    #allocation14 [shape = 'u8[98304]{0}', space=vmem, size = 0x18000, scoped, tag = 'input window, operand 11, single buffered']
    #allocation15 [shape = 's32[1]{0}', space=sflag, size = 0x4, scoped, tag = 'scoped memory for tpu_custom_call.1']
    #allocation16 [shape = 'u8[32768]{0}', space=vmem, size = 0x8000, scoped, tag = 'input window, operand 13, single buffered']
    #allocation17 [shape = 'u8[8192]{0}', space=vmem, size = 0x2000, scoped, tag = 'output window, operand 0, single buffered']
    %20 = vsyncpa [#allocation3], 0
    %21 = vsyncpa [#allocation6], 0
    %22 = vsyncpa [#allocation9], 0
    %23 = vsyncpa [#allocation12], 0
    %24 = vsyncpa [#allocation15], 0
    %25 = vsyncpa [#allocation4], 0
    // Predicated region
    $region2: #{tpu_custom_call.1} parent=1 // pred_check
      _
    $region3: #{tpu_custom_call.1} parent=1 // pred_check_branch
      %27 = sbr.rel (0) target = $region5
    $region4: #{tpu_custom_call.1} parent=1 // pred_region
      %s29 = ssub.s32 128, 128
      %30 = vsyncadd [#allocation3], %s29
      %s31 = sshll.u32 [#allocation2], 4
      %s32 = int_to_ptr.vmem [resolvable:$true] %s31
      %37 = dma.hbm_to_vmem [thread:$0]  %s0, 128, %s32, [#allocation3], 64, 64, 4
    $region5: #{tpu_custom_call.1} parent=1 // pred_fallthru
      _
    // Predicated region
    $region6: #{tpu_custom_call.1} parent=1 // pred_check
      _
    $region7: #{tpu_custom_call.1} parent=1 // pred_check_branch
      %39 = sbr.rel (0) target = $region9
    $region8: #{tpu_custom_call.1} parent=1 // pred_region
      %s41 = ssub.s32 10240, 10240
      %42 = vsyncadd [#allocation6], %s41
      %s43 = sshll.u32 [#allocation5], 4
      %s44 = int_to_ptr.vmem [resolvable:$true] %s43
      %49 = dma.hbm_to_vmem [thread:$0]  %s1, 10240, %s44, [#allocation6], 640, 640, 40
    $region9: #{tpu_custom_call.1} parent=1 // pred_fallthru
      _
    // Predicated region
    $region10: #{tpu_custom_call.1} parent=1 // pred_check
      _
    $region11: #{tpu_custom_call.1} parent=1 // pred_check_branch
      %51 = sbr.rel (0) target = $region13
    $region12: #{tpu_custom_call.1} parent=1 // pred_region
      %s53 = ssub.s32 30720, 30720
      %54 = vsyncadd [#allocation6], %s53
      %s55 = sshll.u32 [#allocation7], 4
      %s56 = int_to_ptr.vmem [resolvable:$true] %s55
      %61 = dma.hbm_to_vmem [thread:$0]  %s2, 30720, %s56, [#allocation6], 192, 192, 12
    $region13: #{tpu_custom_call.1} parent=1 // pred_fallthru
      _
    // Predicated region
    $region14: #{tpu_custom_call.1} parent=1 // pred_check
      _
    $region15: #{tpu_custom_call.1} parent=1 // pred_check_branch
      %63 = sbr.rel (0) target = $region17
    $region16: #{tpu_custom_call.1} parent=1 // pred_region
      _
    $region17: #{tpu_custom_call.1} parent=1 // pred_fallthru
      _
    // Predicated region
    $region18: #{tpu_custom_call.1} parent=1 // pred_check
      _
    $region19: #{tpu_custom_call.1} parent=1 // pred_check_branch
      %65 = sbr.rel (0) target = $region21
    $region20: #{tpu_custom_call.1} parent=1 // pred_region
      %s67 = ssub.s32 3072, 3072
      %68 = vsyncadd [#allocation9], %s67
      %s69 = sshll.u32 [#allocation8], 4
      %s70 = int_to_ptr.vmem [resolvable:$true] %s69
      %75 = dma.hbm_to_vmem [thread:$0]  %s4, 3072, %s70, [#allocation9], 64, 64, 4
    $region21: #{tpu_custom_call.1} parent=1 // pred_fallthru
      _
    // Predicated region
    $region22: #{tpu_custom_call.1} parent=1 // pred_check
      _
    $region23: #{tpu_custom_call.1} parent=1 // pred_check_branch
      %77 = sbr.rel (0) target = $region25
    $region24: #{tpu_custom_call.1} parent=1 // pred_region
      _
    $region25: #{tpu_custom_call.1} parent=1 // pred_fallthru
      _
    // Predicated region
    $region26: #{tpu_custom_call.1} parent=1 // pred_check
      _
    $region27: #{tpu_custom_call.1} parent=1 // pred_check_branch
      %79 = sbr.rel (0) target = $region29
    $region28: #{tpu_custom_call.1} parent=1 // pred_region
      %s81 = ssub.s32 1024, 1024
      %82 = vsyncadd [#allocation9], %s81
      %s83 = sshll.u32 [#allocation10], 4
      %s84 = int_to_ptr.vmem [resolvable:$true] %s83
      %89 = dma.hbm_to_vmem [thread:$0]  %s6, 1024, %s84, [#allocation9], 64, 64, 4
    $region29: #{tpu_custom_call.1} parent=1 // pred_fallthru
      _
    // Predicated region
    $region30: #{tpu_custom_call.1} parent=1 // pred_check
      _
    $region31: #{tpu_custom_call.1} parent=1 // pred_check_branch
      %91 = sbr.rel (0) target = $region33
    $region32: #{tpu_custom_call.1} parent=1 // pred_region
      _
    $region33: #{tpu_custom_call.1} parent=1 // pred_fallthru
      _
    // Predicated region
    $region34: #{tpu_custom_call.1} parent=1 // pred_check
      _
    $region35: #{tpu_custom_call.1} parent=1 // pred_check_branch
      %93 = sbr.rel (0) target = $region37
    $region36: #{tpu_custom_call.1} parent=1 // pred_region
      %s95 = ssub.s32 10240, 10240
      %96 = vsyncadd [#allocation12], %s95
      %s97 = sshll.u32 [#allocation11], 4
      %s98 = int_to_ptr.vmem [resolvable:$true] %s97
      %103 = dma.hbm_to_vmem [thread:$0]  %s8, 10240, %s98, [#allocation12], 640, 640, 40
    $region37: #{tpu_custom_call.1} parent=1 // pred_fallthru
      _
    // Predicated region
    $region38: #{tpu_custom_call.1} parent=1 // pred_check
      _
    $region39: #{tpu_custom_call.1} parent=1 // pred_check_branch
      %105 = sbr.rel (0) target = $region41
    $region40: #{tpu_custom_call.1} parent=1 // pred_region
      %s107 = ssub.s32 30720, 30720
      %108 = vsyncadd [#allocation12], %s107
      %s109 = sshll.u32 [#allocation13], 4
      %s110 = int_to_ptr.vmem [resolvable:$true] %s109
      %115 = dma.hbm_to_vmem [thread:$0]  %s9, 30720, %s110, [#allocation12], 192, 192, 12
    $region41: #{tpu_custom_call.1} parent=1 // pred_fallthru
      _
    // Predicated region
    $region42: #{tpu_custom_call.1} parent=1 // pred_check
      _
    $region43: #{tpu_custom_call.1} parent=1 // pred_check_branch
      %117 = sbr.rel (0) target = $region45
    $region44: #{tpu_custom_call.1} parent=1 // pred_region
      _
    $region45: #{tpu_custom_call.1} parent=1 // pred_fallthru
      _
    // Predicated region
    $region46: #{tpu_custom_call.1} parent=1 // pred_check
      _
    $region47: #{tpu_custom_call.1} parent=1 // pred_check_branch
      %119 = sbr.rel (0) target = $region49
    $region48: #{tpu_custom_call.1} parent=1 // pred_region
      %s121 = ssub.s32 3072, 3072
      %122 = vsyncadd [#allocation15], %s121
      %s123 = sshll.u32 [#allocation14], 4
      %s124 = int_to_ptr.vmem [resolvable:$true] %s123
      %129 = dma.hbm_to_vmem [thread:$0]  %s11, 3072, %s124, [#allocation15], 64, 64, 4
    $region49: #{tpu_custom_call.1} parent=1 // pred_fallthru
      _
    // Predicated region
    $region50: #{tpu_custom_call.1} parent=1 // pred_check
      _
    $region51: #{tpu_custom_call.1} parent=1 // pred_check_branch
      %131 = sbr.rel (0) target = $region53
    $region52: #{tpu_custom_call.1} parent=1 // pred_region
      _
    $region53: #{tpu_custom_call.1} parent=1 // pred_fallthru
      _
    // Predicated region
    $region54: #{tpu_custom_call.1} parent=1 // pred_check
      _
    $region55: #{tpu_custom_call.1} parent=1 // pred_check_branch
      %133 = sbr.rel (0) target = $region57
    $region56: #{tpu_custom_call.1} parent=1 // pred_region
      %s135 = ssub.s32 1024, 1024
      %136 = vsyncadd [#allocation15], %s135
      %s137 = sshll.u32 [#allocation16], 4
      %s138 = int_to_ptr.vmem [resolvable:$true] %s137
      %143 = dma.hbm_to_vmem [thread:$0]  %s13, 1024, %s138, [#allocation15], 64, 64, 4
    $region57: #{tpu_custom_call.1} parent=1 // pred_fallthru
      _
    // Predicated region
    $region58: #{tpu_custom_call.1} parent=1 // pred_check
      _
    $region59: #{tpu_custom_call.1} parent=1 // pred_check_branch
      %145 = sbr.rel (0) target = $region61
    $region60: #{tpu_custom_call.1} parent=1 // pred_region
      _
    $region61: #{tpu_custom_call.1} parent=1 // pred_fallthru
      _
    // Predicated region
    $region62: #{tpu_custom_call.1} parent=1 // pred_check
      _
    $region63: #{tpu_custom_call.1} parent=1 // pred_check_branch
      %147 = sbr.rel (0) target = $region65
    $region64: #{tpu_custom_call.1} parent=1 // pred_region
      %148 = dma.done [#allocation3], 128
    $region65: #{tpu_custom_call.1} parent=1 // pred_fallthru
      _
    // Predicated region
    $region66: #{tpu_custom_call.1} parent=1 // pred_check
      _
    $region67: #{tpu_custom_call.1} parent=1 // pred_check_branch
      %150 = sbr.rel (0) target = $region69
    $region68: #{tpu_custom_call.1} parent=1 // pred_region
      %151 = dma.done [#allocation6], 10240
    $region69: #{tpu_custom_call.1} parent=1 // pred_fallthru
      _
    // Predicated region
    $region70: #{tpu_custom_call.1} parent=1 // pred_check
      _
    $region71: #{tpu_custom_call.1} parent=1 // pred_check_branch
      %153 = sbr.rel (0) target = $region73
    $region72: #{tpu_custom_call.1} parent=1 // pred_region
      %154 = dma.done [#allocation6], 30720
    $region73: #{tpu_custom_call.1} parent=1 // pred_fallthru
      _
    // Predicated region
    $region74: #{tpu_custom_call.1} parent=1 // pred_check
      _
    $region75: #{tpu_custom_call.1} parent=1 // pred_check_branch
      %156 = sbr.rel (0) target = $region77
    $region76: #{tpu_custom_call.1} parent=1 // pred_region
      %157 = dma.done [#allocation9], 3072
    $region77: #{tpu_custom_call.1} parent=1 // pred_fallthru
      _
    // Predicated region
    $region78: #{tpu_custom_call.1} parent=1 // pred_check
      _
    $region79: #{tpu_custom_call.1} parent=1 // pred_check_branch
      %159 = sbr.rel (0) target = $region81
    $region80: #{tpu_custom_call.1} parent=1 // pred_region
      %160 = dma.done [#allocation9], 1024
    $region81: #{tpu_custom_call.1} parent=1 // pred_fallthru
      _
    // Predicated region
    $region82: #{tpu_custom_call.1} parent=1 // pred_check
      _
    $region83: #{tpu_custom_call.1} parent=1 // pred_check_branch
      %162 = sbr.rel (0) target = $region85
    $region84: #{tpu_custom_call.1} parent=1 // pred_region
      %163 = dma.done [#allocation12], 10240
    $region85: #{tpu_custom_call.1} parent=1 // pred_fallthru
      _
    // Predicated region
    $region86: #{tpu_custom_call.1} parent=1 // pred_check
      _
    $region87: #{tpu_custom_call.1} parent=1 // pred_check_branch
      %165 = sbr.rel (0) target = $region89
    $region88: #{tpu_custom_call.1} parent=1 // pred_region
      %166 = dma.done [#allocation12], 30720
    $region89: #{tpu_custom_call.1} parent=1 // pred_fallthru
      _
    // Predicated region
    $region90: #{tpu_custom_call.1} parent=1 // pred_check
      _
    $region91: #{tpu_custom_call.1} parent=1 // pred_check_branch
      %168 = sbr.rel (0) target = $region93
    $region92: #{tpu_custom_call.1} parent=1 // pred_region
      %169 = dma.done [#allocation15], 3072
    $region93: #{tpu_custom_call.1} parent=1 // pred_fallthru
      _
    // Predicated region
    $region94: #{tpu_custom_call.1} parent=1 // pred_check
      _
    $region95: #{tpu_custom_call.1} parent=1 // pred_check_branch
      %171 = sbr.rel (0) target = $region97
    $region96: #{tpu_custom_call.1} parent=1 // pred_region
      %172 = dma.done [#allocation15], 1024
    $region97: #{tpu_custom_call.1} parent=1 // pred_fallthru
      _
    %v174 = vld [vmem:[#allocation2] sm:$0xf]
    %v175 = vld [vmem:[#allocation2 + $0x4] sm:$0xf]
    %v176 = vld [vmem:[#allocation5] sm:$0xff]
    %v177 = vld [vmem:[#allocation5 + $0x8] sm:$0xff]
    %v178 = vld [vmem:[#allocation5 + $0x10] sm:$0xff]
    %v179 = vld [vmem:[#allocation5 + $0x18] sm:$0xff]
    %v180 = vld [vmem:[#allocation5 + $0x20] sm:$0xff]
    %v181 = vld [vmem:[#allocation5 + $0x28] sm:$0xff]
    %v182 = vld [vmem:[#allocation5 + $0x30] sm:$0xff]
    %v183 = vld [vmem:[#allocation5 + $0x38] sm:$0xff]
    %v184 = vld [vmem:[#allocation5 + $0x40] sm:$0xff]
    %v185 = vld [vmem:[#allocation5 + $0x48] sm:$0xff]
    %v186 = vld [vmem:[#allocation5 + $0x50] sm:$0xff]
    %v187 = vld [vmem:[#allocation5 + $0x58] sm:$0xff]
    %v188 = vld [vmem:[#allocation5 + $0x60] sm:$0xff]
    %v189 = vld [vmem:[#allocation5 + $0x68] sm:$0xff]
    %v190 = vld [vmem:[#allocation5 + $0x70] sm:$0xff]
    %v191 = vld [vmem:[#allocation5 + $0x78] sm:$0xff]
    %v192 = vld [vmem:[#allocation5 + $0x80] sm:$0xff]
    %v193 = vld [vmem:[#allocation5 + $0x88] sm:$0xff]
    %v194 = vld [vmem:[#allocation5 + $0x90] sm:$0xff]
    %v195 = vld [vmem:[#allocation5 + $0x98] sm:$0xff]
    %v196 = vld [vmem:[#allocation5 + $0xa0] sm:$0xff]
    %v197 = vld [vmem:[#allocation5 + $0xa8] sm:$0xff]
    %v198 = vld [vmem:[#allocation5 + $0xb0] sm:$0xff]
    %v199 = vld [vmem:[#allocation5 + $0xb8] sm:$0xff]
    %v200 = vld [vmem:[#allocation5 + $0xc0] sm:$0xff]
    %v201 = vld [vmem:[#allocation5 + $0xc8] sm:$0xff]
    %v202 = vld [vmem:[#allocation5 + $0xd0] sm:$0xff]
    %v203 = vld [vmem:[#allocation5 + $0xd8] sm:$0xff]
    %v204 = vld [vmem:[#allocation5 + $0xe0] sm:$0xff]
    %v205 = vld [vmem:[#allocation5 + $0xe8] sm:$0xff]
    %v206 = vld [vmem:[#allocation5 + $0xf0] sm:$0xff]
    %v207 = vld [vmem:[#allocation5 + $0xf8] sm:$0xff]
    %v208 = vld [vmem:[#allocation5 + $0x100] sm:$0xff]
    %v209 = vld [vmem:[#allocation5 + $0x108] sm:$0xff]
    %v210 = vld [vmem:[#allocation5 + $0x110] sm:$0xff]
    %v211 = vld [vmem:[#allocation5 + $0x118] sm:$0xff]
    %v212 = vld [vmem:[#allocation5 + $0x120] sm:$0xff]
    %v213 = vld [vmem:[#allocation5 + $0x128] sm:$0xff]
    %v214 = vld [vmem:[#allocation5 + $0x130] sm:$0xff]
    %v215 = vld [vmem:[#allocation5 + $0x138] sm:$0xff]
    %v216 = vld [vmem:[#allocation5 + $0x140] sm:$0xff]
    %v217 = vld [vmem:[#allocation5 + $0x148] sm:$0xff]
    %v218 = vld [vmem:[#allocation5 + $0x150] sm:$0xff]
    %v219 = vld [vmem:[#allocation5 + $0x158] sm:$0xff]
    %v220 = vld [vmem:[#allocation5 + $0x160] sm:$0xff]
    %v221 = vld [vmem:[#allocation5 + $0x168] sm:$0xff]
    %v222 = vld [vmem:[#allocation5 + $0x170] sm:$0xff]
    %v223 = vld [vmem:[#allocation5 + $0x178] sm:$0xff]
    %v224 = vld [vmem:[#allocation5 + $0x180] sm:$0xff]
    %v225 = vld [vmem:[#allocation5 + $0x188] sm:$0xff]
    %v226 = vld [vmem:[#allocation5 + $0x190] sm:$0xff]
    %v227 = vld [vmem:[#allocation5 + $0x198] sm:$0xff]
    %v228 = vld [vmem:[#allocation5 + $0x1a0] sm:$0xff]
    %v229 = vld [vmem:[#allocation5 + $0x1a8] sm:$0xff]
    %v230 = vld [vmem:[#allocation5 + $0x1b0] sm:$0xff]
    %v231 = vld [vmem:[#allocation5 + $0x1b8] sm:$0xff]
    %v232 = vld [vmem:[#allocation5 + $0x1c0] sm:$0xff]
    %v233 = vld [vmem:[#allocation5 + $0x1c8] sm:$0xff]
    %v234 = vld [vmem:[#allocation5 + $0x1d0] sm:$0xff]
    %v235 = vld [vmem:[#allocation5 + $0x1d8] sm:$0xff]
    %v236 = vld [vmem:[#allocation5 + $0x1e0] sm:$0xff]
    %v237 = vld [vmem:[#allocation5 + $0x1e8] sm:$0xff]
    %v238 = vld [vmem:[#allocation5 + $0x1f0] sm:$0xff]
    %v239 = vld [vmem:[#allocation5 + $0x1f8] sm:$0xff]
    %v240 = vld [vmem:[#allocation5 + $0x200] sm:$0xff]
    %v241 = vld [vmem:[#allocation5 + $0x208] sm:$0xff]
    %v242 = vld [vmem:[#allocation5 + $0x210] sm:$0xff]
    %v243 = vld [vmem:[#allocation5 + $0x218] sm:$0xff]
    %v244 = vld [vmem:[#allocation5 + $0x220] sm:$0xff]
    %v245 = vld [vmem:[#allocation5 + $0x228] sm:$0xff]
    %v246 = vld [vmem:[#allocation5 + $0x230] sm:$0xff]
    %v247 = vld [vmem:[#allocation5 + $0x238] sm:$0xff]
    %v248 = vld [vmem:[#allocation5 + $0x240] sm:$0xff]
    %v249 = vld [vmem:[#allocation5 + $0x248] sm:$0xff]
    %v250 = vld [vmem:[#allocation5 + $0x250] sm:$0xff]
    %v251 = vld [vmem:[#allocation5 + $0x258] sm:$0xff]
    %v252 = vld [vmem:[#allocation5 + $0x260] sm:$0xff]
    %v253 = vld [vmem:[#allocation5 + $0x268] sm:$0xff]
    %v254 = vld [vmem:[#allocation5 + $0x270] sm:$0xff]
    %v255 = vld [vmem:[#allocation5 + $0x278] sm:$0xff]
    %v258 = vunpack.c.l.b16 %v174
    %v259 = vunpack.c.l.b16 %v175
    %v260 = vpack.c.b16 %v259, %v258
    %v342 = vunpack.c.l.b16 %v176
    %v343 = vunpack.c.h.b16 %v176
    %v344 = vunpack.c.l.b16 %v177
    %v345 = vunpack.c.h.b16 %v177
    %v346 = vunpack.c.l.b16 %v178
    %v347 = vunpack.c.h.b16 %v178
    %v348 = vunpack.c.l.b16 %v179
    %v349 = vunpack.c.h.b16 %v179
    %v350 = vunpack.c.l.b16 %v180
    %v351 = vunpack.c.h.b16 %v180
    %v352 = vunpack.c.l.b16 %v181
    %v353 = vunpack.c.h.b16 %v181
    %v354 = vunpack.c.l.b16 %v182
    %v355 = vunpack.c.h.b16 %v182
    %v356 = vunpack.c.l.b16 %v183
    %v357 = vunpack.c.h.b16 %v183
    %v358 = vunpack.c.l.b16 %v184
    %v359 = vunpack.c.h.b16 %v184
    %v360 = vunpack.c.l.b16 %v185
    %v361 = vunpack.c.h.b16 %v185
    %v362 = vunpack.c.l.b16 %v186
    %v363 = vunpack.c.h.b16 %v186
    %v364 = vunpack.c.l.b16 %v187
    %v365 = vunpack.c.h.b16 %v187
    %v366 = vunpack.c.l.b16 %v188
    %v367 = vunpack.c.h.b16 %v188
    %v368 = vunpack.c.l.b16 %v189
    %v369 = vunpack.c.h.b16 %v189
    %v370 = vunpack.c.l.b16 %v190
    %v371 = vunpack.c.h.b16 %v190
    %v372 = vunpack.c.l.b16 %v191
    %v373 = vunpack.c.h.b16 %v191
    %v374 = vunpack.c.l.b16 %v192
    %v375 = vunpack.c.h.b16 %v192
    %v376 = vunpack.c.l.b16 %v193
    %v377 = vunpack.c.h.b16 %v193
    %v378 = vunpack.c.l.b16 %v194
    %v379 = vunpack.c.h.b16 %v194
    %v380 = vunpack.c.l.b16 %v195
    %v381 = vunpack.c.h.b16 %v195
    %v382 = vunpack.c.l.b16 %v196
    %v383 = vunpack.c.h.b16 %v196
    %v384 = vunpack.c.l.b16 %v197
    %v385 = vunpack.c.h.b16 %v197
    %v386 = vunpack.c.l.b16 %v198
    %v387 = vunpack.c.h.b16 %v198
    %v388 = vunpack.c.l.b16 %v199
    %v389 = vunpack.c.h.b16 %v199
    %v390 = vunpack.c.l.b16 %v200
    %v391 = vunpack.c.h.b16 %v200
    %v392 = vunpack.c.l.b16 %v201
    %v393 = vunpack.c.h.b16 %v201
    %v394 = vunpack.c.l.b16 %v202
    %v395 = vunpack.c.h.b16 %v202
    %v396 = vunpack.c.l.b16 %v203
    %v397 = vunpack.c.h.b16 %v203
    %v398 = vunpack.c.l.b16 %v204
    %v399 = vunpack.c.h.b16 %v204
    %v400 = vunpack.c.l.b16 %v205
    %v401 = vunpack.c.h.b16 %v205
    %v402 = vunpack.c.l.b16 %v206
    %v403 = vunpack.c.h.b16 %v206
    %v404 = vunpack.c.l.b16 %v207
    %v405 = vunpack.c.h.b16 %v207
    %v406 = vunpack.c.l.b16 %v208
    %v407 = vunpack.c.h.b16 %v208
    %v408 = vunpack.c.l.b16 %v209
    %v409 = vunpack.c.h.b16 %v209
    %v410 = vunpack.c.l.b16 %v210
    %v411 = vunpack.c.h.b16 %v210
    %v412 = vunpack.c.l.b16 %v211
    %v413 = vunpack.c.h.b16 %v211
    %v414 = vunpack.c.l.b16 %v212
    %v415 = vunpack.c.h.b16 %v212
    %v416 = vunpack.c.l.b16 %v213
    %v417 = vunpack.c.h.b16 %v213
    %v418 = vunpack.c.l.b16 %v214
    %v419 = vunpack.c.h.b16 %v214
    %v420 = vunpack.c.l.b16 %v215
    %v421 = vunpack.c.h.b16 %v215
    %v422 = vunpack.c.l.b16 %v216
    %v423 = vunpack.c.h.b16 %v216
    %v424 = vunpack.c.l.b16 %v217
    %v425 = vunpack.c.h.b16 %v217
    %v426 = vunpack.c.l.b16 %v218
    %v427 = vunpack.c.h.b16 %v218
    %v428 = vunpack.c.l.b16 %v219
    %v429 = vunpack.c.h.b16 %v219
    %v430 = vunpack.c.l.b16 %v220
    %v431 = vunpack.c.h.b16 %v220
    %v432 = vunpack.c.l.b16 %v221
    %v433 = vunpack.c.h.b16 %v221
    %v434 = vunpack.c.l.b16 %v222
    %v435 = vunpack.c.h.b16 %v222
    %v436 = vunpack.c.l.b16 %v223
    %v437 = vunpack.c.h.b16 %v223
    %v438 = vunpack.c.l.b16 %v224
    %v439 = vunpack.c.h.b16 %v224
    %v440 = vunpack.c.l.b16 %v225
    %v441 = vunpack.c.h.b16 %v225
    %v442 = vunpack.c.l.b16 %v226
    %v443 = vunpack.c.h.b16 %v226
    %v444 = vunpack.c.l.b16 %v227
    %v445 = vunpack.c.h.b16 %v227
    %v446 = vunpack.c.l.b16 %v228
    %v447 = vunpack.c.h.b16 %v228
    %v448 = vunpack.c.l.b16 %v229
    %v449 = vunpack.c.h.b16 %v229
    %v450 = vunpack.c.l.b16 %v230
    %v451 = vunpack.c.h.b16 %v230
    %v452 = vunpack.c.l.b16 %v231
    %v453 = vunpack.c.h.b16 %v231
    %v454 = vunpack.c.l.b16 %v232
    %v455 = vunpack.c.h.b16 %v232
    %v456 = vunpack.c.l.b16 %v233
    %v457 = vunpack.c.h.b16 %v233
    %v458 = vunpack.c.l.b16 %v234
    %v459 = vunpack.c.h.b16 %v234
    %v460 = vunpack.c.l.b16 %v235
    %v461 = vunpack.c.h.b16 %v235
    %v462 = vunpack.c.l.b16 %v236
    %v463 = vunpack.c.h.b16 %v236
    %v464 = vunpack.c.l.b16 %v237
    %v465 = vunpack.c.h.b16 %v237
    %v466 = vunpack.c.l.b16 %v238
    %v467 = vunpack.c.h.b16 %v238
    %v468 = vunpack.c.l.b16 %v239
    %v469 = vunpack.c.h.b16 %v239
    %v470 = vunpack.c.l.b16 %v240
    %v471 = vunpack.c.h.b16 %v240
    %v472 = vunpack.c.l.b16 %v241
    %v473 = vunpack.c.h.b16 %v241
    %v474 = vunpack.c.l.b16 %v242
    %v475 = vunpack.c.h.b16 %v242
    %v476 = vunpack.c.l.b16 %v243
    %v477 = vunpack.c.h.b16 %v243
    %v478 = vunpack.c.l.b16 %v244
    %v479 = vunpack.c.h.b16 %v244
    %v480 = vunpack.c.l.b16 %v245
    %v481 = vunpack.c.h.b16 %v245
    %v482 = vunpack.c.l.b16 %v246
    %v483 = vunpack.c.h.b16 %v246
    %v484 = vunpack.c.l.b16 %v247
    %v485 = vunpack.c.h.b16 %v247
    %v486 = vunpack.c.l.b16 %v248
    %v487 = vunpack.c.h.b16 %v248
    %v488 = vunpack.c.l.b16 %v249
    %v489 = vunpack.c.h.b16 %v249
    %v490 = vunpack.c.l.b16 %v250
    %v491 = vunpack.c.h.b16 %v250
    %v492 = vunpack.c.l.b16 %v251
    %v493 = vunpack.c.h.b16 %v251
    %v494 = vunpack.c.l.b16 %v252
    %v495 = vunpack.c.h.b16 %v252
    %v496 = vunpack.c.l.b16 %v253
    %v497 = vunpack.c.h.b16 %v253
    %v498 = vunpack.c.l.b16 %v254
    %v499 = vunpack.c.h.b16 %v254
    %v500 = vunpack.c.l.b16 %v255
    %v501 = vunpack.c.h.b16 %v255
    %v502 = vpack.c.b16 %v352, %v342
    %v503 = vpack.c.b16 %v353, %v343
    %v504 = vpack.c.b16 %v354, %v344
    %v505 = vpack.c.b16 %v355, %v345
    %v506 = vpack.c.b16 %v356, %v346
    %v507 = vpack.c.b16 %v357, %v347
    %v508 = vpack.c.b16 %v358, %v348
    %v509 = vpack.c.b16 %v359, %v349
    %v510 = vpack.c.b16 %v360, %v350
    %v511 = vpack.c.b16 %v361, %v351
    %v512 = vpack.c.b16 %v372, %v362
    %v513 = vpack.c.b16 %v373, %v363
    %v514 = vpack.c.b16 %v374, %v364
    %v515 = vpack.c.b16 %v375, %v365
    %v516 = vpack.c.b16 %v376, %v366
    %v517 = vpack.c.b16 %v377, %v367
    %v518 = vpack.c.b16 %v378, %v368
    %v519 = vpack.c.b16 %v379, %v369
    %v520 = vpack.c.b16 %v380, %v370
    %v521 = vpack.c.b16 %v381, %v371
    %v522 = vpack.c.b16 %v392, %v382
    %v523 = vpack.c.b16 %v393, %v383
    %v524 = vpack.c.b16 %v394, %v384
    %v525 = vpack.c.b16 %v395, %v385
    %v526 = vpack.c.b16 %v396, %v386
    %v527 = vpack.c.b16 %v397, %v387
    %v528 = vpack.c.b16 %v398, %v388
    %v529 = vpack.c.b16 %v399, %v389
    %v530 = vpack.c.b16 %v400, %v390
    %v531 = vpack.c.b16 %v401, %v391
    %v532 = vpack.c.b16 %v412, %v402
    %v533 = vpack.c.b16 %v413, %v403
    %v534 = vpack.c.b16 %v414, %v404
    %v535 = vpack.c.b16 %v415, %v405
    %v536 = vpack.c.b16 %v416, %v406
    %v537 = vpack.c.b16 %v417, %v407
    %v538 = vpack.c.b16 %v418, %v408
    %v539 = vpack.c.b16 %v419, %v409
    %v540 = vpack.c.b16 %v420, %v410
    %v541 = vpack.c.b16 %v421, %v411
    %v542 = vpack.c.b16 %v432, %v422
    %v543 = vpack.c.b16 %v433, %v423
    %v544 = vpack.c.b16 %v434, %v424
    %v545 = vpack.c.b16 %v435, %v425
    %v546 = vpack.c.b16 %v436, %v426
    %v547 = vpack.c.b16 %v437, %v427
    %v548 = vpack.c.b16 %v438, %v428
    %v549 = vpack.c.b16 %v439, %v429
    %v550 = vpack.c.b16 %v440, %v430
    %v551 = vpack.c.b16 %v441, %v431
    %v552 = vpack.c.b16 %v452, %v442
    %v553 = vpack.c.b16 %v453, %v443
    %v554 = vpack.c.b16 %v454, %v444
    %v555 = vpack.c.b16 %v455, %v445
    %v556 = vpack.c.b16 %v456, %v446
    %v557 = vpack.c.b16 %v457, %v447
    %v558 = vpack.c.b16 %v458, %v448
    %v559 = vpack.c.b16 %v459, %v449
    %v560 = vpack.c.b16 %v460, %v450
    %v561 = vpack.c.b16 %v461, %v451
    %v562 = vpack.c.b16 %v472, %v462
    %v563 = vpack.c.b16 %v473, %v463
    %v564 = vpack.c.b16 %v474, %v464
    %v565 = vpack.c.b16 %v475, %v465
    %v566 = vpack.c.b16 %v476, %v466
    %v567 = vpack.c.b16 %v477, %v467
    %v568 = vpack.c.b16 %v478, %v468
    %v569 = vpack.c.b16 %v479, %v469
    %v570 = vpack.c.b16 %v480, %v470
    %v571 = vpack.c.b16 %v481, %v471
    %v572 = vpack.c.b16 %v492, %v482
    %v573 = vpack.c.b16 %v493, %v483
    %v574 = vpack.c.b16 %v494, %v484
    %v575 = vpack.c.b16 %v495, %v485
    %v576 = vpack.c.b16 %v496, %v486
    %v577 = vpack.c.b16 %v497, %v487
    %v578 = vpack.c.b16 %v498, %v488
    %v579 = vpack.c.b16 %v499, %v489
    %v580 = vpack.c.b16 %v500, %v490
    %v581 = vpack.c.b16 %v501, %v491
    %662 = vmatprep.subr.bf16.mxu0 %v573
    %663 = vmatpush1.bf16.msra.mxu0 %v572
    %664 = vmatprep.subr.bf16.mxu0 %v563
    %665 = vmatpush1.bf16.msra.mxu0 %v562
    %666 = vmatprep.subr.bf16.mxu0 %v553
    %667 = vmatpush1.bf16.msra.mxu0 %v552
    %668 = vmatprep.subr.bf16.mxu0 %v543
    %669 = vmatpush1.bf16.msra.mxu0 %v542
    %670 = vmatprep.subr.bf16.mxu0 %v533
    %671 = vmatpush1.bf16.msra.mxu0 %v532
    %672 = vmatprep.subr.bf16.mxu0 %v523
    %673 = vmatpush1.bf16.msra.mxu0 %v522
    %674 = vmatprep.subr.bf16.mxu0 %v513
    %675 = vmatpush1.bf16.msra.mxu0 %v512
    %676 = vmatprep.subr.bf16.mxu0 %v503
    %677 = vmatpush1.bf16.msra.mxu0 %v502
    %678 = vmatprep.subr.bf16.mxu0 0
    %679 = vmatpush2.bf16.msra.mxu0 0
    %680 = vmatprep.subr.bf16.mxu0 0
    %681 = vmatpush2.bf16.msra.mxu0 0
    %682 = vmatprep.subr.bf16.mxu0 0
    %683 = vmatpush2.bf16.msra.mxu0 0
    %684 = vmatprep.subr.bf16.mxu0 0
    %685 = vmatpush2.bf16.msra.mxu0 0
    %686 = vmatprep.subr.bf16.mxu0 0
    %687 = vmatpush2.bf16.msra.mxu0 0
    %688 = vmatprep.subr.bf16.mxu0 0
    %689 = vmatpush2.bf16.msra.mxu0 0
    %690 = vmatprep.subr.bf16.mxu0 0
    %691 = vmatpush2.bf16.msra.mxu0 0
    %692 = vmatprep.subr.bf16.mxu0 0
    %693 = vmatpush2.bf16.msra.mxu0 0
    %694 = vmatprep.mubr.bf16.mxu0 0
    %695 = vmatmul.mubr.bf16.gmra.mxu0 %v260
    %v696 = vpop.f32.mrf.mxu0
    %v697 = vadd.f32 0.0, %v696
    %v698 = vpop.f32.mrf.mxu0
    %v699 = vadd.f32 0.0, %v698
    %v700 = vpop.f32.mrf.mxu0
    %v701 = vadd.f32 0.0, %v700
    %v702 = vpop.f32.mrf.mxu0
    %v703 = vadd.f32 0.0, %v702
    %704 = vdwg.mxu0
    %705 = vmatprep.subr.bf16.mxu0 %v575
    %706 = vmatpush1.bf16.msra.mxu0 %v574
    %707 = vmatprep.subr.bf16.mxu0 %v565
    %708 = vmatpush1.bf16.msra.mxu0 %v564
    %709 = vmatprep.subr.bf16.mxu0 %v555
    %710 = vmatpush1.bf16.msra.mxu0 %v554
    %711 = vmatprep.subr.bf16.mxu0 %v545
    %712 = vmatpush1.bf16.msra.mxu0 %v544
    %713 = vmatprep.subr.bf16.mxu0 %v535
    %714 = vmatpush1.bf16.msra.mxu0 %v534
    %715 = vmatprep.subr.bf16.mxu0 %v525
    %716 = vmatpush1.bf16.msra.mxu0 %v524
    %717 = vmatprep.subr.bf16.mxu0 %v515
    %718 = vmatpush1.bf16.msra.mxu0 %v514
    %719 = vmatprep.subr.bf16.mxu0 %v505
    %720 = vmatpush1.bf16.msra.mxu0 %v504
    %721 = vmatprep.subr.bf16.mxu0 0
    %722 = vmatpush2.bf16.msra.mxu0 0
    %723 = vmatprep.subr.bf16.mxu0 0
    %724 = vmatpush2.bf16.msra.mxu0 0
    %725 = vmatprep.subr.bf16.mxu0 0
    %726 = vmatpush2.bf16.msra.mxu0 0
    %727 = vmatprep.subr.bf16.mxu0 0
    %728 = vmatpush2.bf16.msra.mxu0 0
    %729 = vmatprep.subr.bf16.mxu0 0
    %730 = vmatpush2.bf16.msra.mxu0 0
    %731 = vmatprep.subr.bf16.mxu0 0
    %732 = vmatpush2.bf16.msra.mxu0 0
    %733 = vmatprep.subr.bf16.mxu0 0
    %734 = vmatpush2.bf16.msra.mxu0 0
    %735 = vmatprep.subr.bf16.mxu0 0
    %736 = vmatpush2.bf16.msra.mxu0 0
    %737 = vmatprep.mubr.bf16.mxu0 0
    %738 = vmatmul.mubr.bf16.gmra.mxu0 %v260
    %v739 = vpop.f32.mrf.mxu0
    %v740 = vadd.f32 0.0, %v739
    %v741 = vpop.f32.mrf.mxu0
    %v742 = vadd.f32 0.0, %v741
    %v743 = vpop.f32.mrf.mxu0
    %v744 = vadd.f32 0.0, %v743
    %v745 = vpop.f32.mrf.mxu0
    %v746 = vadd.f32 0.0, %v745
    %747 = vdwg.mxu0
    %748 = vmatprep.subr.bf16.mxu0 %v577
    %749 = vmatpush1.bf16.msra.mxu0 %v576
    %750 = vmatprep.subr.bf16.mxu0 %v567
    %751 = vmatpush1.bf16.msra.mxu0 %v566
    %752 = vmatprep.subr.bf16.mxu0 %v557
    %753 = vmatpush1.bf16.msra.mxu0 %v556
    %754 = vmatprep.subr.bf16.mxu0 %v547
    %755 = vmatpush1.bf16.msra.mxu0 %v546
    %756 = vmatprep.subr.bf16.mxu0 %v537
    %757 = vmatpush1.bf16.msra.mxu0 %v536
    %758 = vmatprep.subr.bf16.mxu0 %v527
    %759 = vmatpush1.bf16.msra.mxu0 %v526
    %760 = vmatprep.subr.bf16.mxu0 %v517
    %761 = vmatpush1.bf16.msra.mxu0 %v516
    %762 = vmatprep.subr.bf16.mxu0 %v507
    %763 = vmatpush1.bf16.msra.mxu0 %v506
    %764 = vmatprep.subr.bf16.mxu0 0
    %765 = vmatpush2.bf16.msra.mxu0 0
    %766 = vmatprep.subr.bf16.mxu0 0
    %767 = vmatpush2.bf16.msra.mxu0 0
    %768 = vmatprep.subr.bf16.mxu0 0
    %769 = vmatpush2.bf16.msra.mxu0 0
    %770 = vmatprep.subr.bf16.mxu0 0
    %771 = vmatpush2.bf16.msra.mxu0 0
    %772 = vmatprep.subr.bf16.mxu0 0
    %773 = vmatpush2.bf16.msra.mxu0 0
    %774 = vmatprep.subr.bf16.mxu0 0
    %775 = vmatpush2.bf16.msra.mxu0 0
    %776 = vmatprep.subr.bf16.mxu0 0
    %777 = vmatpush2.bf16.msra.mxu0 0
    %778 = vmatprep.subr.bf16.mxu0 0
    %779 = vmatpush2.bf16.msra.mxu0 0
    %780 = vmatprep.mubr.bf16.mxu0 0
    %781 = vmatmul.mubr.bf16.gmra.mxu0 %v260
    %v782 = vpop.f32.mrf.mxu0
    %v783 = vadd.f32 0.0, %v782
    %v784 = vpop.f32.mrf.mxu0
    %v785 = vadd.f32 0.0, %v784
    %v786 = vpop.f32.mrf.mxu0
    %v787 = vadd.f32 0.0, %v786
    %v788 = vpop.f32.mrf.mxu0
    %v789 = vadd.f32 0.0, %v788
    %790 = vdwg.mxu0
    %791 = vmatprep.subr.bf16.mxu0 %v579
    %792 = vmatpush1.bf16.msra.mxu0 %v578
    %793 = vmatprep.subr.bf16.mxu0 %v569
    %794 = vmatpush1.bf16.msra.mxu0 %v568
    %795 = vmatprep.subr.bf16.mxu0 %v559
    %796 = vmatpush1.bf16.msra.mxu0 %v558
    %797 = vmatprep.subr.bf16.mxu0 %v549
    %798 = vmatpush1.bf16.msra.mxu0 %v548
    %799 = vmatprep.subr.bf16.mxu0 %v539
    %800 = vmatpush1.bf16.msra.mxu0 %v538
    %801 = vmatprep.subr.bf16.mxu0 %v529
    %802 = vmatpush1.bf16.msra.mxu0 %v528
    %803 = vmatprep.subr.bf16.mxu0 %v519
    %804 = vmatpush1.bf16.msra.mxu0 %v518
    %805 = vmatprep.subr.bf16.mxu0 %v509
    %806 = vmatpush1.bf16.msra.mxu0 %v508
    %807 = vmatprep.subr.bf16.mxu0 0
    %808 = vmatpush2.bf16.msra.mxu0 0
    %809 = vmatprep.subr.bf16.mxu0 0
    %810 = vmatpush2.bf16.msra.mxu0 0
    %811 = vmatprep.subr.bf16.mxu0 0
    %812 = vmatpush2.bf16.msra.mxu0 0
    %813 = vmatprep.subr.bf16.mxu0 0
    %814 = vmatpush2.bf16.msra.mxu0 0
    %815 = vmatprep.subr.bf16.mxu0 0
    %816 = vmatpush2.bf16.msra.mxu0 0
    %817 = vmatprep.subr.bf16.mxu0 0
    %818 = vmatpush2.bf16.msra.mxu0 0
    %819 = vmatprep.subr.bf16.mxu0 0
    %820 = vmatpush2.bf16.msra.mxu0 0
    %821 = vmatprep.subr.bf16.mxu0 0
    %822 = vmatpush2.bf16.msra.mxu0 0
    %823 = vmatprep.mubr.bf16.mxu0 0
    %824 = vmatmul.mubr.bf16.gmra.mxu0 %v260
    %v825 = vpop.f32.mrf.mxu0
    %v826 = vadd.f32 0.0, %v825
    %v827 = vpop.f32.mrf.mxu0
    %v828 = vadd.f32 0.0, %v827
    %v829 = vpop.f32.mrf.mxu0
    %v830 = vadd.f32 0.0, %v829
    %v831 = vpop.f32.mrf.mxu0
    %v832 = vadd.f32 0.0, %v831
    %833 = vdwg.mxu0
    %834 = vmatprep.subr.bf16.mxu0 %v581
    %835 = vmatpush1.bf16.msra.mxu0 %v580
    %836 = vmatprep.subr.bf16.mxu0 %v571
    %837 = vmatpush1.bf16.msra.mxu0 %v570
    %838 = vmatprep.subr.bf16.mxu0 %v561
    %839 = vmatpush1.bf16.msra.mxu0 %v560
    %840 = vmatprep.subr.bf16.mxu0 %v551
    %841 = vmatpush1.bf16.msra.mxu0 %v550
    %842 = vmatprep.subr.bf16.mxu0 %v541
    %843 = vmatpush1.bf16.msra.mxu0 %v540
    %844 = vmatprep.subr.bf16.mxu0 %v531
    %845 = vmatpush1.bf16.msra.mxu0 %v530
    %846 = vmatprep.subr.bf16.mxu0 %v521
    %847 = vmatpush1.bf16.msra.mxu0 %v520
    %848 = vmatprep.subr.bf16.mxu0 %v511
    %849 = vmatpush1.bf16.msra.mxu0 %v510
    %850 = vmatprep.subr.bf16.mxu0 0
    %851 = vmatpush2.bf16.msra.mxu0 0
    %852 = vmatprep.subr.bf16.mxu0 0
    %853 = vmatpush2.bf16.msra.mxu0 0
    %854 = vmatprep.subr.bf16.mxu0 0
    %855 = vmatpush2.bf16.msra.mxu0 0
    %856 = vmatprep.subr.bf16.mxu0 0
    %857 = vmatpush2.bf16.msra.mxu0 0
    %858 = vmatprep.subr.bf16.mxu0 0
    %859 = vmatpush2.bf16.msra.mxu0 0
    %860 = vmatprep.subr.bf16.mxu0 0
    %861 = vmatpush2.bf16.msra.mxu0 0
    %862 = vmatprep.subr.bf16.mxu0 0
    %863 = vmatpush2.bf16.msra.mxu0 0
    %864 = vmatprep.subr.bf16.mxu0 0
    %865 = vmatpush2.bf16.msra.mxu0 0
    %866 = vmatprep.mubr.bf16.mxu0 0
    %867 = vmatmul.mubr.bf16.gmra.mxu0 %v260
    %v868 = vpop.f32.mrf.mxu0
    %v869 = vadd.f32 0.0, %v868
    %v870 = vpop.f32.mrf.mxu0
    %v871 = vadd.f32 0.0, %v870
    %v872 = vpop.f32.mrf.mxu0
    %v873 = vadd.f32 0.0, %v872
    %v874 = vpop.f32.mrf.mxu0
    %v875 = vadd.f32 0.0, %v874
    %876 = vdwg.mxu0
    %v877 = vpack.c.bf16 %v701, %v697
    %v878 = vpack.c.bf16 %v703, %v699
    %v879 = vpack.c.bf16 %v744, %v740
    %v880 = vpack.c.bf16 %v746, %v742
    %v881 = vpack.c.bf16 %v787, %v783
    %v882 = vpack.c.bf16 %v789, %v785
    %v883 = vpack.c.bf16 %v830, %v826
    %v884 = vpack.c.bf16 %v832, %v828
    %v885 = vpack.c.bf16 %v873, %v869
    %v886 = vpack.c.bf16 %v875, %v871
    %v887 = vmax.bf16 %v877, 0
    %v888 = vmax.bf16 %v878, 0
    %v889 = vmax.bf16 %v879, 0
    %v890 = vmax.bf16 %v880, 0
    %v891 = vmax.bf16 %v881, 0
    %v892 = vmax.bf16 %v882, 0
    %v893 = vmax.bf16 %v883, 0
    %v894 = vmax.bf16 %v884, 0
    %v895 = vmax.bf16 %v885, 0
    %v896 = vmax.bf16 %v886, 0
    %v897 = vld [vmem:[#allocation7] sm:$0xff]
    %v898 = vld [vmem:[#allocation7 + $0x8] sm:$0xf]
    %v899 = vld [vmem:[#allocation7 + $0xc] sm:$0xff]
    %v900 = vld [vmem:[#allocation7 + $0x14] sm:$0xf]
    %v901 = vld [vmem:[#allocation7 + $0x18] sm:$0xff]
    %v902 = vld [vmem:[#allocation7 + $0x20] sm:$0xf]
    %v903 = vld [vmem:[#allocation7 + $0x24] sm:$0xff]
    %v904 = vld [vmem:[#allocation7 + $0x2c] sm:$0xf]
    %v905 = vld [vmem:[#allocation7 + $0x30] sm:$0xff]
    %v906 = vld [vmem:[#allocation7 + $0x38] sm:$0xf]
    %v907 = vld [vmem:[#allocation7 + $0x3c] sm:$0xff]
    %v908 = vld [vmem:[#allocation7 + $0x44] sm:$0xf]
    %v909 = vld [vmem:[#allocation7 + $0x48] sm:$0xff]
    %v910 = vld [vmem:[#allocation7 + $0x50] sm:$0xf]
    %v911 = vld [vmem:[#allocation7 + $0x54] sm:$0xff]
    %v912 = vld [vmem:[#allocation7 + $0x5c] sm:$0xf]
    %v913 = vld [vmem:[#allocation7 + $0x60] sm:$0xff]
    %v914 = vld [vmem:[#allocation7 + $0x68] sm:$0xf]
    %v915 = vld [vmem:[#allocation7 + $0x6c] sm:$0xff]
    %v916 = vld [vmem:[#allocation7 + $0x74] sm:$0xf]
    %v917 = vld [vmem:[#allocation7 + $0x78] sm:$0xff]
    %v918 = vld [vmem:[#allocation7 + $0x80] sm:$0xf]
    %v919 = vld [vmem:[#allocation7 + $0x84] sm:$0xff]
    %v920 = vld [vmem:[#allocation7 + $0x8c] sm:$0xf]
    %v921 = vld [vmem:[#allocation7 + $0x90] sm:$0xff]
    %v922 = vld [vmem:[#allocation7 + $0x98] sm:$0xf]
    %v923 = vld [vmem:[#allocation7 + $0x9c] sm:$0xff]
    %v924 = vld [vmem:[#allocation7 + $0xa4] sm:$0xf]
    %v925 = vld [vmem:[#allocation7 + $0xa8] sm:$0xff]
    %v926 = vld [vmem:[#allocation7 + $0xb0] sm:$0xf]
    %v927 = vld [vmem:[#allocation7 + $0xb4] sm:$0xff]
    %v928 = vld [vmem:[#allocation7 + $0xbc] sm:$0xf]
    %v929 = vld [vmem:[#allocation7 + $0xc0] sm:$0xff]
    %v930 = vld [vmem:[#allocation7 + $0xc8] sm:$0xf]
    %v931 = vld [vmem:[#allocation7 + $0xcc] sm:$0xff]
    %v932 = vld [vmem:[#allocation7 + $0xd4] sm:$0xf]
    %v933 = vld [vmem:[#allocation7 + $0xd8] sm:$0xff]
    %v934 = vld [vmem:[#allocation7 + $0xe0] sm:$0xf]
    %v935 = vld [vmem:[#allocation7 + $0xe4] sm:$0xff]
    %v936 = vld [vmem:[#allocation7 + $0xec] sm:$0xf]
    %v937 = vld [vmem:[#allocation7 + $0xf0] sm:$0xff]
    %v938 = vld [vmem:[#allocation7 + $0xf8] sm:$0xf]
    %v939 = vld [vmem:[#allocation7 + $0xfc] sm:$0xff]
    %v940 = vld [vmem:[#allocation7 + $0x104] sm:$0xf]
    %v941 = vld [vmem:[#allocation7 + $0x108] sm:$0xff]
    %v942 = vld [vmem:[#allocation7 + $0x110] sm:$0xf]
    %v943 = vld [vmem:[#allocation7 + $0x114] sm:$0xff]
    %v944 = vld [vmem:[#allocation7 + $0x11c] sm:$0xf]
    %v945 = vld [vmem:[#allocation7 + $0x120] sm:$0xff]
    %v946 = vld [vmem:[#allocation7 + $0x128] sm:$0xf]
    %v947 = vld [vmem:[#allocation7 + $0x12c] sm:$0xff]
    %v948 = vld [vmem:[#allocation7 + $0x134] sm:$0xf]
    %v949 = vld [vmem:[#allocation7 + $0x138] sm:$0xff]
    %v950 = vld [vmem:[#allocation7 + $0x140] sm:$0xf]
    %v951 = vld [vmem:[#allocation7 + $0x144] sm:$0xff]
    %v952 = vld [vmem:[#allocation7 + $0x14c] sm:$0xf]
    %v953 = vld [vmem:[#allocation7 + $0x150] sm:$0xff]
    %v954 = vld [vmem:[#allocation7 + $0x158] sm:$0xf]
    %v955 = vld [vmem:[#allocation7 + $0x15c] sm:$0xff]
    %v956 = vld [vmem:[#allocation7 + $0x164] sm:$0xf]
    %v957 = vld [vmem:[#allocation7 + $0x168] sm:$0xff]
    %v958 = vld [vmem:[#allocation7 + $0x170] sm:$0xf]
    %v959 = vld [vmem:[#allocation7 + $0x174] sm:$0xff]
    %v960 = vld [vmem:[#allocation7 + $0x17c] sm:$0xf]
    %v961 = vld [vmem:[#allocation7 + $0x180] sm:$0xff]
    %v962 = vld [vmem:[#allocation7 + $0x188] sm:$0xf]
    %v963 = vld [vmem:[#allocation7 + $0x18c] sm:$0xff]
    %v964 = vld [vmem:[#allocation7 + $0x194] sm:$0xf]
    %v965 = vld [vmem:[#allocation7 + $0x198] sm:$0xff]
    %v966 = vld [vmem:[#allocation7 + $0x1a0] sm:$0xf]
    %v967 = vld [vmem:[#allocation7 + $0x1a4] sm:$0xff]
    %v968 = vld [vmem:[#allocation7 + $0x1ac] sm:$0xf]
    %v969 = vld [vmem:[#allocation7 + $0x1b0] sm:$0xff]
    %v970 = vld [vmem:[#allocation7 + $0x1b8] sm:$0xf]
    %v971 = vld [vmem:[#allocation7 + $0x1bc] sm:$0xff]
    %v972 = vld [vmem:[#allocation7 + $0x1c4] sm:$0xf]
    %v973 = vld [vmem:[#allocation7 + $0x1c8] sm:$0xff]
    %v974 = vld [vmem:[#allocation7 + $0x1d0] sm:$0xf]
    %v975 = vld [vmem:[#allocation7 + $0x1d4] sm:$0xff]
    %v976 = vld [vmem:[#allocation7 + $0x1dc] sm:$0xf]
    %v977 = vld [vmem:[#allocation7 + $0x1e0] sm:$0xff]
    %v978 = vld [vmem:[#allocation7 + $0x1e8] sm:$0xf]
    %v979 = vld [vmem:[#allocation7 + $0x1ec] sm:$0xff]
    %v980 = vld [vmem:[#allocation7 + $0x1f4] sm:$0xf]
    %v981 = vld [vmem:[#allocation7 + $0x1f8] sm:$0xff]
    %v982 = vld [vmem:[#allocation7 + $0x200] sm:$0xf]
    %v983 = vld [vmem:[#allocation7 + $0x204] sm:$0xff]
    %v984 = vld [vmem:[#allocation7 + $0x20c] sm:$0xf]
    %v985 = vld [vmem:[#allocation7 + $0x210] sm:$0xff]
    %v986 = vld [vmem:[#allocation7 + $0x218] sm:$0xf]
    %v987 = vld [vmem:[#allocation7 + $0x21c] sm:$0xff]
    %v988 = vld [vmem:[#allocation7 + $0x224] sm:$0xf]
    %v989 = vld [vmem:[#allocation7 + $0x228] sm:$0xff]
    %v990 = vld [vmem:[#allocation7 + $0x230] sm:$0xf]
    %v991 = vld [vmem:[#allocation7 + $0x234] sm:$0xff]
    %v992 = vld [vmem:[#allocation7 + $0x23c] sm:$0xf]
    %v993 = vld [vmem:[#allocation7 + $0x240] sm:$0xff]
    %v994 = vld [vmem:[#allocation7 + $0x248] sm:$0xf]
    %v995 = vld [vmem:[#allocation7 + $0x24c] sm:$0xff]
    %v996 = vld [vmem:[#allocation7 + $0x254] sm:$0xf]
    %v997 = vld [vmem:[#allocation7 + $0x258] sm:$0xff]
    %v998 = vld [vmem:[#allocation7 + $0x260] sm:$0xf]
    %v999 = vld [vmem:[#allocation7 + $0x264] sm:$0xff]
    %v1000 = vld [vmem:[#allocation7 + $0x26c] sm:$0xf]
    %v1001 = vld [vmem:[#allocation7 + $0x270] sm:$0xff]
    %v1002 = vld [vmem:[#allocation7 + $0x278] sm:$0xf]
    %v1003 = vld [vmem:[#allocation7 + $0x27c] sm:$0xff]
    %v1004 = vld [vmem:[#allocation7 + $0x284] sm:$0xf]
    %v1005 = vld [vmem:[#allocation7 + $0x288] sm:$0xff]
    %v1006 = vld [vmem:[#allocation7 + $0x290] sm:$0xf]
    %v1007 = vld [vmem:[#allocation7 + $0x294] sm:$0xff]
    %v1008 = vld [vmem:[#allocation7 + $0x29c] sm:$0xf]
    %v1009 = vld [vmem:[#allocation7 + $0x2a0] sm:$0xff]
    %v1010 = vld [vmem:[#allocation7 + $0x2a8] sm:$0xf]
    %v1011 = vld [vmem:[#allocation7 + $0x2ac] sm:$0xff]
    %v1012 = vld [vmem:[#allocation7 + $0x2b4] sm:$0xf]
    %v1013 = vld [vmem:[#allocation7 + $0x2b8] sm:$0xff]
    %v1014 = vld [vmem:[#allocation7 + $0x2c0] sm:$0xf]
    %v1015 = vld [vmem:[#allocation7 + $0x2c4] sm:$0xff]
    %v1016 = vld [vmem:[#allocation7 + $0x2cc] sm:$0xf]
    %v1017 = vld [vmem:[#allocation7 + $0x2d0] sm:$0xff]
    %v1018 = vld [vmem:[#allocation7 + $0x2d8] sm:$0xf]
    %v1019 = vld [vmem:[#allocation7 + $0x2dc] sm:$0xff]
    %v1020 = vld [vmem:[#allocation7 + $0x2e4] sm:$0xf]
    %v1021 = vld [vmem:[#allocation7 + $0x2e8] sm:$0xff]
    %v1022 = vld [vmem:[#allocation7 + $0x2f0] sm:$0xf]
    %v1023 = vld [vmem:[#allocation7 + $0x2f4] sm:$0xff]
    %v1024 = vld [vmem:[#allocation7 + $0x2fc] sm:$0xf]
    %v1025 = vld [vmem:[#allocation7 + $0x300] sm:$0xff]
    %v1026 = vld [vmem:[#allocation7 + $0x308] sm:$0xf]
    %v1027 = vld [vmem:[#allocation7 + $0x30c] sm:$0xff]
    %v1028 = vld [vmem:[#allocation7 + $0x314] sm:$0xf]
    %v1029 = vld [vmem:[#allocation7 + $0x318] sm:$0xff]
    %v1030 = vld [vmem:[#allocation7 + $0x320] sm:$0xf]
    %v1031 = vld [vmem:[#allocation7 + $0x324] sm:$0xff]
    %v1032 = vld [vmem:[#allocation7 + $0x32c] sm:$0xf]
    %v1033 = vld [vmem:[#allocation7 + $0x330] sm:$0xff]
    %v1034 = vld [vmem:[#allocation7 + $0x338] sm:$0xf]
    %v1035 = vld [vmem:[#allocation7 + $0x33c] sm:$0xff]
    %v1036 = vld [vmem:[#allocation7 + $0x344] sm:$0xf]
    %v1037 = vld [vmem:[#allocation7 + $0x348] sm:$0xff]
    %v1038 = vld [vmem:[#allocation7 + $0x350] sm:$0xf]
    %v1039 = vld [vmem:[#allocation7 + $0x354] sm:$0xff]
    %v1040 = vld [vmem:[#allocation7 + $0x35c] sm:$0xf]
    %v1041 = vld [vmem:[#allocation7 + $0x360] sm:$0xff]
    %v1042 = vld [vmem:[#allocation7 + $0x368] sm:$0xf]
    %v1043 = vld [vmem:[#allocation7 + $0x36c] sm:$0xff]
    %v1044 = vld [vmem:[#allocation7 + $0x374] sm:$0xf]
    %v1045 = vld [vmem:[#allocation7 + $0x378] sm:$0xff]
    %v1046 = vld [vmem:[#allocation7 + $0x380] sm:$0xf]
    %v1047 = vld [vmem:[#allocation7 + $0x384] sm:$0xff]
    %v1048 = vld [vmem:[#allocation7 + $0x38c] sm:$0xf]
    %v1049 = vld [vmem:[#allocation7 + $0x390] sm:$0xff]
    %v1050 = vld [vmem:[#allocation7 + $0x398] sm:$0xf]
    %v1051 = vld [vmem:[#allocation7 + $0x39c] sm:$0xff]
    %v1052 = vld [vmem:[#allocation7 + $0x3a4] sm:$0xf]
    %v1053 = vld [vmem:[#allocation7 + $0x3a8] sm:$0xff]
    %v1054 = vld [vmem:[#allocation7 + $0x3b0] sm:$0xf]
    %v1055 = vld [vmem:[#allocation7 + $0x3b4] sm:$0xff]
    %v1056 = vld [vmem:[#allocation7 + $0x3bc] sm:$0xf]
    %v1057 = vld [vmem:[#allocation7 + $0x3c0] sm:$0xff]
    %v1058 = vld [vmem:[#allocation7 + $0x3c8] sm:$0xf]
    %v1059 = vld [vmem:[#allocation7 + $0x3cc] sm:$0xff]
    %v1060 = vld [vmem:[#allocation7 + $0x3d4] sm:$0xf]
    %v1061 = vld [vmem:[#allocation7 + $0x3d8] sm:$0xff]
    %v1062 = vld [vmem:[#allocation7 + $0x3e0] sm:$0xf]
    %v1063 = vld [vmem:[#allocation7 + $0x3e4] sm:$0xff]
    %v1064 = vld [vmem:[#allocation7 + $0x3ec] sm:$0xf]
    %v1065 = vld [vmem:[#allocation7 + $0x3f0] sm:$0xff]
    %v1066 = vld [vmem:[#allocation7 + $0x3f8] sm:$0xf]
    %v1067 = vld [vmem:[#allocation7 + $0x3fc] sm:$0xff]
    %v1068 = vld [vmem:[#allocation7 + $0x404] sm:$0xf]
    %v1069 = vld [vmem:[#allocation7 + $0x408] sm:$0xff]
    %v1070 = vld [vmem:[#allocation7 + $0x410] sm:$0xf]
    %v1071 = vld [vmem:[#allocation7 + $0x414] sm:$0xff]
    %v1072 = vld [vmem:[#allocation7 + $0x41c] sm:$0xf]
    %v1073 = vld [vmem:[#allocation7 + $0x420] sm:$0xff]
    %v1074 = vld [vmem:[#allocation7 + $0x428] sm:$0xf]
    %v1075 = vld [vmem:[#allocation7 + $0x42c] sm:$0xff]
    %v1076 = vld [vmem:[#allocation7 + $0x434] sm:$0xf]
    %v1077 = vld [vmem:[#allocation7 + $0x438] sm:$0xff]
    %v1078 = vld [vmem:[#allocation7 + $0x440] sm:$0xf]
    %v1079 = vld [vmem:[#allocation7 + $0x444] sm:$0xff]
    %v1080 = vld [vmem:[#allocation7 + $0x44c] sm:$0xf]
    %v1081 = vld [vmem:[#allocation7 + $0x450] sm:$0xff]
    %v1082 = vld [vmem:[#allocation7 + $0x458] sm:$0xf]
    %v1083 = vld [vmem:[#allocation7 + $0x45c] sm:$0xff]
    %v1084 = vld [vmem:[#allocation7 + $0x464] sm:$0xf]
    %v1085 = vld [vmem:[#allocation7 + $0x468] sm:$0xff]
    %v1086 = vld [vmem:[#allocation7 + $0x470] sm:$0xf]
    %v1087 = vld [vmem:[#allocation7 + $0x474] sm:$0xff]
    %v1088 = vld [vmem:[#allocation7 + $0x47c] sm:$0xf]
    %v1089 = vld [vmem:[#allocation7 + $0x480] sm:$0xff]
    %v1090 = vld [vmem:[#allocation7 + $0x488] sm:$0xf]
    %v1091 = vld [vmem:[#allocation7 + $0x48c] sm:$0xff]
    %v1092 = vld [vmem:[#allocation7 + $0x494] sm:$0xf]
    %v1093 = vld [vmem:[#allocation7 + $0x498] sm:$0xff]
    %v1094 = vld [vmem:[#allocation7 + $0x4a0] sm:$0xf]
    %v1095 = vld [vmem:[#allocation7 + $0x4a4] sm:$0xff]
    %v1096 = vld [vmem:[#allocation7 + $0x4ac] sm:$0xf]
    %v1097 = vld [vmem:[#allocation7 + $0x4b0] sm:$0xff]
    %v1098 = vld [vmem:[#allocation7 + $0x4b8] sm:$0xf]
    %v1099 = vld [vmem:[#allocation7 + $0x4bc] sm:$0xff]
    %v1100 = vld [vmem:[#allocation7 + $0x4c4] sm:$0xf]
    %v1101 = vld [vmem:[#allocation7 + $0x4c8] sm:$0xff]
    %v1102 = vld [vmem:[#allocation7 + $0x4d0] sm:$0xf]
    %v1103 = vld [vmem:[#allocation7 + $0x4d4] sm:$0xff]
    %v1104 = vld [vmem:[#allocation7 + $0x4dc] sm:$0xf]
    %v1105 = vld [vmem:[#allocation7 + $0x4e0] sm:$0xff]
    %v1106 = vld [vmem:[#allocation7 + $0x4e8] sm:$0xf]
    %v1107 = vld [vmem:[#allocation7 + $0x4ec] sm:$0xff]
    %v1108 = vld [vmem:[#allocation7 + $0x4f4] sm:$0xf]
    %v1109 = vld [vmem:[#allocation7 + $0x4f8] sm:$0xff]
    %v1110 = vld [vmem:[#allocation7 + $0x500] sm:$0xf]
    %v1111 = vld [vmem:[#allocation7 + $0x504] sm:$0xff]
    %v1112 = vld [vmem:[#allocation7 + $0x50c] sm:$0xf]
    %v1113 = vld [vmem:[#allocation7 + $0x510] sm:$0xff]
    %v1114 = vld [vmem:[#allocation7 + $0x518] sm:$0xf]
    %v1115 = vld [vmem:[#allocation7 + $0x51c] sm:$0xff]
    %v1116 = vld [vmem:[#allocation7 + $0x524] sm:$0xf]
    %v1117 = vld [vmem:[#allocation7 + $0x528] sm:$0xff]
    %v1118 = vld [vmem:[#allocation7 + $0x530] sm:$0xf]
    %v1119 = vld [vmem:[#allocation7 + $0x534] sm:$0xff]
    %v1120 = vld [vmem:[#allocation7 + $0x53c] sm:$0xf]
    %v1121 = vld [vmem:[#allocation7 + $0x540] sm:$0xff]
    %v1122 = vld [vmem:[#allocation7 + $0x548] sm:$0xf]
    %v1123 = vld [vmem:[#allocation7 + $0x54c] sm:$0xff]
    %v1124 = vld [vmem:[#allocation7 + $0x554] sm:$0xf]
    %v1125 = vld [vmem:[#allocation7 + $0x558] sm:$0xff]
    %v1126 = vld [vmem:[#allocation7 + $0x560] sm:$0xf]
    %v1127 = vld [vmem:[#allocation7 + $0x564] sm:$0xff]
    %v1128 = vld [vmem:[#allocation7 + $0x56c] sm:$0xf]
    %v1129 = vld [vmem:[#allocation7 + $0x570] sm:$0xff]
    %v1130 = vld [vmem:[#allocation7 + $0x578] sm:$0xf]
    %v1131 = vld [vmem:[#allocation7 + $0x57c] sm:$0xff]
    %v1132 = vld [vmem:[#allocation7 + $0x584] sm:$0xf]
    %v1133 = vld [vmem:[#allocation7 + $0x588] sm:$0xff]
    %v1134 = vld [vmem:[#allocation7 + $0x590] sm:$0xf]
    %v1135 = vld [vmem:[#allocation7 + $0x594] sm:$0xff]
    %v1136 = vld [vmem:[#allocation7 + $0x59c] sm:$0xf]
    %v1137 = vld [vmem:[#allocation7 + $0x5a0] sm:$0xff]
    %v1138 = vld [vmem:[#allocation7 + $0x5a8] sm:$0xf]
    %v1139 = vld [vmem:[#allocation7 + $0x5ac] sm:$0xff]
    %v1140 = vld [vmem:[#allocation7 + $0x5b4] sm:$0xf]
    %v1141 = vld [vmem:[#allocation7 + $0x5b8] sm:$0xff]
    %v1142 = vld [vmem:[#allocation7 + $0x5c0] sm:$0xf]
    %v1143 = vld [vmem:[#allocation7 + $0x5c4] sm:$0xff]
    %v1144 = vld [vmem:[#allocation7 + $0x5cc] sm:$0xf]
    %v1145 = vld [vmem:[#allocation7 + $0x5d0] sm:$0xff]
    %v1146 = vld [vmem:[#allocation7 + $0x5d8] sm:$0xf]
    %v1147 = vld [vmem:[#allocation7 + $0x5dc] sm:$0xff]
    %v1148 = vld [vmem:[#allocation7 + $0x5e4] sm:$0xf]
    %v1149 = vld [vmem:[#allocation7 + $0x5e8] sm:$0xff]
    %v1150 = vld [vmem:[#allocation7 + $0x5f0] sm:$0xf]
    %v1151 = vld [vmem:[#allocation7 + $0x5f4] sm:$0xff]
    %v1152 = vld [vmem:[#allocation7 + $0x5fc] sm:$0xf]
    %v1153 = vld [vmem:[#allocation7 + $0x600] sm:$0xff]
    %v1154 = vld [vmem:[#allocation7 + $0x608] sm:$0xf]
    %v1155 = vld [vmem:[#allocation7 + $0x60c] sm:$0xff]
    %v1156 = vld [vmem:[#allocation7 + $0x614] sm:$0xf]
    %v1157 = vld [vmem:[#allocation7 + $0x618] sm:$0xff]
    %v1158 = vld [vmem:[#allocation7 + $0x620] sm:$0xf]
    %v1159 = vld [vmem:[#allocation7 + $0x624] sm:$0xff]
    %v1160 = vld [vmem:[#allocation7 + $0x62c] sm:$0xf]
    %v1161 = vld [vmem:[#allocation7 + $0x630] sm:$0xff]
    %v1162 = vld [vmem:[#allocation7 + $0x638] sm:$0xf]
    %v1163 = vld [vmem:[#allocation7 + $0x63c] sm:$0xff]
    %v1164 = vld [vmem:[#allocation7 + $0x644] sm:$0xf]
    %v1165 = vld [vmem:[#allocation7 + $0x648] sm:$0xff]
    %v1166 = vld [vmem:[#allocation7 + $0x650] sm:$0xf]
    %v1167 = vld [vmem:[#allocation7 + $0x654] sm:$0xff]
    %v1168 = vld [vmem:[#allocation7 + $0x65c] sm:$0xf]
    %v1169 = vld [vmem:[#allocation7 + $0x660] sm:$0xff]
    %v1170 = vld [vmem:[#allocation7 + $0x668] sm:$0xf]
    %v1171 = vld [vmem:[#allocation7 + $0x66c] sm:$0xff]
    %v1172 = vld [vmem:[#allocation7 + $0x674] sm:$0xf]
    %v1173 = vld [vmem:[#allocation7 + $0x678] sm:$0xff]
    %v1174 = vld [vmem:[#allocation7 + $0x680] sm:$0xf]
    %v1175 = vld [vmem:[#allocation7 + $0x684] sm:$0xff]
    %v1176 = vld [vmem:[#allocation7 + $0x68c] sm:$0xf]
    %v1177 = vld [vmem:[#allocation7 + $0x690] sm:$0xff]
    %v1178 = vld [vmem:[#allocation7 + $0x698] sm:$0xf]
    %v1179 = vld [vmem:[#allocation7 + $0x69c] sm:$0xff]
    %v1180 = vld [vmem:[#allocation7 + $0x6a4] sm:$0xf]
    %v1181 = vld [vmem:[#allocation7 + $0x6a8] sm:$0xff]
    %v1182 = vld [vmem:[#allocation7 + $0x6b0] sm:$0xf]
    %v1183 = vld [vmem:[#allocation7 + $0x6b4] sm:$0xff]
    %v1184 = vld [vmem:[#allocation7 + $0x6bc] sm:$0xf]
    %v1185 = vld [vmem:[#allocation7 + $0x6c0] sm:$0xff]
    %v1186 = vld [vmem:[#allocation7 + $0x6c8] sm:$0xf]
    %v1187 = vld [vmem:[#allocation7 + $0x6cc] sm:$0xff]
    %v1188 = vld [vmem:[#allocation7 + $0x6d4] sm:$0xf]
    %v1189 = vld [vmem:[#allocation7 + $0x6d8] sm:$0xff]
    %v1190 = vld [vmem:[#allocation7 + $0x6e0] sm:$0xf]
    %v1191 = vld [vmem:[#allocation7 + $0x6e4] sm:$0xff]
    %v1192 = vld [vmem:[#allocation7 + $0x6ec] sm:$0xf]
    %v1193 = vld [vmem:[#allocation7 + $0x6f0] sm:$0xff]
    %v1194 = vld [vmem:[#allocation7 + $0x6f8] sm:$0xf]
    %v1195 = vld [vmem:[#allocation7 + $0x6fc] sm:$0xff]
    %v1196 = vld [vmem:[#allocation7 + $0x704] sm:$0xf]
    %v1197 = vld [vmem:[#allocation7 + $0x708] sm:$0xff]
    %v1198 = vld [vmem:[#allocation7 + $0x710] sm:$0xf]
    %v1199 = vld [vmem:[#allocation7 + $0x714] sm:$0xff]
    %v1200 = vld [vmem:[#allocation7 + $0x71c] sm:$0xf]
    %v1201 = vld [vmem:[#allocation7 + $0x720] sm:$0xff]
    %v1202 = vld [vmem:[#allocation7 + $0x728] sm:$0xf]
    %v1203 = vld [vmem:[#allocation7 + $0x72c] sm:$0xff]
    %v1204 = vld [vmem:[#allocation7 + $0x734] sm:$0xf]
    %v1205 = vld [vmem:[#allocation7 + $0x738] sm:$0xff]
    %v1206 = vld [vmem:[#allocation7 + $0x740] sm:$0xf]
    %v1207 = vld [vmem:[#allocation7 + $0x744] sm:$0xff]
    %v1208 = vld [vmem:[#allocation7 + $0x74c] sm:$0xf]
    %v1209 = vld [vmem:[#allocation7 + $0x750] sm:$0xff]
    %v1210 = vld [vmem:[#allocation7 + $0x758] sm:$0xf]
    %v1211 = vld [vmem:[#allocation7 + $0x75c] sm:$0xff]
    %v1212 = vld [vmem:[#allocation7 + $0x764] sm:$0xf]
    %v1213 = vld [vmem:[#allocation7 + $0x768] sm:$0xff]
    %v1214 = vld [vmem:[#allocation7 + $0x770] sm:$0xf]
    %v1215 = vld [vmem:[#allocation7 + $0x774] sm:$0xff]
    %v1216 = vld [vmem:[#allocation7 + $0x77c] sm:$0xf]
    %v1217 = vld [vmem:[%s3] sm:$0x7]
    %v1219 = vlaneseq
    %v1220 = vshrl.u32 %v1219, 7
    %v1221 = vsub.s32 0, %v1220
    %v1222 = vrot.slane %v1217, %v1221
    %v1223 = vlaneseq
    %v1224 = vshrl.u32 %v1223, 7
    %v1225 = vsub.s32 1, %v1224
    %v1226 = vrot.slane %v1217, %v1225
    %v1227 = vlaneseq
    %v1228 = vshrl.u32 %v1227, 7
    %v1229 = vsub.s32 2, %v1228
    %v1230 = vrot.slane %v1217, %v1229
    %v1554 = vunpack.c.l.b16 %v897
    %v1555 = vunpack.c.h.b16 %v897
    %v1556 = vunpack.c.l.b16 %v898
    %v1557 = vunpack.c.l.b16 %v899
    %v1558 = vunpack.c.h.b16 %v899
    %v1559 = vunpack.c.l.b16 %v900
    %v1560 = vunpack.c.l.b16 %v901
    %v1561 = vunpack.c.h.b16 %v901
    %v1562 = vunpack.c.l.b16 %v902
    %v1563 = vunpack.c.l.b16 %v903
    %v1564 = vunpack.c.h.b16 %v903
    %v1565 = vunpack.c.l.b16 %v904
    %v1566 = vunpack.c.l.b16 %v905
    %v1567 = vunpack.c.h.b16 %v905
    %v1568 = vunpack.c.l.b16 %v906
    %v1569 = vunpack.c.l.b16 %v907
    %v1570 = vunpack.c.h.b16 %v907
    %v1571 = vunpack.c.l.b16 %v908
    %v1572 = vunpack.c.l.b16 %v909
    %v1573 = vunpack.c.h.b16 %v909
    %v1574 = vunpack.c.l.b16 %v910
    %v1575 = vunpack.c.l.b16 %v911
    %v1576 = vunpack.c.h.b16 %v911
    %v1577 = vunpack.c.l.b16 %v912
    %v1578 = vunpack.c.l.b16 %v913
    %v1579 = vunpack.c.h.b16 %v913
    %v1580 = vunpack.c.l.b16 %v914
    %v1581 = vunpack.c.l.b16 %v915
    %v1582 = vunpack.c.h.b16 %v915
    %v1583 = vunpack.c.l.b16 %v916
    %v1584 = vunpack.c.l.b16 %v917
    %v1585 = vunpack.c.h.b16 %v917
    %v1586 = vunpack.c.l.b16 %v918
    %v1587 = vunpack.c.l.b16 %v919
    %v1588 = vunpack.c.h.b16 %v919
    %v1589 = vunpack.c.l.b16 %v920
    %v1590 = vunpack.c.l.b16 %v921
    %v1591 = vunpack.c.h.b16 %v921
    %v1592 = vunpack.c.l.b16 %v922
    %v1593 = vunpack.c.l.b16 %v923
    %v1594 = vunpack.c.h.b16 %v923
    %v1595 = vunpack.c.l.b16 %v924
    %v1596 = vunpack.c.l.b16 %v925
    %v1597 = vunpack.c.h.b16 %v925
    %v1598 = vunpack.c.l.b16 %v926
    %v1599 = vunpack.c.l.b16 %v927
    %v1600 = vunpack.c.h.b16 %v927
    %v1601 = vunpack.c.l.b16 %v928
    %v1602 = vunpack.c.l.b16 %v929
    %v1603 = vunpack.c.h.b16 %v929
    %v1604 = vunpack.c.l.b16 %v930
    %v1605 = vunpack.c.l.b16 %v931
    %v1606 = vunpack.c.h.b16 %v931
    %v1607 = vunpack.c.l.b16 %v932
    %v1608 = vunpack.c.l.b16 %v933
    %v1609 = vunpack.c.h.b16 %v933
    %v1610 = vunpack.c.l.b16 %v934
    %v1611 = vunpack.c.l.b16 %v935
    %v1612 = vunpack.c.h.b16 %v935
    %v1613 = vunpack.c.l.b16 %v936
    %v1614 = vunpack.c.l.b16 %v937
    %v1615 = vunpack.c.h.b16 %v937
    %v1616 = vunpack.c.l.b16 %v938
    %v1617 = vunpack.c.l.b16 %v939
    %v1618 = vunpack.c.h.b16 %v939
    %v1619 = vunpack.c.l.b16 %v940
    %v1620 = vunpack.c.l.b16 %v941
    %v1621 = vunpack.c.h.b16 %v941
    %v1622 = vunpack.c.l.b16 %v942
    %v1623 = vunpack.c.l.b16 %v943
    %v1624 = vunpack.c.h.b16 %v943
    %v1625 = vunpack.c.l.b16 %v944
    %v1626 = vunpack.c.l.b16 %v945
    %v1627 = vunpack.c.h.b16 %v945
    %v1628 = vunpack.c.l.b16 %v946
    %v1629 = vunpack.c.l.b16 %v947
    %v1630 = vunpack.c.h.b16 %v947
    %v1631 = vunpack.c.l.b16 %v948
    %v1632 = vunpack.c.l.b16 %v949
    %v1633 = vunpack.c.h.b16 %v949
    %v1634 = vunpack.c.l.b16 %v950
    %v1635 = vunpack.c.l.b16 %v951
    %v1636 = vunpack.c.h.b16 %v951
    %v1637 = vunpack.c.l.b16 %v952
    %v1638 = vunpack.c.l.b16 %v953
    %v1639 = vunpack.c.h.b16 %v953
    %v1640 = vunpack.c.l.b16 %v954
    %v1641 = vunpack.c.l.b16 %v955
    %v1642 = vunpack.c.h.b16 %v955
    %v1643 = vunpack.c.l.b16 %v956
    %v1644 = vunpack.c.l.b16 %v957
    %v1645 = vunpack.c.h.b16 %v957
    %v1646 = vunpack.c.l.b16 %v958
    %v1647 = vunpack.c.l.b16 %v959
    %v1648 = vunpack.c.h.b16 %v959
    %v1649 = vunpack.c.l.b16 %v960
    %v1650 = vunpack.c.l.b16 %v961
    %v1651 = vunpack.c.h.b16 %v961
    %v1652 = vunpack.c.l.b16 %v962
    %v1653 = vunpack.c.l.b16 %v963
    %v1654 = vunpack.c.h.b16 %v963
    %v1655 = vunpack.c.l.b16 %v964
    %v1656 = vunpack.c.l.b16 %v965
    %v1657 = vunpack.c.h.b16 %v965
    %v1658 = vunpack.c.l.b16 %v966
    %v1659 = vunpack.c.l.b16 %v967
    %v1660 = vunpack.c.h.b16 %v967
    %v1661 = vunpack.c.l.b16 %v968
    %v1662 = vunpack.c.l.b16 %v969
    %v1663 = vunpack.c.h.b16 %v969
    %v1664 = vunpack.c.l.b16 %v970
    %v1665 = vunpack.c.l.b16 %v971
    %v1666 = vunpack.c.h.b16 %v971
    %v1667 = vunpack.c.l.b16 %v972
    %v1668 = vunpack.c.l.b16 %v973
    %v1669 = vunpack.c.h.b16 %v973
    %v1670 = vunpack.c.l.b16 %v974
    %v1671 = vunpack.c.l.b16 %v975
    %v1672 = vunpack.c.h.b16 %v975
    %v1673 = vunpack.c.l.b16 %v976
    %v1674 = vunpack.c.l.b16 %v977
    %v1675 = vunpack.c.h.b16 %v977
    %v1676 = vunpack.c.l.b16 %v978
    %v1677 = vunpack.c.l.b16 %v979
    %v1678 = vunpack.c.h.b16 %v979
    %v1679 = vunpack.c.l.b16 %v980
    %v1680 = vunpack.c.l.b16 %v981
    %v1681 = vunpack.c.h.b16 %v981
    %v1682 = vunpack.c.l.b16 %v982
    %v1683 = vunpack.c.l.b16 %v983
    %v1684 = vunpack.c.h.b16 %v983
    %v1685 = vunpack.c.l.b16 %v984
    %v1686 = vunpack.c.l.b16 %v985
    %v1687 = vunpack.c.h.b16 %v985
    %v1688 = vunpack.c.l.b16 %v986
    %v1689 = vunpack.c.l.b16 %v987
    %v1690 = vunpack.c.h.b16 %v987
    %v1691 = vunpack.c.l.b16 %v988
    %v1692 = vunpack.c.l.b16 %v989
    %v1693 = vunpack.c.h.b16 %v989
    %v1694 = vunpack.c.l.b16 %v990
    %v1695 = vunpack.c.l.b16 %v991
    %v1696 = vunpack.c.h.b16 %v991
    %v1697 = vunpack.c.l.b16 %v992
    %v1698 = vunpack.c.l.b16 %v993
    %v1699 = vunpack.c.h.b16 %v993
    %v1700 = vunpack.c.l.b16 %v994
    %v1701 = vunpack.c.l.b16 %v995
    %v1702 = vunpack.c.h.b16 %v995
    %v1703 = vunpack.c.l.b16 %v996
    %v1704 = vunpack.c.l.b16 %v997
    %v1705 = vunpack.c.h.b16 %v997
    %v1706 = vunpack.c.l.b16 %v998
    %v1707 = vunpack.c.l.b16 %v999
    %v1708 = vunpack.c.h.b16 %v999
    %v1709 = vunpack.c.l.b16 %v1000
    %v1710 = vunpack.c.l.b16 %v1001
    %v1711 = vunpack.c.h.b16 %v1001
    %v1712 = vunpack.c.l.b16 %v1002
    %v1713 = vunpack.c.l.b16 %v1003
    %v1714 = vunpack.c.h.b16 %v1003
    %v1715 = vunpack.c.l.b16 %v1004
    %v1716 = vunpack.c.l.b16 %v1005
    %v1717 = vunpack.c.h.b16 %v1005
    %v1718 = vunpack.c.l.b16 %v1006
    %v1719 = vunpack.c.l.b16 %v1007
    %v1720 = vunpack.c.h.b16 %v1007
    %v1721 = vunpack.c.l.b16 %v1008
    %v1722 = vunpack.c.l.b16 %v1009
    %v1723 = vunpack.c.h.b16 %v1009
    %v1724 = vunpack.c.l.b16 %v1010
    %v1725 = vunpack.c.l.b16 %v1011
    %v1726 = vunpack.c.h.b16 %v1011
    %v1727 = vunpack.c.l.b16 %v1012
    %v1728 = vunpack.c.l.b16 %v1013
    %v1729 = vunpack.c.h.b16 %v1013
    %v1730 = vunpack.c.l.b16 %v1014
    %v1731 = vunpack.c.l.b16 %v1015
    %v1732 = vunpack.c.h.b16 %v1015
    %v1733 = vunpack.c.l.b16 %v1016
    %v1734 = vunpack.c.l.b16 %v1017
    %v1735 = vunpack.c.h.b16 %v1017
    %v1736 = vunpack.c.l.b16 %v1018
    %v1737 = vunpack.c.l.b16 %v1019
    %v1738 = vunpack.c.h.b16 %v1019
    %v1739 = vunpack.c.l.b16 %v1020
    %v1740 = vunpack.c.l.b16 %v1021
    %v1741 = vunpack.c.h.b16 %v1021
    %v1742 = vunpack.c.l.b16 %v1022
    %v1743 = vunpack.c.l.b16 %v1023
    %v1744 = vunpack.c.h.b16 %v1023
    %v1745 = vunpack.c.l.b16 %v1024
    %v1746 = vunpack.c.l.b16 %v1025
    %v1747 = vunpack.c.h.b16 %v1025
    %v1748 = vunpack.c.l.b16 %v1026
    %v1749 = vunpack.c.l.b16 %v1027
    %v1750 = vunpack.c.h.b16 %v1027
    %v1751 = vunpack.c.l.b16 %v1028
    %v1752 = vunpack.c.l.b16 %v1029
    %v1753 = vunpack.c.h.b16 %v1029
    %v1754 = vunpack.c.l.b16 %v1030
    %v1755 = vunpack.c.l.b16 %v1031
    %v1756 = vunpack.c.h.b16 %v1031
    %v1757 = vunpack.c.l.b16 %v1032
    %v1758 = vunpack.c.l.b16 %v1033
    %v1759 = vunpack.c.h.b16 %v1033
    %v1760 = vunpack.c.l.b16 %v1034
    %v1761 = vunpack.c.l.b16 %v1035
    %v1762 = vunpack.c.h.b16 %v1035
    %v1763 = vunpack.c.l.b16 %v1036
    %v1764 = vunpack.c.l.b16 %v1037
    %v1765 = vunpack.c.h.b16 %v1037
    %v1766 = vunpack.c.l.b16 %v1038
    %v1767 = vunpack.c.l.b16 %v1039
    %v1768 = vunpack.c.h.b16 %v1039
    %v1769 = vunpack.c.l.b16 %v1040
    %v1770 = vunpack.c.l.b16 %v1041
    %v1771 = vunpack.c.h.b16 %v1041
    %v1772 = vunpack.c.l.b16 %v1042
    %v1773 = vunpack.c.l.b16 %v1043
    %v1774 = vunpack.c.h.b16 %v1043
    %v1775 = vunpack.c.l.b16 %v1044
    %v1776 = vunpack.c.l.b16 %v1045
    %v1777 = vunpack.c.h.b16 %v1045
    %v1778 = vunpack.c.l.b16 %v1046
    %v1779 = vunpack.c.l.b16 %v1047
    %v1780 = vunpack.c.h.b16 %v1047
    %v1781 = vunpack.c.l.b16 %v1048
    %v1782 = vunpack.c.l.b16 %v1049
    %v1783 = vunpack.c.h.b16 %v1049
    %v1784 = vunpack.c.l.b16 %v1050
    %v1785 = vunpack.c.l.b16 %v1051
    %v1786 = vunpack.c.h.b16 %v1051
    %v1787 = vunpack.c.l.b16 %v1052
    %v1788 = vunpack.c.l.b16 %v1053
    %v1789 = vunpack.c.h.b16 %v1053
    %v1790 = vunpack.c.l.b16 %v1054
    %v1791 = vunpack.c.l.b16 %v1055
    %v1792 = vunpack.c.h.b16 %v1055
    %v1793 = vunpack.c.l.b16 %v1056
    %v1794 = vunpack.c.l.b16 %v1057
    %v1795 = vunpack.c.h.b16 %v1057
    %v1796 = vunpack.c.l.b16 %v1058
    %v1797 = vunpack.c.l.b16 %v1059
    %v1798 = vunpack.c.h.b16 %v1059
    %v1799 = vunpack.c.l.b16 %v1060
    %v1800 = vunpack.c.l.b16 %v1061
    %v1801 = vunpack.c.h.b16 %v1061
    %v1802 = vunpack.c.l.b16 %v1062
    %v1803 = vunpack.c.l.b16 %v1063
    %v1804 = vunpack.c.h.b16 %v1063
    %v1805 = vunpack.c.l.b16 %v1064
    %v1806 = vunpack.c.l.b16 %v1065
    %v1807 = vunpack.c.h.b16 %v1065
    %v1808 = vunpack.c.l.b16 %v1066
    %v1809 = vunpack.c.l.b16 %v1067
    %v1810 = vunpack.c.h.b16 %v1067
    %v1811 = vunpack.c.l.b16 %v1068
    %v1812 = vunpack.c.l.b16 %v1069
    %v1813 = vunpack.c.h.b16 %v1069
    %v1814 = vunpack.c.l.b16 %v1070
    %v1815 = vunpack.c.l.b16 %v1071
    %v1816 = vunpack.c.h.b16 %v1071
    %v1817 = vunpack.c.l.b16 %v1072
    %v1818 = vunpack.c.l.b16 %v1073
    %v1819 = vunpack.c.h.b16 %v1073
    %v1820 = vunpack.c.l.b16 %v1074
    %v1821 = vunpack.c.l.b16 %v1075
    %v1822 = vunpack.c.h.b16 %v1075
    %v1823 = vunpack.c.l.b16 %v1076
    %v1824 = vunpack.c.l.b16 %v1077
    %v1825 = vunpack.c.h.b16 %v1077
    %v1826 = vunpack.c.l.b16 %v1078
    %v1827 = vunpack.c.l.b16 %v1079
    %v1828 = vunpack.c.h.b16 %v1079
    %v1829 = vunpack.c.l.b16 %v1080
    %v1830 = vunpack.c.l.b16 %v1081
    %v1831 = vunpack.c.h.b16 %v1081
    %v1832 = vunpack.c.l.b16 %v1082
    %v1833 = vunpack.c.l.b16 %v1083
    %v1834 = vunpack.c.h.b16 %v1083
    %v1835 = vunpack.c.l.b16 %v1084
    %v1836 = vunpack.c.l.b16 %v1085
    %v1837 = vunpack.c.h.b16 %v1085
    %v1838 = vunpack.c.l.b16 %v1086
    %v1839 = vunpack.c.l.b16 %v1087
    %v1840 = vunpack.c.h.b16 %v1087
    %v1841 = vunpack.c.l.b16 %v1088
    %v1842 = vunpack.c.l.b16 %v1089
    %v1843 = vunpack.c.h.b16 %v1089
    %v1844 = vunpack.c.l.b16 %v1090
    %v1845 = vunpack.c.l.b16 %v1091
    %v1846 = vunpack.c.h.b16 %v1091
    %v1847 = vunpack.c.l.b16 %v1092
    %v1848 = vunpack.c.l.b16 %v1093
    %v1849 = vunpack.c.h.b16 %v1093
    %v1850 = vunpack.c.l.b16 %v1094
    %v1851 = vunpack.c.l.b16 %v1095
    %v1852 = vunpack.c.h.b16 %v1095
    %v1853 = vunpack.c.l.b16 %v1096
    %v1854 = vunpack.c.l.b16 %v1097
    %v1855 = vunpack.c.h.b16 %v1097
    %v1856 = vunpack.c.l.b16 %v1098
    %v1857 = vunpack.c.l.b16 %v1099
    %v1858 = vunpack.c.h.b16 %v1099
    %v1859 = vunpack.c.l.b16 %v1100
    %v1860 = vunpack.c.l.b16 %v1101
    %v1861 = vunpack.c.h.b16 %v1101
    %v1862 = vunpack.c.l.b16 %v1102
    %v1863 = vunpack.c.l.b16 %v1103
    %v1864 = vunpack.c.h.b16 %v1103
    %v1865 = vunpack.c.l.b16 %v1104
    %v1866 = vunpack.c.l.b16 %v1105
    %v1867 = vunpack.c.h.b16 %v1105
    %v1868 = vunpack.c.l.b16 %v1106
    %v1869 = vunpack.c.l.b16 %v1107
    %v1870 = vunpack.c.h.b16 %v1107
    %v1871 = vunpack.c.l.b16 %v1108
    %v1872 = vunpack.c.l.b16 %v1109
    %v1873 = vunpack.c.h.b16 %v1109
    %v1874 = vunpack.c.l.b16 %v1110
    %v1875 = vunpack.c.l.b16 %v1111
    %v1876 = vunpack.c.h.b16 %v1111
    %v1877 = vunpack.c.l.b16 %v1112
    %v1878 = vunpack.c.l.b16 %v1113
    %v1879 = vunpack.c.h.b16 %v1113
    %v1880 = vunpack.c.l.b16 %v1114
    %v1881 = vunpack.c.l.b16 %v1115
    %v1882 = vunpack.c.h.b16 %v1115
    %v1883 = vunpack.c.l.b16 %v1116
    %v1884 = vunpack.c.l.b16 %v1117
    %v1885 = vunpack.c.h.b16 %v1117
    %v1886 = vunpack.c.l.b16 %v1118
    %v1887 = vunpack.c.l.b16 %v1119
    %v1888 = vunpack.c.h.b16 %v1119
    %v1889 = vunpack.c.l.b16 %v1120
    %v1890 = vunpack.c.l.b16 %v1121
    %v1891 = vunpack.c.h.b16 %v1121
    %v1892 = vunpack.c.l.b16 %v1122
    %v1893 = vunpack.c.l.b16 %v1123
    %v1894 = vunpack.c.h.b16 %v1123
    %v1895 = vunpack.c.l.b16 %v1124
    %v1896 = vunpack.c.l.b16 %v1125
    %v1897 = vunpack.c.h.b16 %v1125
    %v1898 = vunpack.c.l.b16 %v1126
    %v1899 = vunpack.c.l.b16 %v1127
    %v1900 = vunpack.c.h.b16 %v1127
    %v1901 = vunpack.c.l.b16 %v1128
    %v1902 = vunpack.c.l.b16 %v1129
    %v1903 = vunpack.c.h.b16 %v1129
    %v1904 = vunpack.c.l.b16 %v1130
    %v1905 = vunpack.c.l.b16 %v1131
    %v1906 = vunpack.c.h.b16 %v1131
    %v1907 = vunpack.c.l.b16 %v1132
    %v1908 = vunpack.c.l.b16 %v1133
    %v1909 = vunpack.c.h.b16 %v1133
    %v1910 = vunpack.c.l.b16 %v1134
    %v1911 = vunpack.c.l.b16 %v1135
    %v1912 = vunpack.c.h.b16 %v1135
    %v1913 = vunpack.c.l.b16 %v1136
    %v1914 = vunpack.c.l.b16 %v1137
    %v1915 = vunpack.c.h.b16 %v1137
    %v1916 = vunpack.c.l.b16 %v1138
    %v1917 = vunpack.c.l.b16 %v1139
    %v1918 = vunpack.c.h.b16 %v1139
    %v1919 = vunpack.c.l.b16 %v1140
    %v1920 = vunpack.c.l.b16 %v1141
    %v1921 = vunpack.c.h.b16 %v1141
    %v1922 = vunpack.c.l.b16 %v1142
    %v1923 = vunpack.c.l.b16 %v1143
    %v1924 = vunpack.c.h.b16 %v1143
    %v1925 = vunpack.c.l.b16 %v1144
    %v1926 = vunpack.c.l.b16 %v1145
    %v1927 = vunpack.c.h.b16 %v1145
    %v1928 = vunpack.c.l.b16 %v1146
    %v1929 = vunpack.c.l.b16 %v1147
    %v1930 = vunpack.c.h.b16 %v1147
    %v1931 = vunpack.c.l.b16 %v1148
    %v1932 = vunpack.c.l.b16 %v1149
    %v1933 = vunpack.c.h.b16 %v1149
    %v1934 = vunpack.c.l.b16 %v1150
    %v1935 = vunpack.c.l.b16 %v1151
    %v1936 = vunpack.c.h.b16 %v1151
    %v1937 = vunpack.c.l.b16 %v1152
    %v1938 = vunpack.c.l.b16 %v1153
    %v1939 = vunpack.c.h.b16 %v1153
    %v1940 = vunpack.c.l.b16 %v1154
    %v1941 = vunpack.c.l.b16 %v1155
    %v1942 = vunpack.c.h.b16 %v1155
    %v1943 = vunpack.c.l.b16 %v1156
    %v1944 = vunpack.c.l.b16 %v1157
    %v1945 = vunpack.c.h.b16 %v1157
    %v1946 = vunpack.c.l.b16 %v1158
    %v1947 = vunpack.c.l.b16 %v1159
    %v1948 = vunpack.c.h.b16 %v1159
    %v1949 = vunpack.c.l.b16 %v1160
    %v1950 = vunpack.c.l.b16 %v1161
    %v1951 = vunpack.c.h.b16 %v1161
    %v1952 = vunpack.c.l.b16 %v1162
    %v1953 = vunpack.c.l.b16 %v1163
    %v1954 = vunpack.c.h.b16 %v1163
    %v1955 = vunpack.c.l.b16 %v1164
    %v1956 = vunpack.c.l.b16 %v1165
    %v1957 = vunpack.c.h.b16 %v1165
    %v1958 = vunpack.c.l.b16 %v1166
    %v1959 = vunpack.c.l.b16 %v1167
    %v1960 = vunpack.c.h.b16 %v1167
    %v1961 = vunpack.c.l.b16 %v1168
    %v1962 = vunpack.c.l.b16 %v1169
    %v1963 = vunpack.c.h.b16 %v1169
    %v1964 = vunpack.c.l.b16 %v1170
    %v1965 = vunpack.c.l.b16 %v1171
    %v1966 = vunpack.c.h.b16 %v1171
    %v1967 = vunpack.c.l.b16 %v1172
    %v1968 = vunpack.c.l.b16 %v1173
    %v1969 = vunpack.c.h.b16 %v1173
    %v1970 = vunpack.c.l.b16 %v1174
    %v1971 = vunpack.c.l.b16 %v1175
    %v1972 = vunpack.c.h.b16 %v1175
    %v1973 = vunpack.c.l.b16 %v1176
    %v1974 = vunpack.c.l.b16 %v1177
    %v1975 = vunpack.c.h.b16 %v1177
    %v1976 = vunpack.c.l.b16 %v1178
    %v1977 = vunpack.c.l.b16 %v1179
    %v1978 = vunpack.c.h.b16 %v1179
    %v1979 = vunpack.c.l.b16 %v1180
    %v1980 = vunpack.c.l.b16 %v1181
    %v1981 = vunpack.c.h.b16 %v1181
    %v1982 = vunpack.c.l.b16 %v1182
    %v1983 = vunpack.c.l.b16 %v1183
    %v1984 = vunpack.c.h.b16 %v1183
    %v1985 = vunpack.c.l.b16 %v1184
    %v1986 = vunpack.c.l.b16 %v1185
    %v1987 = vunpack.c.h.b16 %v1185
    %v1988 = vunpack.c.l.b16 %v1186
    %v1989 = vunpack.c.l.b16 %v1187
    %v1990 = vunpack.c.h.b16 %v1187
    %v1991 = vunpack.c.l.b16 %v1188
    %v1992 = vunpack.c.l.b16 %v1189
    %v1993 = vunpack.c.h.b16 %v1189
    %v1994 = vunpack.c.l.b16 %v1190
    %v1995 = vunpack.c.l.b16 %v1191
    %v1996 = vunpack.c.h.b16 %v1191
    %v1997 = vunpack.c.l.b16 %v1192
    %v1998 = vunpack.c.l.b16 %v1193
    %v1999 = vunpack.c.h.b16 %v1193
    %v2000 = vunpack.c.l.b16 %v1194
    %v2001 = vunpack.c.l.b16 %v1195
    %v2002 = vunpack.c.h.b16 %v1195
    %v2003 = vunpack.c.l.b16 %v1196
    %v2004 = vunpack.c.l.b16 %v1197
    %v2005 = vunpack.c.h.b16 %v1197
    %v2006 = vunpack.c.l.b16 %v1198
    %v2007 = vunpack.c.l.b16 %v1199
    %v2008 = vunpack.c.h.b16 %v1199
    %v2009 = vunpack.c.l.b16 %v1200
    %v2010 = vunpack.c.l.b16 %v1201
    %v2011 = vunpack.c.h.b16 %v1201
    %v2012 = vunpack.c.l.b16 %v1202
    %v2013 = vunpack.c.l.b16 %v1203
    %v2014 = vunpack.c.h.b16 %v1203
    %v2015 = vunpack.c.l.b16 %v1204
    %v2016 = vunpack.c.l.b16 %v1205
    %v2017 = vunpack.c.h.b16 %v1205
    %v2018 = vunpack.c.l.b16 %v1206
    %v2019 = vunpack.c.l.b16 %v1207
    %v2020 = vunpack.c.h.b16 %v1207
    %v2021 = vunpack.c.l.b16 %v1208
    %v2022 = vunpack.c.l.b16 %v1209
    %v2023 = vunpack.c.h.b16 %v1209
    %v2024 = vunpack.c.l.b16 %v1210
    %v2025 = vunpack.c.l.b16 %v1211
    %v2026 = vunpack.c.h.b16 %v1211
    %v2027 = vunpack.c.l.b16 %v1212
    %v2028 = vunpack.c.l.b16 %v1213
    %v2029 = vunpack.c.h.b16 %v1213
    %v2030 = vunpack.c.l.b16 %v1214
    %v2031 = vunpack.c.l.b16 %v1215
    %v2032 = vunpack.c.h.b16 %v1215
    %v2033 = vunpack.c.l.b16 %v1216
    %v2034 = vpack.c.b16 %v1557, %v1554
    %v2035 = vpack.c.b16 %v1558, %v1555
    %v2036 = vpack.c.b16 %v1559, %v1556
    %v2037 = vpack.c.b16 %v1563, %v1560
    %v2038 = vpack.c.b16 %v1564, %v1561
    %v2039 = vpack.c.b16 %v1565, %v1562
    %v2040 = vpack.c.b16 %v1569, %v1566
    %v2041 = vpack.c.b16 %v1570, %v1567
    %v2042 = vpack.c.b16 %v1571, %v1568
    %v2043 = vpack.c.b16 %v1575, %v1572
    %v2044 = vpack.c.b16 %v1576, %v1573
    %v2045 = vpack.c.b16 %v1577, %v1574
    %v2046 = vpack.c.b16 %v1581, %v1578
    %v2047 = vpack.c.b16 %v1582, %v1579
    %v2048 = vpack.c.b16 %v1583, %v1580
    %v2049 = vpack.c.b16 %v1587, %v1584
    %v2050 = vpack.c.b16 %v1588, %v1585
    %v2051 = vpack.c.b16 %v1589, %v1586
    %v2052 = vpack.c.b16 %v1593, %v1590
    %v2053 = vpack.c.b16 %v1594, %v1591
    %v2054 = vpack.c.b16 %v1595, %v1592
    %v2055 = vpack.c.b16 %v1599, %v1596
    %v2056 = vpack.c.b16 %v1600, %v1597
    %v2057 = vpack.c.b16 %v1601, %v1598
    %v2058 = vpack.c.b16 %v1605, %v1602
    %v2059 = vpack.c.b16 %v1606, %v1603
    %v2060 = vpack.c.b16 %v1607, %v1604
    %v2061 = vpack.c.b16 %v1611, %v1608
    %v2062 = vpack.c.b16 %v1612, %v1609
    %v2063 = vpack.c.b16 %v1613, %v1610
    %v2064 = vpack.c.b16 %v1617, %v1614
    %v2065 = vpack.c.b16 %v1618, %v1615
    %v2066 = vpack.c.b16 %v1619, %v1616
    %v2067 = vpack.c.b16 %v1623, %v1620
    %v2068 = vpack.c.b16 %v1624, %v1621
    %v2069 = vpack.c.b16 %v1625, %v1622
    %v2070 = vpack.c.b16 %v1629, %v1626
    %v2071 = vpack.c.b16 %v1630, %v1627
    %v2072 = vpack.c.b16 %v1631, %v1628
    %v2073 = vpack.c.b16 %v1635, %v1632
    %v2074 = vpack.c.b16 %v1636, %v1633
    %v2075 = vpack.c.b16 %v1637, %v1634
    %v2076 = vpack.c.b16 %v1641, %v1638
    %v2077 = vpack.c.b16 %v1642, %v1639
    %v2078 = vpack.c.b16 %v1643, %v1640
    %v2079 = vpack.c.b16 %v1647, %v1644
    %v2080 = vpack.c.b16 %v1648, %v1645
    %v2081 = vpack.c.b16 %v1649, %v1646
    %v2082 = vpack.c.b16 %v1653, %v1650
    %v2083 = vpack.c.b16 %v1654, %v1651
    %v2084 = vpack.c.b16 %v1655, %v1652
    %v2085 = vpack.c.b16 %v1659, %v1656
    %v2086 = vpack.c.b16 %v1660, %v1657
    %v2087 = vpack.c.b16 %v1661, %v1658
    %v2088 = vpack.c.b16 %v1665, %v1662
    %v2089 = vpack.c.b16 %v1666, %v1663
    %v2090 = vpack.c.b16 %v1667, %v1664
    %v2091 = vpack.c.b16 %v1671, %v1668
    %v2092 = vpack.c.b16 %v1672, %v1669
    %v2093 = vpack.c.b16 %v1673, %v1670
    %v2094 = vpack.c.b16 %v1677, %v1674
    %v2095 = vpack.c.b16 %v1678, %v1675
    %v2096 = vpack.c.b16 %v1679, %v1676
    %v2097 = vpack.c.b16 %v1683, %v1680
    %v2098 = vpack.c.b16 %v1684, %v1681
    %v2099 = vpack.c.b16 %v1685, %v1682
    %v2100 = vpack.c.b16 %v1689, %v1686
    %v2101 = vpack.c.b16 %v1690, %v1687
    %v2102 = vpack.c.b16 %v1691, %v1688
    %v2103 = vpack.c.b16 %v1695, %v1692
    %v2104 = vpack.c.b16 %v1696, %v1693
    %v2105 = vpack.c.b16 %v1697, %v1694
    %v2106 = vpack.c.b16 %v1701, %v1698
    %v2107 = vpack.c.b16 %v1702, %v1699
    %v2108 = vpack.c.b16 %v1703, %v1700
    %v2109 = vpack.c.b16 %v1707, %v1704
    %v2110 = vpack.c.b16 %v1708, %v1705
    %v2111 = vpack.c.b16 %v1709, %v1706
    %v2112 = vpack.c.b16 %v1713, %v1710
    %v2113 = vpack.c.b16 %v1714, %v1711
    %v2114 = vpack.c.b16 %v1715, %v1712
    %v2115 = vpack.c.b16 %v1719, %v1716
    %v2116 = vpack.c.b16 %v1720, %v1717
    %v2117 = vpack.c.b16 %v1721, %v1718
    %v2118 = vpack.c.b16 %v1725, %v1722
    %v2119 = vpack.c.b16 %v1726, %v1723
    %v2120 = vpack.c.b16 %v1727, %v1724
    %v2121 = vpack.c.b16 %v1731, %v1728
    %v2122 = vpack.c.b16 %v1732, %v1729
    %v2123 = vpack.c.b16 %v1733, %v1730
    %v2124 = vpack.c.b16 %v1737, %v1734
    %v2125 = vpack.c.b16 %v1738, %v1735
    %v2126 = vpack.c.b16 %v1739, %v1736
    %v2127 = vpack.c.b16 %v1743, %v1740
    %v2128 = vpack.c.b16 %v1744, %v1741
    %v2129 = vpack.c.b16 %v1745, %v1742
    %v2130 = vpack.c.b16 %v1749, %v1746
    %v2131 = vpack.c.b16 %v1750, %v1747
    %v2132 = vpack.c.b16 %v1751, %v1748
    %v2133 = vpack.c.b16 %v1755, %v1752
    %v2134 = vpack.c.b16 %v1756, %v1753
    %v2135 = vpack.c.b16 %v1757, %v1754
    %v2136 = vpack.c.b16 %v1761, %v1758
    %v2137 = vpack.c.b16 %v1762, %v1759
    %v2138 = vpack.c.b16 %v1763, %v1760
    %v2139 = vpack.c.b16 %v1767, %v1764
    %v2140 = vpack.c.b16 %v1768, %v1765
    %v2141 = vpack.c.b16 %v1769, %v1766
    %v2142 = vpack.c.b16 %v1773, %v1770
    %v2143 = vpack.c.b16 %v1774, %v1771
    %v2144 = vpack.c.b16 %v1775, %v1772
    %v2145 = vpack.c.b16 %v1779, %v1776
    %v2146 = vpack.c.b16 %v1780, %v1777
    %v2147 = vpack.c.b16 %v1781, %v1778
    %v2148 = vpack.c.b16 %v1785, %v1782
    %v2149 = vpack.c.b16 %v1786, %v1783
    %v2150 = vpack.c.b16 %v1787, %v1784
    %v2151 = vpack.c.b16 %v1791, %v1788
    %v2152 = vpack.c.b16 %v1792, %v1789
    %v2153 = vpack.c.b16 %v1793, %v1790
    %v2154 = vpack.c.b16 %v1797, %v1794
    %v2155 = vpack.c.b16 %v1798, %v1795
    %v2156 = vpack.c.b16 %v1799, %v1796
    %v2157 = vpack.c.b16 %v1803, %v1800
    %v2158 = vpack.c.b16 %v1804, %v1801
    %v2159 = vpack.c.b16 %v1805, %v1802
    %v2160 = vpack.c.b16 %v1809, %v1806
    %v2161 = vpack.c.b16 %v1810, %v1807
    %v2162 = vpack.c.b16 %v1811, %v1808
    %v2163 = vpack.c.b16 %v1815, %v1812
    %v2164 = vpack.c.b16 %v1816, %v1813
    %v2165 = vpack.c.b16 %v1817, %v1814
    %v2166 = vpack.c.b16 %v1821, %v1818
    %v2167 = vpack.c.b16 %v1822, %v1819
    %v2168 = vpack.c.b16 %v1823, %v1820
    %v2169 = vpack.c.b16 %v1827, %v1824
    %v2170 = vpack.c.b16 %v1828, %v1825
    %v2171 = vpack.c.b16 %v1829, %v1826
    %v2172 = vpack.c.b16 %v1833, %v1830
    %v2173 = vpack.c.b16 %v1834, %v1831
    %v2174 = vpack.c.b16 %v1835, %v1832
    %v2175 = vpack.c.b16 %v1839, %v1836
    %v2176 = vpack.c.b16 %v1840, %v1837
    %v2177 = vpack.c.b16 %v1841, %v1838
    %v2178 = vpack.c.b16 %v1845, %v1842
    %v2179 = vpack.c.b16 %v1846, %v1843
    %v2180 = vpack.c.b16 %v1847, %v1844
    %v2181 = vpack.c.b16 %v1851, %v1848
    %v2182 = vpack.c.b16 %v1852, %v1849
    %v2183 = vpack.c.b16 %v1853, %v1850
    %v2184 = vpack.c.b16 %v1857, %v1854
    %v2185 = vpack.c.b16 %v1858, %v1855
    %v2186 = vpack.c.b16 %v1859, %v1856
    %v2187 = vpack.c.b16 %v1863, %v1860
    %v2188 = vpack.c.b16 %v1864, %v1861
    %v2189 = vpack.c.b16 %v1865, %v1862
    %v2190 = vpack.c.b16 %v1869, %v1866
    %v2191 = vpack.c.b16 %v1870, %v1867
    %v2192 = vpack.c.b16 %v1871, %v1868
    %v2193 = vpack.c.b16 %v1875, %v1872
    %v2194 = vpack.c.b16 %v1876, %v1873
    %v2195 = vpack.c.b16 %v1877, %v1874
    %v2196 = vpack.c.b16 %v1881, %v1878
    %v2197 = vpack.c.b16 %v1882, %v1879
    %v2198 = vpack.c.b16 %v1883, %v1880
    %v2199 = vpack.c.b16 %v1887, %v1884
    %v2200 = vpack.c.b16 %v1888, %v1885
    %v2201 = vpack.c.b16 %v1889, %v1886
    %v2202 = vpack.c.b16 %v1893, %v1890
    %v2203 = vpack.c.b16 %v1894, %v1891
    %v2204 = vpack.c.b16 %v1895, %v1892
    %v2205 = vpack.c.b16 %v1899, %v1896
    %v2206 = vpack.c.b16 %v1900, %v1897
    %v2207 = vpack.c.b16 %v1901, %v1898
    %v2208 = vpack.c.b16 %v1905, %v1902
    %v2209 = vpack.c.b16 %v1906, %v1903
    %v2210 = vpack.c.b16 %v1907, %v1904
    %v2211 = vpack.c.b16 %v1911, %v1908
    %v2212 = vpack.c.b16 %v1912, %v1909
    %v2213 = vpack.c.b16 %v1913, %v1910
    %v2214 = vpack.c.b16 %v1917, %v1914
    %v2215 = vpack.c.b16 %v1918, %v1915
    %v2216 = vpack.c.b16 %v1919, %v1916
    %v2217 = vpack.c.b16 %v1923, %v1920
    %v2218 = vpack.c.b16 %v1924, %v1921
    %v2219 = vpack.c.b16 %v1925, %v1922
    %v2220 = vpack.c.b16 %v1929, %v1926
    %v2221 = vpack.c.b16 %v1930, %v1927
    %v2222 = vpack.c.b16 %v1931, %v1928
    %v2223 = vpack.c.b16 %v1935, %v1932
    %v2224 = vpack.c.b16 %v1936, %v1933
    %v2225 = vpack.c.b16 %v1937, %v1934
    %v2226 = vpack.c.b16 %v1941, %v1938
    %v2227 = vpack.c.b16 %v1942, %v1939
    %v2228 = vpack.c.b16 %v1943, %v1940
    %v2229 = vpack.c.b16 %v1947, %v1944
    %v2230 = vpack.c.b16 %v1948, %v1945
    %v2231 = vpack.c.b16 %v1949, %v1946
    %v2232 = vpack.c.b16 %v1953, %v1950
    %v2233 = vpack.c.b16 %v1954, %v1951
    %v2234 = vpack.c.b16 %v1955, %v1952
    %v2235 = vpack.c.b16 %v1959, %v1956
    %v2236 = vpack.c.b16 %v1960, %v1957
    %v2237 = vpack.c.b16 %v1961, %v1958
    %v2238 = vpack.c.b16 %v1965, %v1962
    %v2239 = vpack.c.b16 %v1966, %v1963
    %v2240 = vpack.c.b16 %v1967, %v1964
    %v2241 = vpack.c.b16 %v1971, %v1968
    %v2242 = vpack.c.b16 %v1972, %v1969
    %v2243 = vpack.c.b16 %v1973, %v1970
    %v2244 = vpack.c.b16 %v1977, %v1974
    %v2245 = vpack.c.b16 %v1978, %v1975
    %v2246 = vpack.c.b16 %v1979, %v1976
    %v2247 = vpack.c.b16 %v1983, %v1980
    %v2248 = vpack.c.b16 %v1984, %v1981
    %v2249 = vpack.c.b16 %v1985, %v1982
    %v2250 = vpack.c.b16 %v1989, %v1986
    %v2251 = vpack.c.b16 %v1990, %v1987
    %v2252 = vpack.c.b16 %v1991, %v1988
    %v2253 = vpack.c.b16 %v1995, %v1992
    %v2254 = vpack.c.b16 %v1996, %v1993
    %v2255 = vpack.c.b16 %v1997, %v1994
    %v2256 = vpack.c.b16 %v2001, %v1998
    %v2257 = vpack.c.b16 %v2002, %v1999
    %v2258 = vpack.c.b16 %v2003, %v2000
    %v2259 = vpack.c.b16 %v2007, %v2004
    %v2260 = vpack.c.b16 %v2008, %v2005
    %v2261 = vpack.c.b16 %v2009, %v2006
    %v2262 = vpack.c.b16 %v2013, %v2010
    %v2263 = vpack.c.b16 %v2014, %v2011
    %v2264 = vpack.c.b16 %v2015, %v2012
    %v2265 = vpack.c.b16 %v2019, %v2016
    %v2266 = vpack.c.b16 %v2020, %v2017
    %v2267 = vpack.c.b16 %v2021, %v2018
    %v2268 = vpack.c.b16 %v2025, %v2022
    %v2269 = vpack.c.b16 %v2026, %v2023
    %v2270 = vpack.c.b16 %v2027, %v2024
    %v2271 = vpack.c.b16 %v2031, %v2028
    %v2272 = vpack.c.b16 %v2032, %v2029
    %v2273 = vpack.c.b16 %v2033, %v2030
    %2514 = vmatprep.subr.bf16.mxu0 %v2056
    %2515 = vmatpush1.bf16.msra.mxu0 %v2055
    %2516 = vmatprep.subr.bf16.mxu0 %v2053
    %2517 = vmatpush1.bf16.msra.mxu0 %v2052
    %2518 = vmatprep.subr.bf16.mxu0 %v2050
    %2519 = vmatpush1.bf16.msra.mxu0 %v2049
    %2520 = vmatprep.subr.bf16.mxu0 %v2047
    %2521 = vmatpush1.bf16.msra.mxu0 %v2046
    %2522 = vmatprep.subr.bf16.mxu0 %v2044
    %2523 = vmatpush1.bf16.msra.mxu0 %v2043
    %2524 = vmatprep.subr.bf16.mxu0 %v2041
    %2525 = vmatpush1.bf16.msra.mxu0 %v2040
    %2526 = vmatprep.subr.bf16.mxu0 %v2038
    %2527 = vmatpush1.bf16.msra.mxu0 %v2037
    %2528 = vmatprep.subr.bf16.mxu0 %v2035
    %2529 = vmatpush1.bf16.msra.mxu0 %v2034
    %2530 = vmatprep.subr.bf16.mxu0 %v2080
    %2531 = vmatpush2.bf16.msra.mxu0 %v2079
    %2532 = vmatprep.subr.bf16.mxu0 %v2077
    %2533 = vmatpush2.bf16.msra.mxu0 %v2076
    %2534 = vmatprep.subr.bf16.mxu0 %v2074
    %2535 = vmatpush2.bf16.msra.mxu0 %v2073
    %2536 = vmatprep.subr.bf16.mxu0 %v2071
    %2537 = vmatpush2.bf16.msra.mxu0 %v2070
    %2538 = vmatprep.subr.bf16.mxu0 %v2068
    %2539 = vmatpush2.bf16.msra.mxu0 %v2067
    %2540 = vmatprep.subr.bf16.mxu0 %v2065
    %2541 = vmatpush2.bf16.msra.mxu0 %v2064
    %2542 = vmatprep.subr.bf16.mxu0 %v2062
    %2543 = vmatpush2.bf16.msra.mxu0 %v2061
    %2544 = vmatprep.subr.bf16.mxu0 %v2059
    %2545 = vmatpush2.bf16.msra.mxu0 %v2058
    %2546 = vmatprep.mubr.bf16.mxu0 %v888
    %2547 = vmatmul.mubr.bf16.gmra.mxu0 %v887
    %v2548 = vpop.f32.mrf.mxu0
    %v2549 = vadd.f32 %v1222, %v2548
    %v2550 = vpop.f32.mrf.mxu0
    %v2551 = vadd.f32 %v1226, %v2550
    %v2552 = vpop.f32.mrf.mxu0
    %v2553 = vadd.f32 %v1222, %v2552
    %v2554 = vpop.f32.mrf.mxu0
    %v2555 = vadd.f32 %v1226, %v2554
    %2556 = vdwg.mxu0
    %2557 = vmatprep.subr.bf16.mxu0 %v2104
    %2558 = vmatpush1.bf16.msra.mxu0 %v2103
    %2559 = vmatprep.subr.bf16.mxu0 %v2101
    %2560 = vmatpush1.bf16.msra.mxu0 %v2100
    %2561 = vmatprep.subr.bf16.mxu0 %v2098
    %2562 = vmatpush1.bf16.msra.mxu0 %v2097
    %2563 = vmatprep.subr.bf16.mxu0 %v2095
    %2564 = vmatpush1.bf16.msra.mxu0 %v2094
    %2565 = vmatprep.subr.bf16.mxu0 %v2092
    %2566 = vmatpush1.bf16.msra.mxu0 %v2091
    %2567 = vmatprep.subr.bf16.mxu0 %v2089
    %2568 = vmatpush1.bf16.msra.mxu0 %v2088
    %2569 = vmatprep.subr.bf16.mxu0 %v2086
    %2570 = vmatpush1.bf16.msra.mxu0 %v2085
    %2571 = vmatprep.subr.bf16.mxu0 %v2083
    %2572 = vmatpush1.bf16.msra.mxu0 %v2082
    %2573 = vmatprep.subr.bf16.mxu0 %v2128
    %2574 = vmatpush2.bf16.msra.mxu0 %v2127
    %2575 = vmatprep.subr.bf16.mxu0 %v2125
    %2576 = vmatpush2.bf16.msra.mxu0 %v2124
    %2577 = vmatprep.subr.bf16.mxu0 %v2122
    %2578 = vmatpush2.bf16.msra.mxu0 %v2121
    %2579 = vmatprep.subr.bf16.mxu0 %v2119
    %2580 = vmatpush2.bf16.msra.mxu0 %v2118
    %2581 = vmatprep.subr.bf16.mxu0 %v2116
    %2582 = vmatpush2.bf16.msra.mxu0 %v2115
    %2583 = vmatprep.subr.bf16.mxu0 %v2113
    %2584 = vmatpush2.bf16.msra.mxu0 %v2112
    %2585 = vmatprep.subr.bf16.mxu0 %v2110
    %2586 = vmatpush2.bf16.msra.mxu0 %v2109
    %2587 = vmatprep.subr.bf16.mxu0 %v2107
    %2588 = vmatpush2.bf16.msra.mxu0 %v2106
    %2589 = vmatprep.mubr.bf16.mxu0 %v890
    %2590 = vmatmul.mubr.bf16.gmra.mxu0 %v889
    %v2591 = vpop.f32.mrf.mxu0
    %v2592 = vadd.f32 %v2549, %v2591
    %v2593 = vpop.f32.mrf.mxu0
    %v2594 = vadd.f32 %v2551, %v2593
    %v2595 = vpop.f32.mrf.mxu0
    %v2596 = vadd.f32 %v2553, %v2595
    %v2597 = vpop.f32.mrf.mxu0
    %v2598 = vadd.f32 %v2555, %v2597
    %2599 = vdwg.mxu0
    %2600 = vmatprep.subr.bf16.mxu0 %v2152
    %2601 = vmatpush1.bf16.msra.mxu0 %v2151
    %2602 = vmatprep.subr.bf16.mxu0 %v2149
    %2603 = vmatpush1.bf16.msra.mxu0 %v2148
    %2604 = vmatprep.subr.bf16.mxu0 %v2146
    %2605 = vmatpush1.bf16.msra.mxu0 %v2145
    %2606 = vmatprep.subr.bf16.mxu0 %v2143
    %2607 = vmatpush1.bf16.msra.mxu0 %v2142
    %2608 = vmatprep.subr.bf16.mxu0 %v2140
    %2609 = vmatpush1.bf16.msra.mxu0 %v2139
    %2610 = vmatprep.subr.bf16.mxu0 %v2137
    %2611 = vmatpush1.bf16.msra.mxu0 %v2136
    %2612 = vmatprep.subr.bf16.mxu0 %v2134
    %2613 = vmatpush1.bf16.msra.mxu0 %v2133
    %2614 = vmatprep.subr.bf16.mxu0 %v2131
    %2615 = vmatpush1.bf16.msra.mxu0 %v2130
    %2616 = vmatprep.subr.bf16.mxu0 %v2176
    %2617 = vmatpush2.bf16.msra.mxu0 %v2175
    %2618 = vmatprep.subr.bf16.mxu0 %v2173
    %2619 = vmatpush2.bf16.msra.mxu0 %v2172
    %2620 = vmatprep.subr.bf16.mxu0 %v2170
    %2621 = vmatpush2.bf16.msra.mxu0 %v2169
    %2622 = vmatprep.subr.bf16.mxu0 %v2167
    %2623 = vmatpush2.bf16.msra.mxu0 %v2166
    %2624 = vmatprep.subr.bf16.mxu0 %v2164
    %2625 = vmatpush2.bf16.msra.mxu0 %v2163
    %2626 = vmatprep.subr.bf16.mxu0 %v2161
    %2627 = vmatpush2.bf16.msra.mxu0 %v2160
    %2628 = vmatprep.subr.bf16.mxu0 %v2158
    %2629 = vmatpush2.bf16.msra.mxu0 %v2157
    %2630 = vmatprep.subr.bf16.mxu0 %v2155
    %2631 = vmatpush2.bf16.msra.mxu0 %v2154
    %2632 = vmatprep.mubr.bf16.mxu0 %v892
    %2633 = vmatmul.mubr.bf16.gmra.mxu0 %v891
    %v2634 = vpop.f32.mrf.mxu0
    %v2635 = vadd.f32 %v2592, %v2634
    %v2636 = vpop.f32.mrf.mxu0
    %v2637 = vadd.f32 %v2594, %v2636
    %v2638 = vpop.f32.mrf.mxu0
    %v2639 = vadd.f32 %v2596, %v2638
    %v2640 = vpop.f32.mrf.mxu0
    %v2641 = vadd.f32 %v2598, %v2640
    %2642 = vdwg.mxu0
    %2643 = vmatprep.subr.bf16.mxu0 %v2200
    %2644 = vmatpush1.bf16.msra.mxu0 %v2199
    %2645 = vmatprep.subr.bf16.mxu0 %v2197
    %2646 = vmatpush1.bf16.msra.mxu0 %v2196
    %2647 = vmatprep.subr.bf16.mxu0 %v2194
    %2648 = vmatpush1.bf16.msra.mxu0 %v2193
    %2649 = vmatprep.subr.bf16.mxu0 %v2191
    %2650 = vmatpush1.bf16.msra.mxu0 %v2190
    %2651 = vmatprep.subr.bf16.mxu0 %v2188
    %2652 = vmatpush1.bf16.msra.mxu0 %v2187
    %2653 = vmatprep.subr.bf16.mxu0 %v2185
    %2654 = vmatpush1.bf16.msra.mxu0 %v2184
    %2655 = vmatprep.subr.bf16.mxu0 %v2182
    %2656 = vmatpush1.bf16.msra.mxu0 %v2181
    %2657 = vmatprep.subr.bf16.mxu0 %v2179
    %2658 = vmatpush1.bf16.msra.mxu0 %v2178
    %2659 = vmatprep.subr.bf16.mxu0 %v2224
    %2660 = vmatpush2.bf16.msra.mxu0 %v2223
    %2661 = vmatprep.subr.bf16.mxu0 %v2221
    %2662 = vmatpush2.bf16.msra.mxu0 %v2220
    %2663 = vmatprep.subr.bf16.mxu0 %v2218
    %2664 = vmatpush2.bf16.msra.mxu0 %v2217
    %2665 = vmatprep.subr.bf16.mxu0 %v2215
    %2666 = vmatpush2.bf16.msra.mxu0 %v2214
    %2667 = vmatprep.subr.bf16.mxu0 %v2212
    %2668 = vmatpush2.bf16.msra.mxu0 %v2211
    %2669 = vmatprep.subr.bf16.mxu0 %v2209
    %2670 = vmatpush2.bf16.msra.mxu0 %v2208
    %2671 = vmatprep.subr.bf16.mxu0 %v2206
    %2672 = vmatpush2.bf16.msra.mxu0 %v2205
    %2673 = vmatprep.subr.bf16.mxu0 %v2203
    %2674 = vmatpush2.bf16.msra.mxu0 %v2202
    %2675 = vmatprep.mubr.bf16.mxu0 %v894
    %2676 = vmatmul.mubr.bf16.gmra.mxu0 %v893
    %v2677 = vpop.f32.mrf.mxu0
    %v2678 = vadd.f32 %v2635, %v2677
    %v2679 = vpop.f32.mrf.mxu0
    %v2680 = vadd.f32 %v2637, %v2679
    %v2681 = vpop.f32.mrf.mxu0
    %v2682 = vadd.f32 %v2639, %v2681
    %v2683 = vpop.f32.mrf.mxu0
    %v2684 = vadd.f32 %v2641, %v2683
    %2685 = vdwg.mxu0
    %2686 = vmatprep.subr.bf16.mxu0 %v2248
    %2687 = vmatpush1.bf16.msra.mxu0 %v2247
    %2688 = vmatprep.subr.bf16.mxu0 %v2245
    %2689 = vmatpush1.bf16.msra.mxu0 %v2244
    %2690 = vmatprep.subr.bf16.mxu0 %v2242
    %2691 = vmatpush1.bf16.msra.mxu0 %v2241
    %2692 = vmatprep.subr.bf16.mxu0 %v2239
    %2693 = vmatpush1.bf16.msra.mxu0 %v2238
    %2694 = vmatprep.subr.bf16.mxu0 %v2236
    %2695 = vmatpush1.bf16.msra.mxu0 %v2235
    %2696 = vmatprep.subr.bf16.mxu0 %v2233
    %2697 = vmatpush1.bf16.msra.mxu0 %v2232
    %2698 = vmatprep.subr.bf16.mxu0 %v2230
    %2699 = vmatpush1.bf16.msra.mxu0 %v2229
    %2700 = vmatprep.subr.bf16.mxu0 %v2227
    %2701 = vmatpush1.bf16.msra.mxu0 %v2226
    %2702 = vmatprep.subr.bf16.mxu0 %v2272
    %2703 = vmatpush2.bf16.msra.mxu0 %v2271
    %2704 = vmatprep.subr.bf16.mxu0 %v2269
    %2705 = vmatpush2.bf16.msra.mxu0 %v2268
    %2706 = vmatprep.subr.bf16.mxu0 %v2266
    %2707 = vmatpush2.bf16.msra.mxu0 %v2265
    %2708 = vmatprep.subr.bf16.mxu0 %v2263
    %2709 = vmatpush2.bf16.msra.mxu0 %v2262
    %2710 = vmatprep.subr.bf16.mxu0 %v2260
    %2711 = vmatpush2.bf16.msra.mxu0 %v2259
    %2712 = vmatprep.subr.bf16.mxu0 %v2257
    %2713 = vmatpush2.bf16.msra.mxu0 %v2256
    %2714 = vmatprep.subr.bf16.mxu0 %v2254
    %2715 = vmatpush2.bf16.msra.mxu0 %v2253
    %2716 = vmatprep.subr.bf16.mxu0 %v2251
    %2717 = vmatpush2.bf16.msra.mxu0 %v2250
    %2718 = vmatprep.mubr.bf16.mxu0 %v896
    %2719 = vmatmul.mubr.bf16.gmra.mxu0 %v895
    %v2720 = vpop.f32.mrf.mxu0
    %v2721 = vadd.f32 %v2678, %v2720
    %v2722 = vpop.f32.mrf.mxu0
    %v2723 = vadd.f32 %v2680, %v2722
    %v2724 = vpop.f32.mrf.mxu0
    %v2725 = vadd.f32 %v2682, %v2724
    %v2726 = vpop.f32.mrf.mxu0
    %v2727 = vadd.f32 %v2684, %v2726
    %2728 = vdwg.mxu0
    %2729 = vmatprep.subr.bf16.mxu0 0
    %2730 = vmatpush1.bf16.msra.mxu0 %v2057
    %2731 = vmatprep.subr.bf16.mxu0 0
    %2732 = vmatpush1.bf16.msra.mxu0 %v2054
    %2733 = vmatprep.subr.bf16.mxu0 0
    %2734 = vmatpush1.bf16.msra.mxu0 %v2051
    %2735 = vmatprep.subr.bf16.mxu0 0
    %2736 = vmatpush1.bf16.msra.mxu0 %v2048
    %2737 = vmatprep.subr.bf16.mxu0 0
    %2738 = vmatpush1.bf16.msra.mxu0 %v2045
    %2739 = vmatprep.subr.bf16.mxu0 0
    %2740 = vmatpush1.bf16.msra.mxu0 %v2042
    %2741 = vmatprep.subr.bf16.mxu0 0
    %2742 = vmatpush1.bf16.msra.mxu0 %v2039
    %2743 = vmatprep.subr.bf16.mxu0 0
    %2744 = vmatpush1.bf16.msra.mxu0 %v2036
    %2745 = vmatprep.subr.bf16.mxu0 0
    %2746 = vmatpush2.bf16.msra.mxu0 %v2081
    %2747 = vmatprep.subr.bf16.mxu0 0
    %2748 = vmatpush2.bf16.msra.mxu0 %v2078
    %2749 = vmatprep.subr.bf16.mxu0 0
    %2750 = vmatpush2.bf16.msra.mxu0 %v2075
    %2751 = vmatprep.subr.bf16.mxu0 0
    %2752 = vmatpush2.bf16.msra.mxu0 %v2072
    %2753 = vmatprep.subr.bf16.mxu0 0
    %2754 = vmatpush2.bf16.msra.mxu0 %v2069
    %2755 = vmatprep.subr.bf16.mxu0 0
    %2756 = vmatpush2.bf16.msra.mxu0 %v2066
    %2757 = vmatprep.subr.bf16.mxu0 0
    %2758 = vmatpush2.bf16.msra.mxu0 %v2063
    %2759 = vmatprep.subr.bf16.mxu0 0
    %2760 = vmatpush2.bf16.msra.mxu0 %v2060
    %2761 = vmatprep.mubr.bf16.mxu0 %v888
    %2762 = vmatmul.mubr.bf16.gmra.mxu0 %v887
    %v2763 = vpop.f32.mrf.mxu0
    %v2764 = vadd.f32 %v1230, %v2763
    %v2765 = vpop.f32.mrf.mxu0
    %v2766 = vpop.f32.mrf.mxu0
    %v2767 = vadd.f32 %v1230, %v2766
    %v2768 = vpop.f32.mrf.mxu0
    %2769 = vdwg.mxu0
    %2770 = vmatprep.subr.bf16.mxu0 0
    %2771 = vmatpush1.bf16.msra.mxu0 %v2105
    %2772 = vmatprep.subr.bf16.mxu0 0
    %2773 = vmatpush1.bf16.msra.mxu0 %v2102
    %2774 = vmatprep.subr.bf16.mxu0 0
    %2775 = vmatpush1.bf16.msra.mxu0 %v2099
    %2776 = vmatprep.subr.bf16.mxu0 0
    %2777 = vmatpush1.bf16.msra.mxu0 %v2096
    %2778 = vmatprep.subr.bf16.mxu0 0
    %2779 = vmatpush1.bf16.msra.mxu0 %v2093
    %2780 = vmatprep.subr.bf16.mxu0 0
    %2781 = vmatpush1.bf16.msra.mxu0 %v2090
    %2782 = vmatprep.subr.bf16.mxu0 0
    %2783 = vmatpush1.bf16.msra.mxu0 %v2087
    %2784 = vmatprep.subr.bf16.mxu0 0
    %2785 = vmatpush1.bf16.msra.mxu0 %v2084
    %2786 = vmatprep.subr.bf16.mxu0 0
    %2787 = vmatpush2.bf16.msra.mxu0 %v2129
    %2788 = vmatprep.subr.bf16.mxu0 0
    %2789 = vmatpush2.bf16.msra.mxu0 %v2126
    %2790 = vmatprep.subr.bf16.mxu0 0
    %2791 = vmatpush2.bf16.msra.mxu0 %v2123
    %2792 = vmatprep.subr.bf16.mxu0 0
    %2793 = vmatpush2.bf16.msra.mxu0 %v2120
    %2794 = vmatprep.subr.bf16.mxu0 0
    %2795 = vmatpush2.bf16.msra.mxu0 %v2117
    %2796 = vmatprep.subr.bf16.mxu0 0
    %2797 = vmatpush2.bf16.msra.mxu0 %v2114
    %2798 = vmatprep.subr.bf16.mxu0 0
    %2799 = vmatpush2.bf16.msra.mxu0 %v2111
    %2800 = vmatprep.subr.bf16.mxu0 0
    %2801 = vmatpush2.bf16.msra.mxu0 %v2108
    %2802 = vmatprep.mubr.bf16.mxu0 %v890
    %2803 = vmatmul.mubr.bf16.gmra.mxu0 %v889
    %v2804 = vpop.f32.mrf.mxu0
    %v2805 = vadd.f32 %v2764, %v2804
    %v2806 = vpop.f32.mrf.mxu0
    %v2807 = vpop.f32.mrf.mxu0
    %v2808 = vadd.f32 %v2767, %v2807
    %v2809 = vpop.f32.mrf.mxu0
    %2810 = vdwg.mxu0
    %2811 = vmatprep.subr.bf16.mxu0 0
    %2812 = vmatpush1.bf16.msra.mxu0 %v2153
    %2813 = vmatprep.subr.bf16.mxu0 0
    %2814 = vmatpush1.bf16.msra.mxu0 %v2150
    %2815 = vmatprep.subr.bf16.mxu0 0
    %2816 = vmatpush1.bf16.msra.mxu0 %v2147
    %2817 = vmatprep.subr.bf16.mxu0 0
    %2818 = vmatpush1.bf16.msra.mxu0 %v2144
    %2819 = vmatprep.subr.bf16.mxu0 0
    %2820 = vmatpush1.bf16.msra.mxu0 %v2141
    %2821 = vmatprep.subr.bf16.mxu0 0
    %2822 = vmatpush1.bf16.msra.mxu0 %v2138
    %2823 = vmatprep.subr.bf16.mxu0 0
    %2824 = vmatpush1.bf16.msra.mxu0 %v2135
    %2825 = vmatprep.subr.bf16.mxu0 0
    %2826 = vmatpush1.bf16.msra.mxu0 %v2132
    %2827 = vmatprep.subr.bf16.mxu0 0
    %2828 = vmatpush2.bf16.msra.mxu0 %v2177
    %2829 = vmatprep.subr.bf16.mxu0 0
    %2830 = vmatpush2.bf16.msra.mxu0 %v2174
    %2831 = vmatprep.subr.bf16.mxu0 0
    %2832 = vmatpush2.bf16.msra.mxu0 %v2171
    %2833 = vmatprep.subr.bf16.mxu0 0
    %2834 = vmatpush2.bf16.msra.mxu0 %v2168
    %2835 = vmatprep.subr.bf16.mxu0 0
    %2836 = vmatpush2.bf16.msra.mxu0 %v2165
    %2837 = vmatprep.subr.bf16.mxu0 0
    %2838 = vmatpush2.bf16.msra.mxu0 %v2162
    %2839 = vmatprep.subr.bf16.mxu0 0
    %2840 = vmatpush2.bf16.msra.mxu0 %v2159
    %2841 = vmatprep.subr.bf16.mxu0 0
    %2842 = vmatpush2.bf16.msra.mxu0 %v2156
    %2843 = vmatprep.mubr.bf16.mxu0 %v892
    %2844 = vmatmul.mubr.bf16.gmra.mxu0 %v891
    %v2845 = vpop.f32.mrf.mxu0
    %v2846 = vadd.f32 %v2805, %v2845
    %v2847 = vpop.f32.mrf.mxu0
    %v2848 = vpop.f32.mrf.mxu0
    %v2849 = vadd.f32 %v2808, %v2848
    %v2850 = vpop.f32.mrf.mxu0
    %2851 = vdwg.mxu0
    %2852 = vmatprep.subr.bf16.mxu0 0
    %2853 = vmatpush1.bf16.msra.mxu0 %v2201
    %2854 = vmatprep.subr.bf16.mxu0 0
    %2855 = vmatpush1.bf16.msra.mxu0 %v2198
    %2856 = vmatprep.subr.bf16.mxu0 0
    %2857 = vmatpush1.bf16.msra.mxu0 %v2195
    %2858 = vmatprep.subr.bf16.mxu0 0
    %2859 = vmatpush1.bf16.msra.mxu0 %v2192
    %2860 = vmatprep.subr.bf16.mxu0 0
    %2861 = vmatpush1.bf16.msra.mxu0 %v2189
    %2862 = vmatprep.subr.bf16.mxu0 0
    %2863 = vmatpush1.bf16.msra.mxu0 %v2186
    %2864 = vmatprep.subr.bf16.mxu0 0
    %2865 = vmatpush1.bf16.msra.mxu0 %v2183
    %2866 = vmatprep.subr.bf16.mxu0 0
    %2867 = vmatpush1.bf16.msra.mxu0 %v2180
    %2868 = vmatprep.subr.bf16.mxu0 0
    %2869 = vmatpush2.bf16.msra.mxu0 %v2225
    %2870 = vmatprep.subr.bf16.mxu0 0
    %2871 = vmatpush2.bf16.msra.mxu0 %v2222
    %2872 = vmatprep.subr.bf16.mxu0 0
    %2873 = vmatpush2.bf16.msra.mxu0 %v2219
    %2874 = vmatprep.subr.bf16.mxu0 0
    %2875 = vmatpush2.bf16.msra.mxu0 %v2216
    %2876 = vmatprep.subr.bf16.mxu0 0
    %2877 = vmatpush2.bf16.msra.mxu0 %v2213
    %2878 = vmatprep.subr.bf16.mxu0 0
    %2879 = vmatpush2.bf16.msra.mxu0 %v2210
    %2880 = vmatprep.subr.bf16.mxu0 0
    %2881 = vmatpush2.bf16.msra.mxu0 %v2207
    %2882 = vmatprep.subr.bf16.mxu0 0
    %2883 = vmatpush2.bf16.msra.mxu0 %v2204
    %2884 = vmatprep.mubr.bf16.mxu0 %v894
    %2885 = vmatmul.mubr.bf16.gmra.mxu0 %v893
    %v2886 = vpop.f32.mrf.mxu0
    %v2887 = vadd.f32 %v2846, %v2886
    %v2888 = vpop.f32.mrf.mxu0
    %v2889 = vpop.f32.mrf.mxu0
    %v2890 = vadd.f32 %v2849, %v2889
    %v2891 = vpop.f32.mrf.mxu0
    %2892 = vdwg.mxu0
    %2893 = vmatprep.subr.bf16.mxu0 0
    %2894 = vmatpush1.bf16.msra.mxu0 %v2249
    %2895 = vmatprep.subr.bf16.mxu0 0
    %2896 = vmatpush1.bf16.msra.mxu0 %v2246
    %2897 = vmatprep.subr.bf16.mxu0 0
    %2898 = vmatpush1.bf16.msra.mxu0 %v2243
    %2899 = vmatprep.subr.bf16.mxu0 0
    %2900 = vmatpush1.bf16.msra.mxu0 %v2240
    %2901 = vmatprep.subr.bf16.mxu0 0
    %2902 = vmatpush1.bf16.msra.mxu0 %v2237
    %2903 = vmatprep.subr.bf16.mxu0 0
    %2904 = vmatpush1.bf16.msra.mxu0 %v2234
    %2905 = vmatprep.subr.bf16.mxu0 0
    %2906 = vmatpush1.bf16.msra.mxu0 %v2231
    %2907 = vmatprep.subr.bf16.mxu0 0
    %2908 = vmatpush1.bf16.msra.mxu0 %v2228
    %2909 = vmatprep.subr.bf16.mxu0 0
    %2910 = vmatpush2.bf16.msra.mxu0 %v2273
    %2911 = vmatprep.subr.bf16.mxu0 0
    %2912 = vmatpush2.bf16.msra.mxu0 %v2270
    %2913 = vmatprep.subr.bf16.mxu0 0
    %2914 = vmatpush2.bf16.msra.mxu0 %v2267
    %2915 = vmatprep.subr.bf16.mxu0 0
    %2916 = vmatpush2.bf16.msra.mxu0 %v2264
    %2917 = vmatprep.subr.bf16.mxu0 0
    %2918 = vmatpush2.bf16.msra.mxu0 %v2261
    %2919 = vmatprep.subr.bf16.mxu0 0
    %2920 = vmatpush2.bf16.msra.mxu0 %v2258
    %2921 = vmatprep.subr.bf16.mxu0 0
    %2922 = vmatpush2.bf16.msra.mxu0 %v2255
    %2923 = vmatprep.subr.bf16.mxu0 0
    %2924 = vmatpush2.bf16.msra.mxu0 %v2252
    %2925 = vmatprep.mubr.bf16.mxu0 %v896
    %2926 = vmatmul.mubr.bf16.gmra.mxu0 %v895
    %v2927 = vpop.f32.mrf.mxu0
    %v2928 = vadd.f32 %v2887, %v2927
    %v2929 = vpop.f32.mrf.mxu0
    %v2930 = vpop.f32.mrf.mxu0
    %v2931 = vadd.f32 %v2890, %v2930
    %v2932 = vpop.f32.mrf.mxu0
    %2933 = vdwg.mxu0
    %v2934 = vpack.c.bf16 %v2725, %v2721
    %v2935 = vpack.c.bf16 %v2727, %v2723
    %v2936 = vpack.c.bf16 %v2931, %v2928
    %v2937 = vmax.bf16 %v2934, 0
    %v2938 = vmax.bf16 %v2935, 0
    %v2939 = vmax.bf16 %v2936, 0
    %v2940 = vld [vmem:[#allocation8] sm:$0xf]
    %v2941 = vld [vmem:[#allocation8 + $0x4] sm:$0xf]
    %v2942 = vld [vmem:[#allocation8 + $0x8] sm:$0xf]
    %v2943 = vld [vmem:[#allocation8 + $0xc] sm:$0xf]
    %v2944 = vld [vmem:[#allocation8 + $0x10] sm:$0xf]
    %v2945 = vld [vmem:[#allocation8 + $0x14] sm:$0xf]
    %v2946 = vld [vmem:[#allocation8 + $0x18] sm:$0xf]
    %v2947 = vld [vmem:[#allocation8 + $0x1c] sm:$0xf]
    %v2948 = vld [vmem:[#allocation8 + $0x20] sm:$0xf]
    %v2949 = vld [vmem:[#allocation8 + $0x24] sm:$0xf]
    %v2950 = vld [vmem:[#allocation8 + $0x28] sm:$0xf]
    %v2951 = vld [vmem:[#allocation8 + $0x2c] sm:$0xf]
    %v2952 = vld [vmem:[#allocation8 + $0x30] sm:$0xf]
    %v2953 = vld [vmem:[#allocation8 + $0x34] sm:$0xf]
    %v2954 = vld [vmem:[#allocation8 + $0x38] sm:$0xf]
    %v2955 = vld [vmem:[#allocation8 + $0x3c] sm:$0xf]
    %v2956 = vld [vmem:[#allocation8 + $0x40] sm:$0xf]
    %v2957 = vld [vmem:[#allocation8 + $0x44] sm:$0xf]
    %v2958 = vld [vmem:[#allocation8 + $0x48] sm:$0xf]
    %v2959 = vld [vmem:[#allocation8 + $0x4c] sm:$0xf]
    %v2960 = vld [vmem:[#allocation8 + $0x50] sm:$0xf]
    %v2961 = vld [vmem:[#allocation8 + $0x54] sm:$0xf]
    %v2962 = vld [vmem:[#allocation8 + $0x58] sm:$0xf]
    %v2963 = vld [vmem:[#allocation8 + $0x5c] sm:$0xf]
    %v2964 = vld [vmem:[#allocation8 + $0x60] sm:$0xf]
    %v2965 = vld [vmem:[#allocation8 + $0x64] sm:$0xf]
    %v2966 = vld [vmem:[#allocation8 + $0x68] sm:$0xf]
    %v2967 = vld [vmem:[#allocation8 + $0x6c] sm:$0xf]
    %v2968 = vld [vmem:[#allocation8 + $0x70] sm:$0xf]
    %v2969 = vld [vmem:[#allocation8 + $0x74] sm:$0xf]
    %v2970 = vld [vmem:[#allocation8 + $0x78] sm:$0xf]
    %v2971 = vld [vmem:[#allocation8 + $0x7c] sm:$0xf]
    %v2972 = vld [vmem:[#allocation8 + $0x80] sm:$0xf]
    %v2973 = vld [vmem:[#allocation8 + $0x84] sm:$0xf]
    %v2974 = vld [vmem:[#allocation8 + $0x88] sm:$0xf]
    %v2975 = vld [vmem:[#allocation8 + $0x8c] sm:$0xf]
    %v2976 = vld [vmem:[#allocation8 + $0x90] sm:$0xf]
    %v2977 = vld [vmem:[#allocation8 + $0x94] sm:$0xf]
    %v2978 = vld [vmem:[#allocation8 + $0x98] sm:$0xf]
    %v2979 = vld [vmem:[#allocation8 + $0x9c] sm:$0xf]
    %v2980 = vld [vmem:[#allocation8 + $0xa0] sm:$0xf]
    %v2981 = vld [vmem:[#allocation8 + $0xa4] sm:$0xf]
    %v2982 = vld [vmem:[#allocation8 + $0xa8] sm:$0xf]
    %v2983 = vld [vmem:[#allocation8 + $0xac] sm:$0xf]
    %v2984 = vld [vmem:[#allocation8 + $0xb0] sm:$0xf]
    %v2985 = vld [vmem:[#allocation8 + $0xb4] sm:$0xf]
    %v2986 = vld [vmem:[#allocation8 + $0xb8] sm:$0xf]
    %v2987 = vld [vmem:[#allocation8 + $0xbc] sm:$0xf]
    %v2988 = vld [vmem:[%s5] sm:$0x1]
    %v2990 = vlaneseq
    %v2991 = vshrl.u32 %v2990, 7
    %v2992 = vsub.s32 0, %v2991
    %v2993 = vrot.slane %v2988, %v2992
    %v3043 = vunpack.c.l.b16 %v2940
    %v3044 = vunpack.c.l.b16 %v2941
    %v3045 = vunpack.c.l.b16 %v2942
    %v3046 = vunpack.c.l.b16 %v2943
    %v3047 = vunpack.c.l.b16 %v2944
    %v3048 = vunpack.c.l.b16 %v2945
    %v3049 = vunpack.c.l.b16 %v2946
    %v3050 = vunpack.c.l.b16 %v2947
    %v3051 = vunpack.c.l.b16 %v2948
    %v3052 = vunpack.c.l.b16 %v2949
    %v3053 = vunpack.c.l.b16 %v2950
    %v3054 = vunpack.c.l.b16 %v2951
    %v3055 = vunpack.c.l.b16 %v2952
    %v3056 = vunpack.c.l.b16 %v2953
    %v3057 = vunpack.c.l.b16 %v2954
    %v3058 = vunpack.c.l.b16 %v2955
    %v3059 = vunpack.c.l.b16 %v2956
    %v3060 = vunpack.c.l.b16 %v2957
    %v3061 = vunpack.c.l.b16 %v2958
    %v3062 = vunpack.c.l.b16 %v2959
    %v3063 = vunpack.c.l.b16 %v2960
    %v3064 = vunpack.c.l.b16 %v2961
    %v3065 = vunpack.c.l.b16 %v2962
    %v3066 = vunpack.c.l.b16 %v2963
    %v3067 = vunpack.c.l.b16 %v2964
    %v3068 = vunpack.c.l.b16 %v2965
    %v3069 = vunpack.c.l.b16 %v2966
    %v3070 = vunpack.c.l.b16 %v2967
    %v3071 = vunpack.c.l.b16 %v2968
    %v3072 = vunpack.c.l.b16 %v2969
    %v3073 = vunpack.c.l.b16 %v2970
    %v3074 = vunpack.c.l.b16 %v2971
    %v3075 = vunpack.c.l.b16 %v2972
    %v3076 = vunpack.c.l.b16 %v2973
    %v3077 = vunpack.c.l.b16 %v2974
    %v3078 = vunpack.c.l.b16 %v2975
    %v3079 = vunpack.c.l.b16 %v2976
    %v3080 = vunpack.c.l.b16 %v2977
    %v3081 = vunpack.c.l.b16 %v2978
    %v3082 = vunpack.c.l.b16 %v2979
    %v3083 = vunpack.c.l.b16 %v2980
    %v3084 = vunpack.c.l.b16 %v2981
    %v3085 = vunpack.c.l.b16 %v2982
    %v3086 = vunpack.c.l.b16 %v2983
    %v3087 = vunpack.c.l.b16 %v2984
    %v3088 = vunpack.c.l.b16 %v2985
    %v3089 = vunpack.c.l.b16 %v2986
    %v3090 = vunpack.c.l.b16 %v2987
    %v3091 = vpack.c.b16 %v3044, %v3043
    %v3092 = vpack.c.b16 %v3046, %v3045
    %v3093 = vpack.c.b16 %v3048, %v3047
    %v3094 = vpack.c.b16 %v3050, %v3049
    %v3095 = vpack.c.b16 %v3052, %v3051
    %v3096 = vpack.c.b16 %v3054, %v3053
    %v3097 = vpack.c.b16 %v3056, %v3055
    %v3098 = vpack.c.b16 %v3058, %v3057
    %v3099 = vpack.c.b16 %v3060, %v3059
    %v3100 = vpack.c.b16 %v3062, %v3061
    %v3101 = vpack.c.b16 %v3064, %v3063
    %v3102 = vpack.c.b16 %v3066, %v3065
    %v3103 = vpack.c.b16 %v3068, %v3067
    %v3104 = vpack.c.b16 %v3070, %v3069
    %v3105 = vpack.c.b16 %v3072, %v3071
    %v3106 = vpack.c.b16 %v3074, %v3073
    %v3107 = vpack.c.b16 %v3076, %v3075
    %v3108 = vpack.c.b16 %v3078, %v3077
    %v3109 = vpack.c.b16 %v3080, %v3079
    %v3110 = vpack.c.b16 %v3082, %v3081
    %v3111 = vpack.c.b16 %v3084, %v3083
    %v3112 = vpack.c.b16 %v3086, %v3085
    %v3113 = vpack.c.b16 %v3088, %v3087
    %v3114 = vpack.c.b16 %v3090, %v3089
    %3139 = vmatprep.subr.bf16.mxu0 0
    %3140 = vmatpush1.bf16.msra.mxu0 %v3098
    %3141 = vmatprep.subr.bf16.mxu0 0
    %3142 = vmatpush1.bf16.msra.mxu0 %v3097
    %3143 = vmatprep.subr.bf16.mxu0 0
    %3144 = vmatpush1.bf16.msra.mxu0 %v3096
    %3145 = vmatprep.subr.bf16.mxu0 0
    %3146 = vmatpush1.bf16.msra.mxu0 %v3095
    %3147 = vmatprep.subr.bf16.mxu0 0
    %3148 = vmatpush1.bf16.msra.mxu0 %v3094
    %3149 = vmatprep.subr.bf16.mxu0 0
    %3150 = vmatpush1.bf16.msra.mxu0 %v3093
    %3151 = vmatprep.subr.bf16.mxu0 0
    %3152 = vmatpush1.bf16.msra.mxu0 %v3092
    %3153 = vmatprep.subr.bf16.mxu0 0
    %3154 = vmatpush1.bf16.msra.mxu0 %v3091
    %3155 = vmatprep.subr.bf16.mxu0 0
    %3156 = vmatpush2.bf16.msra.mxu0 %v3106
    %3157 = vmatprep.subr.bf16.mxu0 0
    %3158 = vmatpush2.bf16.msra.mxu0 %v3105
    %3159 = vmatprep.subr.bf16.mxu0 0
    %3160 = vmatpush2.bf16.msra.mxu0 %v3104
    %3161 = vmatprep.subr.bf16.mxu0 0
    %3162 = vmatpush2.bf16.msra.mxu0 %v3103
    %3163 = vmatprep.subr.bf16.mxu0 0
    %3164 = vmatpush2.bf16.msra.mxu0 %v3102
    %3165 = vmatprep.subr.bf16.mxu0 0
    %3166 = vmatpush2.bf16.msra.mxu0 %v3101
    %3167 = vmatprep.subr.bf16.mxu0 0
    %3168 = vmatpush2.bf16.msra.mxu0 %v3100
    %3169 = vmatprep.subr.bf16.mxu0 0
    %3170 = vmatpush2.bf16.msra.mxu0 %v3099
    %3171 = vmatprep.mubr.bf16.mxu0 %v2938
    %3172 = vmatmul.mubr.bf16.gmra.mxu0 %v2937
    %v3173 = vpop.f32.mrf.mxu0
    %v3174 = vadd.f32 %v2993, %v3173
    %v3175 = vpop.f32.mrf.mxu0
    %v3176 = vpop.f32.mrf.mxu0
    %v3177 = vadd.f32 %v2993, %v3176
    %v3178 = vpop.f32.mrf.mxu0
    %3179 = vdwg.mxu0
    %3180 = vmatprep.subr.bf16.mxu0 0
    %3181 = vmatpush1.bf16.msra.mxu0 %v3114
    %3182 = vmatprep.subr.bf16.mxu0 0
    %3183 = vmatpush1.bf16.msra.mxu0 %v3113
    %3184 = vmatprep.subr.bf16.mxu0 0
    %3185 = vmatpush1.bf16.msra.mxu0 %v3112
    %3186 = vmatprep.subr.bf16.mxu0 0
    %3187 = vmatpush1.bf16.msra.mxu0 %v3111
    %3188 = vmatprep.subr.bf16.mxu0 0
    %3189 = vmatpush1.bf16.msra.mxu0 %v3110
    %3190 = vmatprep.subr.bf16.mxu0 0
    %3191 = vmatpush1.bf16.msra.mxu0 %v3109
    %3192 = vmatprep.subr.bf16.mxu0 0
    %3193 = vmatpush1.bf16.msra.mxu0 %v3108
    %3194 = vmatprep.subr.bf16.mxu0 0
    %3195 = vmatpush1.bf16.msra.mxu0 %v3107
    %3196 = vmatprep.subr.bf16.mxu0 0
    %3197 = vmatpush2.bf16.msra.mxu0 0
    %3198 = vmatprep.subr.bf16.mxu0 0
    %3199 = vmatpush2.bf16.msra.mxu0 0
    %3200 = vmatprep.subr.bf16.mxu0 0
    %3201 = vmatpush2.bf16.msra.mxu0 0
    %3202 = vmatprep.subr.bf16.mxu0 0
    %3203 = vmatpush2.bf16.msra.mxu0 0
    %3204 = vmatprep.subr.bf16.mxu0 0
    %3205 = vmatpush2.bf16.msra.mxu0 0
    %3206 = vmatprep.subr.bf16.mxu0 0
    %3207 = vmatpush2.bf16.msra.mxu0 0
    %3208 = vmatprep.subr.bf16.mxu0 0
    %3209 = vmatpush2.bf16.msra.mxu0 0
    %3210 = vmatprep.subr.bf16.mxu0 0
    %3211 = vmatpush2.bf16.msra.mxu0 0
    %3212 = vmatprep.mubr.bf16.mxu0 0
    %3213 = vmatmul.mubr.bf16.gmra.mxu0 %v2939
    %v3214 = vpop.f32.mrf.mxu0
    %v3215 = vadd.f32 %v3174, %v3214
    %v3216 = vpop.f32.mrf.mxu0
    %v3217 = vpop.f32.mrf.mxu0
    %v3218 = vadd.f32 %v3177, %v3217
    %v3219 = vpop.f32.mrf.mxu0
    %3220 = vdwg.mxu0
    %v3221 = vpack.c.bf16 %v3218, %v3215
    %v3222 = vmax.bf16 %v3221, 0
    %v3223 = vld [vmem:[#allocation10] sm:$0xf]
    %v3224 = vld [vmem:[#allocation10 + $0x4] sm:$0xf]
    %v3225 = vld [vmem:[#allocation10 + $0x8] sm:$0xf]
    %v3226 = vld [vmem:[#allocation10 + $0xc] sm:$0xf]
    %v3227 = vld [vmem:[#allocation10 + $0x10] sm:$0xf]
    %v3228 = vld [vmem:[#allocation10 + $0x14] sm:$0xf]
    %v3229 = vld [vmem:[#allocation10 + $0x18] sm:$0xf]
    %v3230 = vld [vmem:[#allocation10 + $0x1c] sm:$0xf]
    %v3231 = vld [vmem:[#allocation10 + $0x20] sm:$0xf]
    %v3232 = vld [vmem:[#allocation10 + $0x24] sm:$0xf]
    %v3233 = vld [vmem:[#allocation10 + $0x28] sm:$0xf]
    %v3234 = vld [vmem:[#allocation10 + $0x2c] sm:$0xf]
    %v3235 = vld [vmem:[#allocation10 + $0x30] sm:$0xf]
    %v3236 = vld [vmem:[#allocation10 + $0x34] sm:$0xf]
    %v3237 = vld [vmem:[#allocation10 + $0x38] sm:$0xf]
    %v3238 = vld [vmem:[#allocation10 + $0x3c] sm:$0xf]
    %v3239 = vld [vmem:[%s7] sm:$0x1]
    %v3241 = vlaneseq
    %v3242 = vshrl.u32 %v3241, 7
    %v3243 = vsub.s32 0, %v3242
    %v3244 = vrot.slane %v3239, %v3243
    %v3262 = vunpack.c.l.b16 %v3223
    %v3263 = vunpack.c.l.b16 %v3224
    %v3264 = vunpack.c.l.b16 %v3225
    %v3265 = vunpack.c.l.b16 %v3226
    %v3266 = vunpack.c.l.b16 %v3227
    %v3267 = vunpack.c.l.b16 %v3228
    %v3268 = vunpack.c.l.b16 %v3229
    %v3269 = vunpack.c.l.b16 %v3230
    %v3270 = vunpack.c.l.b16 %v3231
    %v3271 = vunpack.c.l.b16 %v3232
    %v3272 = vunpack.c.l.b16 %v3233
    %v3273 = vunpack.c.l.b16 %v3234
    %v3274 = vunpack.c.l.b16 %v3235
    %v3275 = vunpack.c.l.b16 %v3236
    %v3276 = vunpack.c.l.b16 %v3237
    %v3277 = vunpack.c.l.b16 %v3238
    %v3278 = vpack.c.b16 %v3263, %v3262
    %v3279 = vpack.c.b16 %v3265, %v3264
    %v3280 = vpack.c.b16 %v3267, %v3266
    %v3281 = vpack.c.b16 %v3269, %v3268
    %v3282 = vpack.c.b16 %v3271, %v3270
    %v3283 = vpack.c.b16 %v3273, %v3272
    %v3284 = vpack.c.b16 %v3275, %v3274
    %v3285 = vpack.c.b16 %v3277, %v3276
    %3294 = vmatprep.subr.bf16.mxu0 0
    %3295 = vmatpush1.bf16.msra.mxu0 %v3285
    %3296 = vmatprep.subr.bf16.mxu0 0
    %3297 = vmatpush1.bf16.msra.mxu0 %v3284
    %3298 = vmatprep.subr.bf16.mxu0 0
    %3299 = vmatpush1.bf16.msra.mxu0 %v3283
    %3300 = vmatprep.subr.bf16.mxu0 0
    %3301 = vmatpush1.bf16.msra.mxu0 %v3282
    %3302 = vmatprep.subr.bf16.mxu0 0
    %3303 = vmatpush1.bf16.msra.mxu0 %v3281
    %3304 = vmatprep.subr.bf16.mxu0 0
    %3305 = vmatpush1.bf16.msra.mxu0 %v3280
    %3306 = vmatprep.subr.bf16.mxu0 0
    %3307 = vmatpush1.bf16.msra.mxu0 %v3279
    %3308 = vmatprep.subr.bf16.mxu0 0
    %3309 = vmatpush1.bf16.msra.mxu0 %v3278
    %3310 = vmatprep.subr.bf16.mxu0 0
    %3311 = vmatpush2.bf16.msra.mxu0 0
    %3312 = vmatprep.subr.bf16.mxu0 0
    %3313 = vmatpush2.bf16.msra.mxu0 0
    %3314 = vmatprep.subr.bf16.mxu0 0
    %3315 = vmatpush2.bf16.msra.mxu0 0
    %3316 = vmatprep.subr.bf16.mxu0 0
    %3317 = vmatpush2.bf16.msra.mxu0 0
    %3318 = vmatprep.subr.bf16.mxu0 0
    %3319 = vmatpush2.bf16.msra.mxu0 0
    %3320 = vmatprep.subr.bf16.mxu0 0
    %3321 = vmatpush2.bf16.msra.mxu0 0
    %3322 = vmatprep.subr.bf16.mxu0 0
    %3323 = vmatpush2.bf16.msra.mxu0 0
    %3324 = vmatprep.subr.bf16.mxu0 0
    %3325 = vmatpush2.bf16.msra.mxu0 0
    %3326 = vmatprep.mubr.bf16.mxu0 0
    %3327 = vmatmul.mubr.bf16.gmra.mxu0 %v3222
    %v3328 = vpop.f32.mrf.mxu0
    %v3329 = vadd.f32 %v3244, %v3328
    %v3330 = vpop.f32.mrf.mxu0
    %v3331 = vpop.f32.mrf.mxu0
    %v3332 = vadd.f32 %v3244, %v3331
    %v3333 = vpop.f32.mrf.mxu0
    %3334 = vdwg.mxu0
    %v3335 = vpack.c.bf16 %v3332, %v3329
    %v3336 = vadd.bf16 %v3335, %v260
    %v3337 = vld [vmem:[#allocation11] sm:$0xff]
    %v3338 = vld [vmem:[#allocation11 + $0x8] sm:$0xff]
    %v3339 = vld [vmem:[#allocation11 + $0x10] sm:$0xff]
    %v3340 = vld [vmem:[#allocation11 + $0x18] sm:$0xff]
    %v3341 = vld [vmem:[#allocation11 + $0x20] sm:$0xff]
    %v3342 = vld [vmem:[#allocation11 + $0x28] sm:$0xff]
    %v3343 = vld [vmem:[#allocation11 + $0x30] sm:$0xff]
    %v3344 = vld [vmem:[#allocation11 + $0x38] sm:$0xff]
    %v3345 = vld [vmem:[#allocation11 + $0x40] sm:$0xff]
    %v3346 = vld [vmem:[#allocation11 + $0x48] sm:$0xff]
    %v3347 = vld [vmem:[#allocation11 + $0x50] sm:$0xff]
    %v3348 = vld [vmem:[#allocation11 + $0x58] sm:$0xff]
    %v3349 = vld [vmem:[#allocation11 + $0x60] sm:$0xff]
    %v3350 = vld [vmem:[#allocation11 + $0x68] sm:$0xff]
    %v3351 = vld [vmem:[#allocation11 + $0x70] sm:$0xff]
    %v3352 = vld [vmem:[#allocation11 + $0x78] sm:$0xff]
    %v3353 = vld [vmem:[#allocation11 + $0x80] sm:$0xff]
    %v3354 = vld [vmem:[#allocation11 + $0x88] sm:$0xff]
    %v3355 = vld [vmem:[#allocation11 + $0x90] sm:$0xff]
    %v3356 = vld [vmem:[#allocation11 + $0x98] sm:$0xff]
    %v3357 = vld [vmem:[#allocation11 + $0xa0] sm:$0xff]
    %v3358 = vld [vmem:[#allocation11 + $0xa8] sm:$0xff]
    %v3359 = vld [vmem:[#allocation11 + $0xb0] sm:$0xff]
    %v3360 = vld [vmem:[#allocation11 + $0xb8] sm:$0xff]
    %v3361 = vld [vmem:[#allocation11 + $0xc0] sm:$0xff]
    %v3362 = vld [vmem:[#allocation11 + $0xc8] sm:$0xff]
    %v3363 = vld [vmem:[#allocation11 + $0xd0] sm:$0xff]
    %v3364 = vld [vmem:[#allocation11 + $0xd8] sm:$0xff]
    %v3365 = vld [vmem:[#allocation11 + $0xe0] sm:$0xff]
    %v3366 = vld [vmem:[#allocation11 + $0xe8] sm:$0xff]
    %v3367 = vld [vmem:[#allocation11 + $0xf0] sm:$0xff]
    %v3368 = vld [vmem:[#allocation11 + $0xf8] sm:$0xff]
    %v3369 = vld [vmem:[#allocation11 + $0x100] sm:$0xff]
    %v3370 = vld [vmem:[#allocation11 + $0x108] sm:$0xff]
    %v3371 = vld [vmem:[#allocation11 + $0x110] sm:$0xff]
    %v3372 = vld [vmem:[#allocation11 + $0x118] sm:$0xff]
    %v3373 = vld [vmem:[#allocation11 + $0x120] sm:$0xff]
    %v3374 = vld [vmem:[#allocation11 + $0x128] sm:$0xff]
    %v3375 = vld [vmem:[#allocation11 + $0x130] sm:$0xff]
    %v3376 = vld [vmem:[#allocation11 + $0x138] sm:$0xff]
    %v3377 = vld [vmem:[#allocation11 + $0x140] sm:$0xff]
    %v3378 = vld [vmem:[#allocation11 + $0x148] sm:$0xff]
    %v3379 = vld [vmem:[#allocation11 + $0x150] sm:$0xff]
    %v3380 = vld [vmem:[#allocation11 + $0x158] sm:$0xff]
    %v3381 = vld [vmem:[#allocation11 + $0x160] sm:$0xff]
    %v3382 = vld [vmem:[#allocation11 + $0x168] sm:$0xff]
    %v3383 = vld [vmem:[#allocation11 + $0x170] sm:$0xff]
    %v3384 = vld [vmem:[#allocation11 + $0x178] sm:$0xff]
    %v3385 = vld [vmem:[#allocation11 + $0x180] sm:$0xff]
    %v3386 = vld [vmem:[#allocation11 + $0x188] sm:$0xff]
    %v3387 = vld [vmem:[#allocation11 + $0x190] sm:$0xff]
    %v3388 = vld [vmem:[#allocation11 + $0x198] sm:$0xff]
    %v3389 = vld [vmem:[#allocation11 + $0x1a0] sm:$0xff]
    %v3390 = vld [vmem:[#allocation11 + $0x1a8] sm:$0xff]
    %v3391 = vld [vmem:[#allocation11 + $0x1b0] sm:$0xff]
    %v3392 = vld [vmem:[#allocation11 + $0x1b8] sm:$0xff]
    %v3393 = vld [vmem:[#allocation11 + $0x1c0] sm:$0xff]
    %v3394 = vld [vmem:[#allocation11 + $0x1c8] sm:$0xff]
    %v3395 = vld [vmem:[#allocation11 + $0x1d0] sm:$0xff]
    %v3396 = vld [vmem:[#allocation11 + $0x1d8] sm:$0xff]
    %v3397 = vld [vmem:[#allocation11 + $0x1e0] sm:$0xff]
    %v3398 = vld [vmem:[#allocation11 + $0x1e8] sm:$0xff]
    %v3399 = vld [vmem:[#allocation11 + $0x1f0] sm:$0xff]
    %v3400 = vld [vmem:[#allocation11 + $0x1f8] sm:$0xff]
    %v3401 = vld [vmem:[#allocation11 + $0x200] sm:$0xff]
    %v3402 = vld [vmem:[#allocation11 + $0x208] sm:$0xff]
    %v3403 = vld [vmem:[#allocation11 + $0x210] sm:$0xff]
    %v3404 = vld [vmem:[#allocation11 + $0x218] sm:$0xff]
    %v3405 = vld [vmem:[#allocation11 + $0x220] sm:$0xff]
    %v3406 = vld [vmem:[#allocation11 + $0x228] sm:$0xff]
    %v3407 = vld [vmem:[#allocation11 + $0x230] sm:$0xff]
    %v3408 = vld [vmem:[#allocation11 + $0x238] sm:$0xff]
    %v3409 = vld [vmem:[#allocation11 + $0x240] sm:$0xff]
    %v3410 = vld [vmem:[#allocation11 + $0x248] sm:$0xff]
    %v3411 = vld [vmem:[#allocation11 + $0x250] sm:$0xff]
    %v3412 = vld [vmem:[#allocation11 + $0x258] sm:$0xff]
    %v3413 = vld [vmem:[#allocation11 + $0x260] sm:$0xff]
    %v3414 = vld [vmem:[#allocation11 + $0x268] sm:$0xff]
    %v3415 = vld [vmem:[#allocation11 + $0x270] sm:$0xff]
    %v3416 = vld [vmem:[#allocation11 + $0x278] sm:$0xff]
    %v3497 = vunpack.c.l.b16 %v3337
    %v3498 = vunpack.c.h.b16 %v3337
    %v3499 = vunpack.c.l.b16 %v3338
    %v3500 = vunpack.c.h.b16 %v3338
    %v3501 = vunpack.c.l.b16 %v3339
    %v3502 = vunpack.c.h.b16 %v3339
    %v3503 = vunpack.c.l.b16 %v3340
    %v3504 = vunpack.c.h.b16 %v3340
    %v3505 = vunpack.c.l.b16 %v3341
    %v3506 = vunpack.c.h.b16 %v3341
    %v3507 = vunpack.c.l.b16 %v3342
    %v3508 = vunpack.c.h.b16 %v3342
    %v3509 = vunpack.c.l.b16 %v3343
    %v3510 = vunpack.c.h.b16 %v3343
    %v3511 = vunpack.c.l.b16 %v3344
    %v3512 = vunpack.c.h.b16 %v3344
    %v3513 = vunpack.c.l.b16 %v3345
    %v3514 = vunpack.c.h.b16 %v3345
    %v3515 = vunpack.c.l.b16 %v3346
    %v3516 = vunpack.c.h.b16 %v3346
    %v3517 = vunpack.c.l.b16 %v3347
    %v3518 = vunpack.c.h.b16 %v3347
    %v3519 = vunpack.c.l.b16 %v3348
    %v3520 = vunpack.c.h.b16 %v3348
    %v3521 = vunpack.c.l.b16 %v3349
    %v3522 = vunpack.c.h.b16 %v3349
    %v3523 = vunpack.c.l.b16 %v3350
    %v3524 = vunpack.c.h.b16 %v3350
    %v3525 = vunpack.c.l.b16 %v3351
    %v3526 = vunpack.c.h.b16 %v3351
    %v3527 = vunpack.c.l.b16 %v3352
    %v3528 = vunpack.c.h.b16 %v3352
    %v3529 = vunpack.c.l.b16 %v3353
    %v3530 = vunpack.c.h.b16 %v3353
    %v3531 = vunpack.c.l.b16 %v3354
    %v3532 = vunpack.c.h.b16 %v3354
    %v3533 = vunpack.c.l.b16 %v3355
    %v3534 = vunpack.c.h.b16 %v3355
    %v3535 = vunpack.c.l.b16 %v3356
    %v3536 = vunpack.c.h.b16 %v3356
    %v3537 = vunpack.c.l.b16 %v3357
    %v3538 = vunpack.c.h.b16 %v3357
    %v3539 = vunpack.c.l.b16 %v3358
    %v3540 = vunpack.c.h.b16 %v3358
    %v3541 = vunpack.c.l.b16 %v3359
    %v3542 = vunpack.c.h.b16 %v3359
    %v3543 = vunpack.c.l.b16 %v3360
    %v3544 = vunpack.c.h.b16 %v3360
    %v3545 = vunpack.c.l.b16 %v3361
    %v3546 = vunpack.c.h.b16 %v3361
    %v3547 = vunpack.c.l.b16 %v3362
    %v3548 = vunpack.c.h.b16 %v3362
    %v3549 = vunpack.c.l.b16 %v3363
    %v3550 = vunpack.c.h.b16 %v3363
    %v3551 = vunpack.c.l.b16 %v3364
    %v3552 = vunpack.c.h.b16 %v3364
    %v3553 = vunpack.c.l.b16 %v3365
    %v3554 = vunpack.c.h.b16 %v3365
    %v3555 = vunpack.c.l.b16 %v3366
    %v3556 = vunpack.c.h.b16 %v3366
    %v3557 = vunpack.c.l.b16 %v3367
    %v3558 = vunpack.c.h.b16 %v3367
    %v3559 = vunpack.c.l.b16 %v3368
    %v3560 = vunpack.c.h.b16 %v3368
    %v3561 = vunpack.c.l.b16 %v3369
    %v3562 = vunpack.c.h.b16 %v3369
    %v3563 = vunpack.c.l.b16 %v3370
    %v3564 = vunpack.c.h.b16 %v3370
    %v3565 = vunpack.c.l.b16 %v3371
    %v3566 = vunpack.c.h.b16 %v3371
    %v3567 = vunpack.c.l.b16 %v3372
    %v3568 = vunpack.c.h.b16 %v3372
    %v3569 = vunpack.c.l.b16 %v3373
    %v3570 = vunpack.c.h.b16 %v3373
    %v3571 = vunpack.c.l.b16 %v3374
    %v3572 = vunpack.c.h.b16 %v3374
    %v3573 = vunpack.c.l.b16 %v3375
    %v3574 = vunpack.c.h.b16 %v3375
    %v3575 = vunpack.c.l.b16 %v3376
    %v3576 = vunpack.c.h.b16 %v3376
    %v3577 = vunpack.c.l.b16 %v3377
    %v3578 = vunpack.c.h.b16 %v3377
    %v3579 = vunpack.c.l.b16 %v3378
    %v3580 = vunpack.c.h.b16 %v3378
    %v3581 = vunpack.c.l.b16 %v3379
    %v3582 = vunpack.c.h.b16 %v3379
    %v3583 = vunpack.c.l.b16 %v3380
    %v3584 = vunpack.c.h.b16 %v3380
    %v3585 = vunpack.c.l.b16 %v3381
    %v3586 = vunpack.c.h.b16 %v3381
    %v3587 = vunpack.c.l.b16 %v3382
    %v3588 = vunpack.c.h.b16 %v3382
    %v3589 = vunpack.c.l.b16 %v3383
    %v3590 = vunpack.c.h.b16 %v3383
    %v3591 = vunpack.c.l.b16 %v3384
    %v3592 = vunpack.c.h.b16 %v3384
    %v3593 = vunpack.c.l.b16 %v3385
    %v3594 = vunpack.c.h.b16 %v3385
    %v3595 = vunpack.c.l.b16 %v3386
    %v3596 = vunpack.c.h.b16 %v3386
    %v3597 = vunpack.c.l.b16 %v3387
    %v3598 = vunpack.c.h.b16 %v3387
    %v3599 = vunpack.c.l.b16 %v3388
    %v3600 = vunpack.c.h.b16 %v3388
    %v3601 = vunpack.c.l.b16 %v3389
    %v3602 = vunpack.c.h.b16 %v3389
    %v3603 = vunpack.c.l.b16 %v3390
    %v3604 = vunpack.c.h.b16 %v3390
    %v3605 = vunpack.c.l.b16 %v3391
    %v3606 = vunpack.c.h.b16 %v3391
    %v3607 = vunpack.c.l.b16 %v3392
    %v3608 = vunpack.c.h.b16 %v3392
    %v3609 = vunpack.c.l.b16 %v3393
    %v3610 = vunpack.c.h.b16 %v3393
    %v3611 = vunpack.c.l.b16 %v3394
    %v3612 = vunpack.c.h.b16 %v3394
    %v3613 = vunpack.c.l.b16 %v3395
    %v3614 = vunpack.c.h.b16 %v3395
    %v3615 = vunpack.c.l.b16 %v3396
    %v3616 = vunpack.c.h.b16 %v3396
    %v3617 = vunpack.c.l.b16 %v3397
    %v3618 = vunpack.c.h.b16 %v3397
    %v3619 = vunpack.c.l.b16 %v3398
    %v3620 = vunpack.c.h.b16 %v3398
    %v3621 = vunpack.c.l.b16 %v3399
    %v3622 = vunpack.c.h.b16 %v3399
    %v3623 = vunpack.c.l.b16 %v3400
    %v3624 = vunpack.c.h.b16 %v3400
    %v3625 = vunpack.c.l.b16 %v3401
    %v3626 = vunpack.c.h.b16 %v3401
    %v3627 = vunpack.c.l.b16 %v3402
    %v3628 = vunpack.c.h.b16 %v3402
    %v3629 = vunpack.c.l.b16 %v3403
    %v3630 = vunpack.c.h.b16 %v3403
    %v3631 = vunpack.c.l.b16 %v3404
    %v3632 = vunpack.c.h.b16 %v3404
    %v3633 = vunpack.c.l.b16 %v3405
    %v3634 = vunpack.c.h.b16 %v3405
    %v3635 = vunpack.c.l.b16 %v3406
    %v3636 = vunpack.c.h.b16 %v3406
    %v3637 = vunpack.c.l.b16 %v3407
    %v3638 = vunpack.c.h.b16 %v3407
    %v3639 = vunpack.c.l.b16 %v3408
    %v3640 = vunpack.c.h.b16 %v3408
    %v3641 = vunpack.c.l.b16 %v3409
    %v3642 = vunpack.c.h.b16 %v3409
    %v3643 = vunpack.c.l.b16 %v3410
    %v3644 = vunpack.c.h.b16 %v3410
    %v3645 = vunpack.c.l.b16 %v3411
    %v3646 = vunpack.c.h.b16 %v3411
    %v3647 = vunpack.c.l.b16 %v3412
    %v3648 = vunpack.c.h.b16 %v3412
    %v3649 = vunpack.c.l.b16 %v3413
    %v3650 = vunpack.c.h.b16 %v3413
    %v3651 = vunpack.c.l.b16 %v3414
    %v3652 = vunpack.c.h.b16 %v3414
    %v3653 = vunpack.c.l.b16 %v3415
    %v3654 = vunpack.c.h.b16 %v3415
    %v3655 = vunpack.c.l.b16 %v3416
    %v3656 = vunpack.c.h.b16 %v3416
    %v3657 = vpack.c.b16 %v3507, %v3497
    %v3658 = vpack.c.b16 %v3508, %v3498
    %v3659 = vpack.c.b16 %v3509, %v3499
    %v3660 = vpack.c.b16 %v3510, %v3500
    %v3661 = vpack.c.b16 %v3511, %v3501
    %v3662 = vpack.c.b16 %v3512, %v3502
    %v3663 = vpack.c.b16 %v3513, %v3503
    %v3664 = vpack.c.b16 %v3514, %v3504
    %v3665 = vpack.c.b16 %v3515, %v3505
    %v3666 = vpack.c.b16 %v3516, %v3506
    %v3667 = vpack.c.b16 %v3527, %v3517
    %v3668 = vpack.c.b16 %v3528, %v3518
    %v3669 = vpack.c.b16 %v3529, %v3519
    %v3670 = vpack.c.b16 %v3530, %v3520
    %v3671 = vpack.c.b16 %v3531, %v3521
    %v3672 = vpack.c.b16 %v3532, %v3522
    %v3673 = vpack.c.b16 %v3533, %v3523
    %v3674 = vpack.c.b16 %v3534, %v3524
    %v3675 = vpack.c.b16 %v3535, %v3525
    %v3676 = vpack.c.b16 %v3536, %v3526
    %v3677 = vpack.c.b16 %v3547, %v3537
    %v3678 = vpack.c.b16 %v3548, %v3538
    %v3679 = vpack.c.b16 %v3549, %v3539
    %v3680 = vpack.c.b16 %v3550, %v3540
    %v3681 = vpack.c.b16 %v3551, %v3541
    %v3682 = vpack.c.b16 %v3552, %v3542
    %v3683 = vpack.c.b16 %v3553, %v3543
    %v3684 = vpack.c.b16 %v3554, %v3544
    %v3685 = vpack.c.b16 %v3555, %v3545
    %v3686 = vpack.c.b16 %v3556, %v3546
    %v3687 = vpack.c.b16 %v3567, %v3557
    %v3688 = vpack.c.b16 %v3568, %v3558
    %v3689 = vpack.c.b16 %v3569, %v3559
    %v3690 = vpack.c.b16 %v3570, %v3560
    %v3691 = vpack.c.b16 %v3571, %v3561
    %v3692 = vpack.c.b16 %v3572, %v3562
    %v3693 = vpack.c.b16 %v3573, %v3563
    %v3694 = vpack.c.b16 %v3574, %v3564
    %v3695 = vpack.c.b16 %v3575, %v3565
    %v3696 = vpack.c.b16 %v3576, %v3566
    %v3697 = vpack.c.b16 %v3587, %v3577
    %v3698 = vpack.c.b16 %v3588, %v3578
    %v3699 = vpack.c.b16 %v3589, %v3579
    %v3700 = vpack.c.b16 %v3590, %v3580
    %v3701 = vpack.c.b16 %v3591, %v3581
    %v3702 = vpack.c.b16 %v3592, %v3582
    %v3703 = vpack.c.b16 %v3593, %v3583
    %v3704 = vpack.c.b16 %v3594, %v3584
    %v3705 = vpack.c.b16 %v3595, %v3585
    %v3706 = vpack.c.b16 %v3596, %v3586
    %v3707 = vpack.c.b16 %v3607, %v3597
    %v3708 = vpack.c.b16 %v3608, %v3598
    %v3709 = vpack.c.b16 %v3609, %v3599
    %v3710 = vpack.c.b16 %v3610, %v3600
    %v3711 = vpack.c.b16 %v3611, %v3601
    %v3712 = vpack.c.b16 %v3612, %v3602
    %v3713 = vpack.c.b16 %v3613, %v3603
    %v3714 = vpack.c.b16 %v3614, %v3604
    %v3715 = vpack.c.b16 %v3615, %v3605
    %v3716 = vpack.c.b16 %v3616, %v3606
    %v3717 = vpack.c.b16 %v3627, %v3617
    %v3718 = vpack.c.b16 %v3628, %v3618
    %v3719 = vpack.c.b16 %v3629, %v3619
    %v3720 = vpack.c.b16 %v3630, %v3620
    %v3721 = vpack.c.b16 %v3631, %v3621
    %v3722 = vpack.c.b16 %v3632, %v3622
    %v3723 = vpack.c.b16 %v3633, %v3623
    %v3724 = vpack.c.b16 %v3634, %v3624
    %v3725 = vpack.c.b16 %v3635, %v3625
    %v3726 = vpack.c.b16 %v3636, %v3626
    %v3727 = vpack.c.b16 %v3647, %v3637
    %v3728 = vpack.c.b16 %v3648, %v3638
    %v3729 = vpack.c.b16 %v3649, %v3639
    %v3730 = vpack.c.b16 %v3650, %v3640
    %v3731 = vpack.c.b16 %v3651, %v3641
    %v3732 = vpack.c.b16 %v3652, %v3642
    %v3733 = vpack.c.b16 %v3653, %v3643
    %v3734 = vpack.c.b16 %v3654, %v3644
    %v3735 = vpack.c.b16 %v3655, %v3645
    %v3736 = vpack.c.b16 %v3656, %v3646
    %3817 = vmatprep.subr.bf16.mxu0 %v3728
    %3818 = vmatpush1.bf16.msra.mxu0 %v3727
    %3819 = vmatprep.subr.bf16.mxu0 %v3718
    %3820 = vmatpush1.bf16.msra.mxu0 %v3717
    %3821 = vmatprep.subr.bf16.mxu0 %v3708
    %3822 = vmatpush1.bf16.msra.mxu0 %v3707
    %3823 = vmatprep.subr.bf16.mxu0 %v3698
    %3824 = vmatpush1.bf16.msra.mxu0 %v3697
    %3825 = vmatprep.subr.bf16.mxu0 %v3688
    %3826 = vmatpush1.bf16.msra.mxu0 %v3687
    %3827 = vmatprep.subr.bf16.mxu0 %v3678
    %3828 = vmatpush1.bf16.msra.mxu0 %v3677
    %3829 = vmatprep.subr.bf16.mxu0 %v3668
    %3830 = vmatpush1.bf16.msra.mxu0 %v3667
    %3831 = vmatprep.subr.bf16.mxu0 %v3658
    %3832 = vmatpush1.bf16.msra.mxu0 %v3657
    %3833 = vmatprep.subr.bf16.mxu0 0
    %3834 = vmatpush2.bf16.msra.mxu0 0
    %3835 = vmatprep.subr.bf16.mxu0 0
    %3836 = vmatpush2.bf16.msra.mxu0 0
    %3837 = vmatprep.subr.bf16.mxu0 0
    %3838 = vmatpush2.bf16.msra.mxu0 0
    %3839 = vmatprep.subr.bf16.mxu0 0
    %3840 = vmatpush2.bf16.msra.mxu0 0
    %3841 = vmatprep.subr.bf16.mxu0 0
    %3842 = vmatpush2.bf16.msra.mxu0 0
    %3843 = vmatprep.subr.bf16.mxu0 0
    %3844 = vmatpush2.bf16.msra.mxu0 0
    %3845 = vmatprep.subr.bf16.mxu0 0
    %3846 = vmatpush2.bf16.msra.mxu0 0
    %3847 = vmatprep.subr.bf16.mxu0 0
    %3848 = vmatpush2.bf16.msra.mxu0 0
    %3849 = vmatprep.mubr.bf16.mxu0 0
    %3850 = vmatmul.mubr.bf16.gmra.mxu0 %v3336
    %v3851 = vpop.f32.mrf.mxu0
    %v3852 = vadd.f32 0.0, %v3851
    %v3853 = vpop.f32.mrf.mxu0
    %v3854 = vadd.f32 0.0, %v3853
    %v3855 = vpop.f32.mrf.mxu0
    %v3856 = vadd.f32 0.0, %v3855
    %v3857 = vpop.f32.mrf.mxu0
    %v3858 = vadd.f32 0.0, %v3857
    %3859 = vdwg.mxu0
    %3860 = vmatprep.subr.bf16.mxu0 %v3730
    %3861 = vmatpush1.bf16.msra.mxu0 %v3729
    %3862 = vmatprep.subr.bf16.mxu0 %v3720
    %3863 = vmatpush1.bf16.msra.mxu0 %v3719
    %3864 = vmatprep.subr.bf16.mxu0 %v3710
    %3865 = vmatpush1.bf16.msra.mxu0 %v3709
    %3866 = vmatprep.subr.bf16.mxu0 %v3700
    %3867 = vmatpush1.bf16.msra.mxu0 %v3699
    %3868 = vmatprep.subr.bf16.mxu0 %v3690
    %3869 = vmatpush1.bf16.msra.mxu0 %v3689
    %3870 = vmatprep.subr.bf16.mxu0 %v3680
    %3871 = vmatpush1.bf16.msra.mxu0 %v3679
    %3872 = vmatprep.subr.bf16.mxu0 %v3670
    %3873 = vmatpush1.bf16.msra.mxu0 %v3669
    %3874 = vmatprep.subr.bf16.mxu0 %v3660
    %3875 = vmatpush1.bf16.msra.mxu0 %v3659
    %3876 = vmatprep.subr.bf16.mxu0 0
    %3877 = vmatpush2.bf16.msra.mxu0 0
    %3878 = vmatprep.subr.bf16.mxu0 0
    %3879 = vmatpush2.bf16.msra.mxu0 0
    %3880 = vmatprep.subr.bf16.mxu0 0
    %3881 = vmatpush2.bf16.msra.mxu0 0
    %3882 = vmatprep.subr.bf16.mxu0 0
    %3883 = vmatpush2.bf16.msra.mxu0 0
    %3884 = vmatprep.subr.bf16.mxu0 0
    %3885 = vmatpush2.bf16.msra.mxu0 0
    %3886 = vmatprep.subr.bf16.mxu0 0
    %3887 = vmatpush2.bf16.msra.mxu0 0
    %3888 = vmatprep.subr.bf16.mxu0 0
    %3889 = vmatpush2.bf16.msra.mxu0 0
    %3890 = vmatprep.subr.bf16.mxu0 0
    %3891 = vmatpush2.bf16.msra.mxu0 0
    %3892 = vmatprep.mubr.bf16.mxu0 0
    %3893 = vmatmul.mubr.bf16.gmra.mxu0 %v3336
    %v3894 = vpop.f32.mrf.mxu0
    %v3895 = vadd.f32 0.0, %v3894
    %v3896 = vpop.f32.mrf.mxu0
    %v3897 = vadd.f32 0.0, %v3896
    %v3898 = vpop.f32.mrf.mxu0
    %v3899 = vadd.f32 0.0, %v3898
    %v3900 = vpop.f32.mrf.mxu0
    %v3901 = vadd.f32 0.0, %v3900
    %3902 = vdwg.mxu0
    %3903 = vmatprep.subr.bf16.mxu0 %v3732
    %3904 = vmatpush1.bf16.msra.mxu0 %v3731
    %3905 = vmatprep.subr.bf16.mxu0 %v3722
    %3906 = vmatpush1.bf16.msra.mxu0 %v3721
    %3907 = vmatprep.subr.bf16.mxu0 %v3712
    %3908 = vmatpush1.bf16.msra.mxu0 %v3711
    %3909 = vmatprep.subr.bf16.mxu0 %v3702
    %3910 = vmatpush1.bf16.msra.mxu0 %v3701
    %3911 = vmatprep.subr.bf16.mxu0 %v3692
    %3912 = vmatpush1.bf16.msra.mxu0 %v3691
    %3913 = vmatprep.subr.bf16.mxu0 %v3682
    %3914 = vmatpush1.bf16.msra.mxu0 %v3681
    %3915 = vmatprep.subr.bf16.mxu0 %v3672
    %3916 = vmatpush1.bf16.msra.mxu0 %v3671
    %3917 = vmatprep.subr.bf16.mxu0 %v3662
    %3918 = vmatpush1.bf16.msra.mxu0 %v3661
    %3919 = vmatprep.subr.bf16.mxu0 0
    %3920 = vmatpush2.bf16.msra.mxu0 0
    %3921 = vmatprep.subr.bf16.mxu0 0
    %3922 = vmatpush2.bf16.msra.mxu0 0
    %3923 = vmatprep.subr.bf16.mxu0 0
    %3924 = vmatpush2.bf16.msra.mxu0 0
    %3925 = vmatprep.subr.bf16.mxu0 0
    %3926 = vmatpush2.bf16.msra.mxu0 0
    %3927 = vmatprep.subr.bf16.mxu0 0
    %3928 = vmatpush2.bf16.msra.mxu0 0
    %3929 = vmatprep.subr.bf16.mxu0 0
    %3930 = vmatpush2.bf16.msra.mxu0 0
    %3931 = vmatprep.subr.bf16.mxu0 0
    %3932 = vmatpush2.bf16.msra.mxu0 0
    %3933 = vmatprep.subr.bf16.mxu0 0
    %3934 = vmatpush2.bf16.msra.mxu0 0
    %3935 = vmatprep.mubr.bf16.mxu0 0
    %3936 = vmatmul.mubr.bf16.gmra.mxu0 %v3336
    %v3937 = vpop.f32.mrf.mxu0
    %v3938 = vadd.f32 0.0, %v3937
    %v3939 = vpop.f32.mrf.mxu0
    %v3940 = vadd.f32 0.0, %v3939
    %v3941 = vpop.f32.mrf.mxu0
    %v3942 = vadd.f32 0.0, %v3941
    %v3943 = vpop.f32.mrf.mxu0
    %v3944 = vadd.f32 0.0, %v3943
    %3945 = vdwg.mxu0
    %3946 = vmatprep.subr.bf16.mxu0 %v3734
    %3947 = vmatpush1.bf16.msra.mxu0 %v3733
    %3948 = vmatprep.subr.bf16.mxu0 %v3724
    %3949 = vmatpush1.bf16.msra.mxu0 %v3723
    %3950 = vmatprep.subr.bf16.mxu0 %v3714
    %3951 = vmatpush1.bf16.msra.mxu0 %v3713
    %3952 = vmatprep.subr.bf16.mxu0 %v3704
    %3953 = vmatpush1.bf16.msra.mxu0 %v3703
    %3954 = vmatprep.subr.bf16.mxu0 %v3694
    %3955 = vmatpush1.bf16.msra.mxu0 %v3693
    %3956 = vmatprep.subr.bf16.mxu0 %v3684
    %3957 = vmatpush1.bf16.msra.mxu0 %v3683
    %3958 = vmatprep.subr.bf16.mxu0 %v3674
    %3959 = vmatpush1.bf16.msra.mxu0 %v3673
    %3960 = vmatprep.subr.bf16.mxu0 %v3664
    %3961 = vmatpush1.bf16.msra.mxu0 %v3663
    %3962 = vmatprep.subr.bf16.mxu0 0
    %3963 = vmatpush2.bf16.msra.mxu0 0
    %3964 = vmatprep.subr.bf16.mxu0 0
    %3965 = vmatpush2.bf16.msra.mxu0 0
    %3966 = vmatprep.subr.bf16.mxu0 0
    %3967 = vmatpush2.bf16.msra.mxu0 0
    %3968 = vmatprep.subr.bf16.mxu0 0
    %3969 = vmatpush2.bf16.msra.mxu0 0
    %3970 = vmatprep.subr.bf16.mxu0 0
    %3971 = vmatpush2.bf16.msra.mxu0 0
    %3972 = vmatprep.subr.bf16.mxu0 0
    %3973 = vmatpush2.bf16.msra.mxu0 0
    %3974 = vmatprep.subr.bf16.mxu0 0
    %3975 = vmatpush2.bf16.msra.mxu0 0
    %3976 = vmatprep.subr.bf16.mxu0 0
    %3977 = vmatpush2.bf16.msra.mxu0 0
    %3978 = vmatprep.mubr.bf16.mxu0 0
    %3979 = vmatmul.mubr.bf16.gmra.mxu0 %v3336
    %v3980 = vpop.f32.mrf.mxu0
    %v3981 = vadd.f32 0.0, %v3980
    %v3982 = vpop.f32.mrf.mxu0
    %v3983 = vadd.f32 0.0, %v3982
    %v3984 = vpop.f32.mrf.mxu0
    %v3985 = vadd.f32 0.0, %v3984
    %v3986 = vpop.f32.mrf.mxu0
    %v3987 = vadd.f32 0.0, %v3986
    %3988 = vdwg.mxu0
    %3989 = vmatprep.subr.bf16.mxu0 %v3736
    %3990 = vmatpush1.bf16.msra.mxu0 %v3735
    %3991 = vmatprep.subr.bf16.mxu0 %v3726
    %3992 = vmatpush1.bf16.msra.mxu0 %v3725
    %3993 = vmatprep.subr.bf16.mxu0 %v3716
    %3994 = vmatpush1.bf16.msra.mxu0 %v3715
    %3995 = vmatprep.subr.bf16.mxu0 %v3706
    %3996 = vmatpush1.bf16.msra.mxu0 %v3705
    %3997 = vmatprep.subr.bf16.mxu0 %v3696
    %3998 = vmatpush1.bf16.msra.mxu0 %v3695
    %3999 = vmatprep.subr.bf16.mxu0 %v3686
    %4000 = vmatpush1.bf16.msra.mxu0 %v3685
    %4001 = vmatprep.subr.bf16.mxu0 %v3676
    %4002 = vmatpush1.bf16.msra.mxu0 %v3675
    %4003 = vmatprep.subr.bf16.mxu0 %v3666
    %4004 = vmatpush1.bf16.msra.mxu0 %v3665
    %4005 = vmatprep.subr.bf16.mxu0 0
    %4006 = vmatpush2.bf16.msra.mxu0 0
    %4007 = vmatprep.subr.bf16.mxu0 0
    %4008 = vmatpush2.bf16.msra.mxu0 0
    %4009 = vmatprep.subr.bf16.mxu0 0
    %4010 = vmatpush2.bf16.msra.mxu0 0
    %4011 = vmatprep.subr.bf16.mxu0 0
    %4012 = vmatpush2.bf16.msra.mxu0 0
    %4013 = vmatprep.subr.bf16.mxu0 0
    %4014 = vmatpush2.bf16.msra.mxu0 0
    %4015 = vmatprep.subr.bf16.mxu0 0
    %4016 = vmatpush2.bf16.msra.mxu0 0
    %4017 = vmatprep.subr.bf16.mxu0 0
    %4018 = vmatpush2.bf16.msra.mxu0 0
    %4019 = vmatprep.subr.bf16.mxu0 0
    %4020 = vmatpush2.bf16.msra.mxu0 0
    %4021 = vmatprep.mubr.bf16.mxu0 0
    %4022 = vmatmul.mubr.bf16.gmra.mxu0 %v3336
    %v4023 = vpop.f32.mrf.mxu0
    %v4024 = vadd.f32 0.0, %v4023
    %v4025 = vpop.f32.mrf.mxu0
    %v4026 = vadd.f32 0.0, %v4025
    %v4027 = vpop.f32.mrf.mxu0
    %v4028 = vadd.f32 0.0, %v4027
    %v4029 = vpop.f32.mrf.mxu0
    %v4030 = vadd.f32 0.0, %v4029
    %4031 = vdwg.mxu0
    %v4032 = vpack.c.bf16 %v3856, %v3852
    %v4033 = vpack.c.bf16 %v3858, %v3854
    %v4034 = vpack.c.bf16 %v3899, %v3895
    %v4035 = vpack.c.bf16 %v3901, %v3897
    %v4036 = vpack.c.bf16 %v3942, %v3938
    %v4037 = vpack.c.bf16 %v3944, %v3940
    %v4038 = vpack.c.bf16 %v3985, %v3981
    %v4039 = vpack.c.bf16 %v3987, %v3983
    %v4040 = vpack.c.bf16 %v4028, %v4024
    %v4041 = vpack.c.bf16 %v4030, %v4026
    %v4042 = vmax.bf16 %v4032, 0
    %v4043 = vmax.bf16 %v4033, 0
    %v4044 = vmax.bf16 %v4034, 0
    %v4045 = vmax.bf16 %v4035, 0
    %v4046 = vmax.bf16 %v4036, 0
    %v4047 = vmax.bf16 %v4037, 0
    %v4048 = vmax.bf16 %v4038, 0
    %v4049 = vmax.bf16 %v4039, 0
    %v4050 = vmax.bf16 %v4040, 0
    %v4051 = vmax.bf16 %v4041, 0
    %v4052 = vld [vmem:[#allocation13] sm:$0xff]
    %v4053 = vld [vmem:[#allocation13 + $0x8] sm:$0xf]
    %v4054 = vld [vmem:[#allocation13 + $0xc] sm:$0xff]
    %v4055 = vld [vmem:[#allocation13 + $0x14] sm:$0xf]
    %v4056 = vld [vmem:[#allocation13 + $0x18] sm:$0xff]
    %v4057 = vld [vmem:[#allocation13 + $0x20] sm:$0xf]
    %v4058 = vld [vmem:[#allocation13 + $0x24] sm:$0xff]
    %v4059 = vld [vmem:[#allocation13 + $0x2c] sm:$0xf]
    %v4060 = vld [vmem:[#allocation13 + $0x30] sm:$0xff]
    %v4061 = vld [vmem:[#allocation13 + $0x38] sm:$0xf]
    %v4062 = vld [vmem:[#allocation13 + $0x3c] sm:$0xff]
    %v4063 = vld [vmem:[#allocation13 + $0x44] sm:$0xf]
    %v4064 = vld [vmem:[#allocation13 + $0x48] sm:$0xff]
    %v4065 = vld [vmem:[#allocation13 + $0x50] sm:$0xf]
    %v4066 = vld [vmem:[#allocation13 + $0x54] sm:$0xff]
    %v4067 = vld [vmem:[#allocation13 + $0x5c] sm:$0xf]
    %v4068 = vld [vmem:[#allocation13 + $0x60] sm:$0xff]
    %v4069 = vld [vmem:[#allocation13 + $0x68] sm:$0xf]
    %v4070 = vld [vmem:[#allocation13 + $0x6c] sm:$0xff]
    %v4071 = vld [vmem:[#allocation13 + $0x74] sm:$0xf]
    %v4072 = vld [vmem:[#allocation13 + $0x78] sm:$0xff]
    %v4073 = vld [vmem:[#allocation13 + $0x80] sm:$0xf]
    %v4074 = vld [vmem:[#allocation13 + $0x84] sm:$0xff]
    %v4075 = vld [vmem:[#allocation13 + $0x8c] sm:$0xf]
    %v4076 = vld [vmem:[#allocation13 + $0x90] sm:$0xff]
    %v4077 = vld [vmem:[#allocation13 + $0x98] sm:$0xf]
    %v4078 = vld [vmem:[#allocation13 + $0x9c] sm:$0xff]
    %v4079 = vld [vmem:[#allocation13 + $0xa4] sm:$0xf]
    %v4080 = vld [vmem:[#allocation13 + $0xa8] sm:$0xff]
    %v4081 = vld [vmem:[#allocation13 + $0xb0] sm:$0xf]
    %v4082 = vld [vmem:[#allocation13 + $0xb4] sm:$0xff]
    %v4083 = vld [vmem:[#allocation13 + $0xbc] sm:$0xf]
    %v4084 = vld [vmem:[#allocation13 + $0xc0] sm:$0xff]
    %v4085 = vld [vmem:[#allocation13 + $0xc8] sm:$0xf]
    %v4086 = vld [vmem:[#allocation13 + $0xcc] sm:$0xff]
    %v4087 = vld [vmem:[#allocation13 + $0xd4] sm:$0xf]
    %v4088 = vld [vmem:[#allocation13 + $0xd8] sm:$0xff]
    %v4089 = vld [vmem:[#allocation13 + $0xe0] sm:$0xf]
    %v4090 = vld [vmem:[#allocation13 + $0xe4] sm:$0xff]
    %v4091 = vld [vmem:[#allocation13 + $0xec] sm:$0xf]
    %v4092 = vld [vmem:[#allocation13 + $0xf0] sm:$0xff]
    %v4093 = vld [vmem:[#allocation13 + $0xf8] sm:$0xf]
    %v4094 = vld [vmem:[#allocation13 + $0xfc] sm:$0xff]
    %v4095 = vld [vmem:[#allocation13 + $0x104] sm:$0xf]
    %v4096 = vld [vmem:[#allocation13 + $0x108] sm:$0xff]
    %v4097 = vld [vmem:[#allocation13 + $0x110] sm:$0xf]
    %v4098 = vld [vmem:[#allocation13 + $0x114] sm:$0xff]
    %v4099 = vld [vmem:[#allocation13 + $0x11c] sm:$0xf]
    %v4100 = vld [vmem:[#allocation13 + $0x120] sm:$0xff]
    %v4101 = vld [vmem:[#allocation13 + $0x128] sm:$0xf]
    %v4102 = vld [vmem:[#allocation13 + $0x12c] sm:$0xff]
    %v4103 = vld [vmem:[#allocation13 + $0x134] sm:$0xf]
    %v4104 = vld [vmem:[#allocation13 + $0x138] sm:$0xff]
    %v4105 = vld [vmem:[#allocation13 + $0x140] sm:$0xf]
    %v4106 = vld [vmem:[#allocation13 + $0x144] sm:$0xff]
    %v4107 = vld [vmem:[#allocation13 + $0x14c] sm:$0xf]
    %v4108 = vld [vmem:[#allocation13 + $0x150] sm:$0xff]
    %v4109 = vld [vmem:[#allocation13 + $0x158] sm:$0xf]
    %v4110 = vld [vmem:[#allocation13 + $0x15c] sm:$0xff]
    %v4111 = vld [vmem:[#allocation13 + $0x164] sm:$0xf]
    %v4112 = vld [vmem:[#allocation13 + $0x168] sm:$0xff]
    %v4113 = vld [vmem:[#allocation13 + $0x170] sm:$0xf]
    %v4114 = vld [vmem:[#allocation13 + $0x174] sm:$0xff]
    %v4115 = vld [vmem:[#allocation13 + $0x17c] sm:$0xf]
    %v4116 = vld [vmem:[#allocation13 + $0x180] sm:$0xff]
    %v4117 = vld [vmem:[#allocation13 + $0x188] sm:$0xf]
    %v4118 = vld [vmem:[#allocation13 + $0x18c] sm:$0xff]
    %v4119 = vld [vmem:[#allocation13 + $0x194] sm:$0xf]
    %v4120 = vld [vmem:[#allocation13 + $0x198] sm:$0xff]
    %v4121 = vld [vmem:[#allocation13 + $0x1a0] sm:$0xf]
    %v4122 = vld [vmem:[#allocation13 + $0x1a4] sm:$0xff]
    %v4123 = vld [vmem:[#allocation13 + $0x1ac] sm:$0xf]
    %v4124 = vld [vmem:[#allocation13 + $0x1b0] sm:$0xff]
    %v4125 = vld [vmem:[#allocation13 + $0x1b8] sm:$0xf]
    %v4126 = vld [vmem:[#allocation13 + $0x1bc] sm:$0xff]
    %v4127 = vld [vmem:[#allocation13 + $0x1c4] sm:$0xf]
    %v4128 = vld [vmem:[#allocation13 + $0x1c8] sm:$0xff]
    %v4129 = vld [vmem:[#allocation13 + $0x1d0] sm:$0xf]
    %v4130 = vld [vmem:[#allocation13 + $0x1d4] sm:$0xff]
    %v4131 = vld [vmem:[#allocation13 + $0x1dc] sm:$0xf]
    %v4132 = vld [vmem:[#allocation13 + $0x1e0] sm:$0xff]
    %v4133 = vld [vmem:[#allocation13 + $0x1e8] sm:$0xf]
    %v4134 = vld [vmem:[#allocation13 + $0x1ec] sm:$0xff]
    %v4135 = vld [vmem:[#allocation13 + $0x1f4] sm:$0xf]
    %v4136 = vld [vmem:[#allocation13 + $0x1f8] sm:$0xff]
    %v4137 = vld [vmem:[#allocation13 + $0x200] sm:$0xf]
    %v4138 = vld [vmem:[#allocation13 + $0x204] sm:$0xff]
    %v4139 = vld [vmem:[#allocation13 + $0x20c] sm:$0xf]
    %v4140 = vld [vmem:[#allocation13 + $0x210] sm:$0xff]
    %v4141 = vld [vmem:[#allocation13 + $0x218] sm:$0xf]
    %v4142 = vld [vmem:[#allocation13 + $0x21c] sm:$0xff]
    %v4143 = vld [vmem:[#allocation13 + $0x224] sm:$0xf]
    %v4144 = vld [vmem:[#allocation13 + $0x228] sm:$0xff]
    %v4145 = vld [vmem:[#allocation13 + $0x230] sm:$0xf]
    %v4146 = vld [vmem:[#allocation13 + $0x234] sm:$0xff]
    %v4147 = vld [vmem:[#allocation13 + $0x23c] sm:$0xf]
    %v4148 = vld [vmem:[#allocation13 + $0x240] sm:$0xff]
    %v4149 = vld [vmem:[#allocation13 + $0x248] sm:$0xf]
    %v4150 = vld [vmem:[#allocation13 + $0x24c] sm:$0xff]
    %v4151 = vld [vmem:[#allocation13 + $0x254] sm:$0xf]
    %v4152 = vld [vmem:[#allocation13 + $0x258] sm:$0xff]
    %v4153 = vld [vmem:[#allocation13 + $0x260] sm:$0xf]
    %v4154 = vld [vmem:[#allocation13 + $0x264] sm:$0xff]
    %v4155 = vld [vmem:[#allocation13 + $0x26c] sm:$0xf]
    %v4156 = vld [vmem:[#allocation13 + $0x270] sm:$0xff]
    %v4157 = vld [vmem:[#allocation13 + $0x278] sm:$0xf]
    %v4158 = vld [vmem:[#allocation13 + $0x27c] sm:$0xff]
    %v4159 = vld [vmem:[#allocation13 + $0x284] sm:$0xf]
    %v4160 = vld [vmem:[#allocation13 + $0x288] sm:$0xff]
    %v4161 = vld [vmem:[#allocation13 + $0x290] sm:$0xf]
    %v4162 = vld [vmem:[#allocation13 + $0x294] sm:$0xff]
    %v4163 = vld [vmem:[#allocation13 + $0x29c] sm:$0xf]
    %v4164 = vld [vmem:[#allocation13 + $0x2a0] sm:$0xff]
    %v4165 = vld [vmem:[#allocation13 + $0x2a8] sm:$0xf]
    %v4166 = vld [vmem:[#allocation13 + $0x2ac] sm:$0xff]
    %v4167 = vld [vmem:[#allocation13 + $0x2b4] sm:$0xf]
    %v4168 = vld [vmem:[#allocation13 + $0x2b8] sm:$0xff]
    %v4169 = vld [vmem:[#allocation13 + $0x2c0] sm:$0xf]
    %v4170 = vld [vmem:[#allocation13 + $0x2c4] sm:$0xff]
    %v4171 = vld [vmem:[#allocation13 + $0x2cc] sm:$0xf]
    %v4172 = vld [vmem:[#allocation13 + $0x2d0] sm:$0xff]
    %v4173 = vld [vmem:[#allocation13 + $0x2d8] sm:$0xf]
    %v4174 = vld [vmem:[#allocation13 + $0x2dc] sm:$0xff]
    %v4175 = vld [vmem:[#allocation13 + $0x2e4] sm:$0xf]
    %v4176 = vld [vmem:[#allocation13 + $0x2e8] sm:$0xff]
    %v4177 = vld [vmem:[#allocation13 + $0x2f0] sm:$0xf]
    %v4178 = vld [vmem:[#allocation13 + $0x2f4] sm:$0xff]
    %v4179 = vld [vmem:[#allocation13 + $0x2fc] sm:$0xf]
    %v4180 = vld [vmem:[#allocation13 + $0x300] sm:$0xff]
    %v4181 = vld [vmem:[#allocation13 + $0x308] sm:$0xf]
    %v4182 = vld [vmem:[#allocation13 + $0x30c] sm:$0xff]
    %v4183 = vld [vmem:[#allocation13 + $0x314] sm:$0xf]
    %v4184 = vld [vmem:[#allocation13 + $0x318] sm:$0xff]
    %v4185 = vld [vmem:[#allocation13 + $0x320] sm:$0xf]
    %v4186 = vld [vmem:[#allocation13 + $0x324] sm:$0xff]
    %v4187 = vld [vmem:[#allocation13 + $0x32c] sm:$0xf]
    %v4188 = vld [vmem:[#allocation13 + $0x330] sm:$0xff]
    %v4189 = vld [vmem:[#allocation13 + $0x338] sm:$0xf]
    %v4190 = vld [vmem:[#allocation13 + $0x33c] sm:$0xff]
    %v4191 = vld [vmem:[#allocation13 + $0x344] sm:$0xf]
    %v4192 = vld [vmem:[#allocation13 + $0x348] sm:$0xff]
    %v4193 = vld [vmem:[#allocation13 + $0x350] sm:$0xf]
    %v4194 = vld [vmem:[#allocation13 + $0x354] sm:$0xff]
    %v4195 = vld [vmem:[#allocation13 + $0x35c] sm:$0xf]
    %v4196 = vld [vmem:[#allocation13 + $0x360] sm:$0xff]
    %v4197 = vld [vmem:[#allocation13 + $0x368] sm:$0xf]
    %v4198 = vld [vmem:[#allocation13 + $0x36c] sm:$0xff]
    %v4199 = vld [vmem:[#allocation13 + $0x374] sm:$0xf]
    %v4200 = vld [vmem:[#allocation13 + $0x378] sm:$0xff]
    %v4201 = vld [vmem:[#allocation13 + $0x380] sm:$0xf]
    %v4202 = vld [vmem:[#allocation13 + $0x384] sm:$0xff]
    %v4203 = vld [vmem:[#allocation13 + $0x38c] sm:$0xf]
    %v4204 = vld [vmem:[#allocation13 + $0x390] sm:$0xff]
    %v4205 = vld [vmem:[#allocation13 + $0x398] sm:$0xf]
    %v4206 = vld [vmem:[#allocation13 + $0x39c] sm:$0xff]
    %v4207 = vld [vmem:[#allocation13 + $0x3a4] sm:$0xf]
    %v4208 = vld [vmem:[#allocation13 + $0x3a8] sm:$0xff]
    %v4209 = vld [vmem:[#allocation13 + $0x3b0] sm:$0xf]
    %v4210 = vld [vmem:[#allocation13 + $0x3b4] sm:$0xff]
    %v4211 = vld [vmem:[#allocation13 + $0x3bc] sm:$0xf]
    %v4212 = vld [vmem:[#allocation13 + $0x3c0] sm:$0xff]
    %v4213 = vld [vmem:[#allocation13 + $0x3c8] sm:$0xf]
    %v4214 = vld [vmem:[#allocation13 + $0x3cc] sm:$0xff]
    %v4215 = vld [vmem:[#allocation13 + $0x3d4] sm:$0xf]
    %v4216 = vld [vmem:[#allocation13 + $0x3d8] sm:$0xff]
    %v4217 = vld [vmem:[#allocation13 + $0x3e0] sm:$0xf]
    %v4218 = vld [vmem:[#allocation13 + $0x3e4] sm:$0xff]
    %v4219 = vld [vmem:[#allocation13 + $0x3ec] sm:$0xf]
    %v4220 = vld [vmem:[#allocation13 + $0x3f0] sm:$0xff]
    %v4221 = vld [vmem:[#allocation13 + $0x3f8] sm:$0xf]
    %v4222 = vld [vmem:[#allocation13 + $0x3fc] sm:$0xff]
    %v4223 = vld [vmem:[#allocation13 + $0x404] sm:$0xf]
    %v4224 = vld [vmem:[#allocation13 + $0x408] sm:$0xff]
    %v4225 = vld [vmem:[#allocation13 + $0x410] sm:$0xf]
    %v4226 = vld [vmem:[#allocation13 + $0x414] sm:$0xff]
    %v4227 = vld [vmem:[#allocation13 + $0x41c] sm:$0xf]
    %v4228 = vld [vmem:[#allocation13 + $0x420] sm:$0xff]
    %v4229 = vld [vmem:[#allocation13 + $0x428] sm:$0xf]
    %v4230 = vld [vmem:[#allocation13 + $0x42c] sm:$0xff]
    %v4231 = vld [vmem:[#allocation13 + $0x434] sm:$0xf]
    %v4232 = vld [vmem:[#allocation13 + $0x438] sm:$0xff]
    %v4233 = vld [vmem:[#allocation13 + $0x440] sm:$0xf]
    %v4234 = vld [vmem:[#allocation13 + $0x444] sm:$0xff]
    %v4235 = vld [vmem:[#allocation13 + $0x44c] sm:$0xf]
    %v4236 = vld [vmem:[#allocation13 + $0x450] sm:$0xff]
    %v4237 = vld [vmem:[#allocation13 + $0x458] sm:$0xf]
    %v4238 = vld [vmem:[#allocation13 + $0x45c] sm:$0xff]
    %v4239 = vld [vmem:[#allocation13 + $0x464] sm:$0xf]
    %v4240 = vld [vmem:[#allocation13 + $0x468] sm:$0xff]
    %v4241 = vld [vmem:[#allocation13 + $0x470] sm:$0xf]
    %v4242 = vld [vmem:[#allocation13 + $0x474] sm:$0xff]
    %v4243 = vld [vmem:[#allocation13 + $0x47c] sm:$0xf]
    %v4244 = vld [vmem:[#allocation13 + $0x480] sm:$0xff]
    %v4245 = vld [vmem:[#allocation13 + $0x488] sm:$0xf]
    %v4246 = vld [vmem:[#allocation13 + $0x48c] sm:$0xff]
    %v4247 = vld [vmem:[#allocation13 + $0x494] sm:$0xf]
    %v4248 = vld [vmem:[#allocation13 + $0x498] sm:$0xff]
    %v4249 = vld [vmem:[#allocation13 + $0x4a0] sm:$0xf]
    %v4250 = vld [vmem:[#allocation13 + $0x4a4] sm:$0xff]
    %v4251 = vld [vmem:[#allocation13 + $0x4ac] sm:$0xf]
    %v4252 = vld [vmem:[#allocation13 + $0x4b0] sm:$0xff]
    %v4253 = vld [vmem:[#allocation13 + $0x4b8] sm:$0xf]
    %v4254 = vld [vmem:[#allocation13 + $0x4bc] sm:$0xff]
    %v4255 = vld [vmem:[#allocation13 + $0x4c4] sm:$0xf]
    %v4256 = vld [vmem:[#allocation13 + $0x4c8] sm:$0xff]
    %v4257 = vld [vmem:[#allocation13 + $0x4d0] sm:$0xf]
    %v4258 = vld [vmem:[#allocation13 + $0x4d4] sm:$0xff]
    %v4259 = vld [vmem:[#allocation13 + $0x4dc] sm:$0xf]
    %v4260 = vld [vmem:[#allocation13 + $0x4e0] sm:$0xff]
    %v4261 = vld [vmem:[#allocation13 + $0x4e8] sm:$0xf]
    %v4262 = vld [vmem:[#allocation13 + $0x4ec] sm:$0xff]
    %v4263 = vld [vmem:[#allocation13 + $0x4f4] sm:$0xf]
    %v4264 = vld [vmem:[#allocation13 + $0x4f8] sm:$0xff]
    %v4265 = vld [vmem:[#allocation13 + $0x500] sm:$0xf]
    %v4266 = vld [vmem:[#allocation13 + $0x504] sm:$0xff]
    %v4267 = vld [vmem:[#allocation13 + $0x50c] sm:$0xf]
    %v4268 = vld [vmem:[#allocation13 + $0x510] sm:$0xff]
    %v4269 = vld [vmem:[#allocation13 + $0x518] sm:$0xf]
    %v4270 = vld [vmem:[#allocation13 + $0x51c] sm:$0xff]
    %v4271 = vld [vmem:[#allocation13 + $0x524] sm:$0xf]
    %v4272 = vld [vmem:[#allocation13 + $0x528] sm:$0xff]
    %v4273 = vld [vmem:[#allocation13 + $0x530] sm:$0xf]
    %v4274 = vld [vmem:[#allocation13 + $0x534] sm:$0xff]
    %v4275 = vld [vmem:[#allocation13 + $0x53c] sm:$0xf]
    %v4276 = vld [vmem:[#allocation13 + $0x540] sm:$0xff]
    %v4277 = vld [vmem:[#allocation13 + $0x548] sm:$0xf]
    %v4278 = vld [vmem:[#allocation13 + $0x54c] sm:$0xff]
    %v4279 = vld [vmem:[#allocation13 + $0x554] sm:$0xf]
    %v4280 = vld [vmem:[#allocation13 + $0x558] sm:$0xff]
    %v4281 = vld [vmem:[#allocation13 + $0x560] sm:$0xf]
    %v4282 = vld [vmem:[#allocation13 + $0x564] sm:$0xff]
    %v4283 = vld [vmem:[#allocation13 + $0x56c] sm:$0xf]
    %v4284 = vld [vmem:[#allocation13 + $0x570] sm:$0xff]
    %v4285 = vld [vmem:[#allocation13 + $0x578] sm:$0xf]
    %v4286 = vld [vmem:[#allocation13 + $0x57c] sm:$0xff]
    %v4287 = vld [vmem:[#allocation13 + $0x584] sm:$0xf]
    %v4288 = vld [vmem:[#allocation13 + $0x588] sm:$0xff]
    %v4289 = vld [vmem:[#allocation13 + $0x590] sm:$0xf]
    %v4290 = vld [vmem:[#allocation13 + $0x594] sm:$0xff]
    %v4291 = vld [vmem:[#allocation13 + $0x59c] sm:$0xf]
    %v4292 = vld [vmem:[#allocation13 + $0x5a0] sm:$0xff]
    %v4293 = vld [vmem:[#allocation13 + $0x5a8] sm:$0xf]
    %v4294 = vld [vmem:[#allocation13 + $0x5ac] sm:$0xff]
    %v4295 = vld [vmem:[#allocation13 + $0x5b4] sm:$0xf]
    %v4296 = vld [vmem:[#allocation13 + $0x5b8] sm:$0xff]
    %v4297 = vld [vmem:[#allocation13 + $0x5c0] sm:$0xf]
    %v4298 = vld [vmem:[#allocation13 + $0x5c4] sm:$0xff]
    %v4299 = vld [vmem:[#allocation13 + $0x5cc] sm:$0xf]
    %v4300 = vld [vmem:[#allocation13 + $0x5d0] sm:$0xff]
    %v4301 = vld [vmem:[#allocation13 + $0x5d8] sm:$0xf]
    %v4302 = vld [vmem:[#allocation13 + $0x5dc] sm:$0xff]
    %v4303 = vld [vmem:[#allocation13 + $0x5e4] sm:$0xf]
    %v4304 = vld [vmem:[#allocation13 + $0x5e8] sm:$0xff]
    %v4305 = vld [vmem:[#allocation13 + $0x5f0] sm:$0xf]
    %v4306 = vld [vmem:[#allocation13 + $0x5f4] sm:$0xff]
    %v4307 = vld [vmem:[#allocation13 + $0x5fc] sm:$0xf]
    %v4308 = vld [vmem:[#allocation13 + $0x600] sm:$0xff]
    %v4309 = vld [vmem:[#allocation13 + $0x608] sm:$0xf]
    %v4310 = vld [vmem:[#allocation13 + $0x60c] sm:$0xff]
    %v4311 = vld [vmem:[#allocation13 + $0x614] sm:$0xf]
    %v4312 = vld [vmem:[#allocation13 + $0x618] sm:$0xff]
    %v4313 = vld [vmem:[#allocation13 + $0x620] sm:$0xf]
    %v4314 = vld [vmem:[#allocation13 + $0x624] sm:$0xff]
    %v4315 = vld [vmem:[#allocation13 + $0x62c] sm:$0xf]
    %v4316 = vld [vmem:[#allocation13 + $0x630] sm:$0xff]
    %v4317 = vld [vmem:[#allocation13 + $0x638] sm:$0xf]
    %v4318 = vld [vmem:[#allocation13 + $0x63c] sm:$0xff]
    %v4319 = vld [vmem:[#allocation13 + $0x644] sm:$0xf]
    %v4320 = vld [vmem:[#allocation13 + $0x648] sm:$0xff]
    %v4321 = vld [vmem:[#allocation13 + $0x650] sm:$0xf]
    %v4322 = vld [vmem:[#allocation13 + $0x654] sm:$0xff]
    %v4323 = vld [vmem:[#allocation13 + $0x65c] sm:$0xf]
    %v4324 = vld [vmem:[#allocation13 + $0x660] sm:$0xff]
    %v4325 = vld [vmem:[#allocation13 + $0x668] sm:$0xf]
    %v4326 = vld [vmem:[#allocation13 + $0x66c] sm:$0xff]
    %v4327 = vld [vmem:[#allocation13 + $0x674] sm:$0xf]
    %v4328 = vld [vmem:[#allocation13 + $0x678] sm:$0xff]
    %v4329 = vld [vmem:[#allocation13 + $0x680] sm:$0xf]
    %v4330 = vld [vmem:[#allocation13 + $0x684] sm:$0xff]
    %v4331 = vld [vmem:[#allocation13 + $0x68c] sm:$0xf]
    %v4332 = vld [vmem:[#allocation13 + $0x690] sm:$0xff]
    %v4333 = vld [vmem:[#allocation13 + $0x698] sm:$0xf]
    %v4334 = vld [vmem:[#allocation13 + $0x69c] sm:$0xff]
    %v4335 = vld [vmem:[#allocation13 + $0x6a4] sm:$0xf]
    %v4336 = vld [vmem:[#allocation13 + $0x6a8] sm:$0xff]
    %v4337 = vld [vmem:[#allocation13 + $0x6b0] sm:$0xf]
    %v4338 = vld [vmem:[#allocation13 + $0x6b4] sm:$0xff]
    %v4339 = vld [vmem:[#allocation13 + $0x6bc] sm:$0xf]
    %v4340 = vld [vmem:[#allocation13 + $0x6c0] sm:$0xff]
    %v4341 = vld [vmem:[#allocation13 + $0x6c8] sm:$0xf]
    %v4342 = vld [vmem:[#allocation13 + $0x6cc] sm:$0xff]
    %v4343 = vld [vmem:[#allocation13 + $0x6d4] sm:$0xf]
    %v4344 = vld [vmem:[#allocation13 + $0x6d8] sm:$0xff]
    %v4345 = vld [vmem:[#allocation13 + $0x6e0] sm:$0xf]
    %v4346 = vld [vmem:[#allocation13 + $0x6e4] sm:$0xff]
    %v4347 = vld [vmem:[#allocation13 + $0x6ec] sm:$0xf]
    %v4348 = vld [vmem:[#allocation13 + $0x6f0] sm:$0xff]
    %v4349 = vld [vmem:[#allocation13 + $0x6f8] sm:$0xf]
    %v4350 = vld [vmem:[#allocation13 + $0x6fc] sm:$0xff]
    %v4351 = vld [vmem:[#allocation13 + $0x704] sm:$0xf]
    %v4352 = vld [vmem:[#allocation13 + $0x708] sm:$0xff]
    %v4353 = vld [vmem:[#allocation13 + $0x710] sm:$0xf]
    %v4354 = vld [vmem:[#allocation13 + $0x714] sm:$0xff]
    %v4355 = vld [vmem:[#allocation13 + $0x71c] sm:$0xf]
    %v4356 = vld [vmem:[#allocation13 + $0x720] sm:$0xff]
    %v4357 = vld [vmem:[#allocation13 + $0x728] sm:$0xf]
    %v4358 = vld [vmem:[#allocation13 + $0x72c] sm:$0xff]
    %v4359 = vld [vmem:[#allocation13 + $0x734] sm:$0xf]
    %v4360 = vld [vmem:[#allocation13 + $0x738] sm:$0xff]
    %v4361 = vld [vmem:[#allocation13 + $0x740] sm:$0xf]
    %v4362 = vld [vmem:[#allocation13 + $0x744] sm:$0xff]
    %v4363 = vld [vmem:[#allocation13 + $0x74c] sm:$0xf]
    %v4364 = vld [vmem:[#allocation13 + $0x750] sm:$0xff]
    %v4365 = vld [vmem:[#allocation13 + $0x758] sm:$0xf]
    %v4366 = vld [vmem:[#allocation13 + $0x75c] sm:$0xff]
    %v4367 = vld [vmem:[#allocation13 + $0x764] sm:$0xf]
    %v4368 = vld [vmem:[#allocation13 + $0x768] sm:$0xff]
    %v4369 = vld [vmem:[#allocation13 + $0x770] sm:$0xf]
    %v4370 = vld [vmem:[#allocation13 + $0x774] sm:$0xff]
    %v4371 = vld [vmem:[#allocation13 + $0x77c] sm:$0xf]
    %v4372 = vld [vmem:[%s10] sm:$0x7]
    %v4374 = vlaneseq
    %v4375 = vshrl.u32 %v4374, 7
    %v4376 = vsub.s32 0, %v4375
    %v4377 = vrot.slane %v4372, %v4376
    %v4378 = vlaneseq
    %v4379 = vshrl.u32 %v4378, 7
    %v4380 = vsub.s32 1, %v4379
    %v4381 = vrot.slane %v4372, %v4380
    %v4382 = vlaneseq
    %v4383 = vshrl.u32 %v4382, 7
    %v4384 = vsub.s32 2, %v4383
    %v4385 = vrot.slane %v4372, %v4384
    %v4709 = vunpack.c.l.b16 %v4052
    %v4710 = vunpack.c.h.b16 %v4052
    %v4711 = vunpack.c.l.b16 %v4053
    %v4712 = vunpack.c.l.b16 %v4054
    %v4713 = vunpack.c.h.b16 %v4054
    %v4714 = vunpack.c.l.b16 %v4055
    %v4715 = vunpack.c.l.b16 %v4056
    %v4716 = vunpack.c.h.b16 %v4056
    %v4717 = vunpack.c.l.b16 %v4057
    %v4718 = vunpack.c.l.b16 %v4058
    %v4719 = vunpack.c.h.b16 %v4058
    %v4720 = vunpack.c.l.b16 %v4059
    %v4721 = vunpack.c.l.b16 %v4060
    %v4722 = vunpack.c.h.b16 %v4060
    %v4723 = vunpack.c.l.b16 %v4061
    %v4724 = vunpack.c.l.b16 %v4062
    %v4725 = vunpack.c.h.b16 %v4062
    %v4726 = vunpack.c.l.b16 %v4063
    %v4727 = vunpack.c.l.b16 %v4064
    %v4728 = vunpack.c.h.b16 %v4064
    %v4729 = vunpack.c.l.b16 %v4065
    %v4730 = vunpack.c.l.b16 %v4066
    %v4731 = vunpack.c.h.b16 %v4066
    %v4732 = vunpack.c.l.b16 %v4067
    %v4733 = vunpack.c.l.b16 %v4068
    %v4734 = vunpack.c.h.b16 %v4068
    %v4735 = vunpack.c.l.b16 %v4069
    %v4736 = vunpack.c.l.b16 %v4070
    %v4737 = vunpack.c.h.b16 %v4070
    %v4738 = vunpack.c.l.b16 %v4071
    %v4739 = vunpack.c.l.b16 %v4072
    %v4740 = vunpack.c.h.b16 %v4072
    %v4741 = vunpack.c.l.b16 %v4073
    %v4742 = vunpack.c.l.b16 %v4074
    %v4743 = vunpack.c.h.b16 %v4074
    %v4744 = vunpack.c.l.b16 %v4075
    %v4745 = vunpack.c.l.b16 %v4076
    %v4746 = vunpack.c.h.b16 %v4076
    %v4747 = vunpack.c.l.b16 %v4077
    %v4748 = vunpack.c.l.b16 %v4078
    %v4749 = vunpack.c.h.b16 %v4078
    %v4750 = vunpack.c.l.b16 %v4079
    %v4751 = vunpack.c.l.b16 %v4080
    %v4752 = vunpack.c.h.b16 %v4080
    %v4753 = vunpack.c.l.b16 %v4081
    %v4754 = vunpack.c.l.b16 %v4082
    %v4755 = vunpack.c.h.b16 %v4082
    %v4756 = vunpack.c.l.b16 %v4083
    %v4757 = vunpack.c.l.b16 %v4084
    %v4758 = vunpack.c.h.b16 %v4084
    %v4759 = vunpack.c.l.b16 %v4085
    %v4760 = vunpack.c.l.b16 %v4086
    %v4761 = vunpack.c.h.b16 %v4086
    %v4762 = vunpack.c.l.b16 %v4087
    %v4763 = vunpack.c.l.b16 %v4088
    %v4764 = vunpack.c.h.b16 %v4088
    %v4765 = vunpack.c.l.b16 %v4089
    %v4766 = vunpack.c.l.b16 %v4090
    %v4767 = vunpack.c.h.b16 %v4090
    %v4768 = vunpack.c.l.b16 %v4091
    %v4769 = vunpack.c.l.b16 %v4092
    %v4770 = vunpack.c.h.b16 %v4092
    %v4771 = vunpack.c.l.b16 %v4093
    %v4772 = vunpack.c.l.b16 %v4094
    %v4773 = vunpack.c.h.b16 %v4094
    %v4774 = vunpack.c.l.b16 %v4095
    %v4775 = vunpack.c.l.b16 %v4096
    %v4776 = vunpack.c.h.b16 %v4096
    %v4777 = vunpack.c.l.b16 %v4097
    %v4778 = vunpack.c.l.b16 %v4098
    %v4779 = vunpack.c.h.b16 %v4098
    %v4780 = vunpack.c.l.b16 %v4099
    %v4781 = vunpack.c.l.b16 %v4100
    %v4782 = vunpack.c.h.b16 %v4100
    %v4783 = vunpack.c.l.b16 %v4101
    %v4784 = vunpack.c.l.b16 %v4102
    %v4785 = vunpack.c.h.b16 %v4102
    %v4786 = vunpack.c.l.b16 %v4103
    %v4787 = vunpack.c.l.b16 %v4104
    %v4788 = vunpack.c.h.b16 %v4104
    %v4789 = vunpack.c.l.b16 %v4105
    %v4790 = vunpack.c.l.b16 %v4106
    %v4791 = vunpack.c.h.b16 %v4106
    %v4792 = vunpack.c.l.b16 %v4107
    %v4793 = vunpack.c.l.b16 %v4108
    %v4794 = vunpack.c.h.b16 %v4108
    %v4795 = vunpack.c.l.b16 %v4109
    %v4796 = vunpack.c.l.b16 %v4110
    %v4797 = vunpack.c.h.b16 %v4110
    %v4798 = vunpack.c.l.b16 %v4111
    %v4799 = vunpack.c.l.b16 %v4112
    %v4800 = vunpack.c.h.b16 %v4112
    %v4801 = vunpack.c.l.b16 %v4113
    %v4802 = vunpack.c.l.b16 %v4114
    %v4803 = vunpack.c.h.b16 %v4114
    %v4804 = vunpack.c.l.b16 %v4115
    %v4805 = vunpack.c.l.b16 %v4116
    %v4806 = vunpack.c.h.b16 %v4116
    %v4807 = vunpack.c.l.b16 %v4117
    %v4808 = vunpack.c.l.b16 %v4118
    %v4809 = vunpack.c.h.b16 %v4118
    %v4810 = vunpack.c.l.b16 %v4119
    %v4811 = vunpack.c.l.b16 %v4120
    %v4812 = vunpack.c.h.b16 %v4120
    %v4813 = vunpack.c.l.b16 %v4121
    %v4814 = vunpack.c.l.b16 %v4122
    %v4815 = vunpack.c.h.b16 %v4122
    %v4816 = vunpack.c.l.b16 %v4123
    %v4817 = vunpack.c.l.b16 %v4124
    %v4818 = vunpack.c.h.b16 %v4124
    %v4819 = vunpack.c.l.b16 %v4125
    %v4820 = vunpack.c.l.b16 %v4126
    %v4821 = vunpack.c.h.b16 %v4126
    %v4822 = vunpack.c.l.b16 %v4127
    %v4823 = vunpack.c.l.b16 %v4128
    %v4824 = vunpack.c.h.b16 %v4128
    %v4825 = vunpack.c.l.b16 %v4129
    %v4826 = vunpack.c.l.b16 %v4130
    %v4827 = vunpack.c.h.b16 %v4130
    %v4828 = vunpack.c.l.b16 %v4131
    %v4829 = vunpack.c.l.b16 %v4132
    %v4830 = vunpack.c.h.b16 %v4132
    %v4831 = vunpack.c.l.b16 %v4133
    %v4832 = vunpack.c.l.b16 %v4134
    %v4833 = vunpack.c.h.b16 %v4134
    %v4834 = vunpack.c.l.b16 %v4135
    %v4835 = vunpack.c.l.b16 %v4136
    %v4836 = vunpack.c.h.b16 %v4136
    %v4837 = vunpack.c.l.b16 %v4137
    %v4838 = vunpack.c.l.b16 %v4138
    %v4839 = vunpack.c.h.b16 %v4138
    %v4840 = vunpack.c.l.b16 %v4139
    %v4841 = vunpack.c.l.b16 %v4140
    %v4842 = vunpack.c.h.b16 %v4140
    %v4843 = vunpack.c.l.b16 %v4141
    %v4844 = vunpack.c.l.b16 %v4142
    %v4845 = vunpack.c.h.b16 %v4142
    %v4846 = vunpack.c.l.b16 %v4143
    %v4847 = vunpack.c.l.b16 %v4144
    %v4848 = vunpack.c.h.b16 %v4144
    %v4849 = vunpack.c.l.b16 %v4145
    %v4850 = vunpack.c.l.b16 %v4146
    %v4851 = vunpack.c.h.b16 %v4146
    %v4852 = vunpack.c.l.b16 %v4147
    %v4853 = vunpack.c.l.b16 %v4148
    %v4854 = vunpack.c.h.b16 %v4148
    %v4855 = vunpack.c.l.b16 %v4149
    %v4856 = vunpack.c.l.b16 %v4150
    %v4857 = vunpack.c.h.b16 %v4150
    %v4858 = vunpack.c.l.b16 %v4151
    %v4859 = vunpack.c.l.b16 %v4152
    %v4860 = vunpack.c.h.b16 %v4152
    %v4861 = vunpack.c.l.b16 %v4153
    %v4862 = vunpack.c.l.b16 %v4154
    %v4863 = vunpack.c.h.b16 %v4154
    %v4864 = vunpack.c.l.b16 %v4155
    %v4865 = vunpack.c.l.b16 %v4156
    %v4866 = vunpack.c.h.b16 %v4156
    %v4867 = vunpack.c.l.b16 %v4157
    %v4868 = vunpack.c.l.b16 %v4158
    %v4869 = vunpack.c.h.b16 %v4158
    %v4870 = vunpack.c.l.b16 %v4159
    %v4871 = vunpack.c.l.b16 %v4160
    %v4872 = vunpack.c.h.b16 %v4160
    %v4873 = vunpack.c.l.b16 %v4161
    %v4874 = vunpack.c.l.b16 %v4162
    %v4875 = vunpack.c.h.b16 %v4162
    %v4876 = vunpack.c.l.b16 %v4163
    %v4877 = vunpack.c.l.b16 %v4164
    %v4878 = vunpack.c.h.b16 %v4164
    %v4879 = vunpack.c.l.b16 %v4165
    %v4880 = vunpack.c.l.b16 %v4166
    %v4881 = vunpack.c.h.b16 %v4166
    %v4882 = vunpack.c.l.b16 %v4167
    %v4883 = vunpack.c.l.b16 %v4168
    %v4884 = vunpack.c.h.b16 %v4168
    %v4885 = vunpack.c.l.b16 %v4169
    %v4886 = vunpack.c.l.b16 %v4170
    %v4887 = vunpack.c.h.b16 %v4170
    %v4888 = vunpack.c.l.b16 %v4171
    %v4889 = vunpack.c.l.b16 %v4172
    %v4890 = vunpack.c.h.b16 %v4172
    %v4891 = vunpack.c.l.b16 %v4173
    %v4892 = vunpack.c.l.b16 %v4174
    %v4893 = vunpack.c.h.b16 %v4174
    %v4894 = vunpack.c.l.b16 %v4175
    %v4895 = vunpack.c.l.b16 %v4176
    %v4896 = vunpack.c.h.b16 %v4176
    %v4897 = vunpack.c.l.b16 %v4177
    %v4898 = vunpack.c.l.b16 %v4178
    %v4899 = vunpack.c.h.b16 %v4178
    %v4900 = vunpack.c.l.b16 %v4179
    %v4901 = vunpack.c.l.b16 %v4180
    %v4902 = vunpack.c.h.b16 %v4180
    %v4903 = vunpack.c.l.b16 %v4181
    %v4904 = vunpack.c.l.b16 %v4182
    %v4905 = vunpack.c.h.b16 %v4182
    %v4906 = vunpack.c.l.b16 %v4183
    %v4907 = vunpack.c.l.b16 %v4184
    %v4908 = vunpack.c.h.b16 %v4184
    %v4909 = vunpack.c.l.b16 %v4185
    %v4910 = vunpack.c.l.b16 %v4186
    %v4911 = vunpack.c.h.b16 %v4186
    %v4912 = vunpack.c.l.b16 %v4187
    %v4913 = vunpack.c.l.b16 %v4188
    %v4914 = vunpack.c.h.b16 %v4188
    %v4915 = vunpack.c.l.b16 %v4189
    %v4916 = vunpack.c.l.b16 %v4190
    %v4917 = vunpack.c.h.b16 %v4190
    %v4918 = vunpack.c.l.b16 %v4191
    %v4919 = vunpack.c.l.b16 %v4192
    %v4920 = vunpack.c.h.b16 %v4192
    %v4921 = vunpack.c.l.b16 %v4193
    %v4922 = vunpack.c.l.b16 %v4194
    %v4923 = vunpack.c.h.b16 %v4194
    %v4924 = vunpack.c.l.b16 %v4195
    %v4925 = vunpack.c.l.b16 %v4196
    %v4926 = vunpack.c.h.b16 %v4196
    %v4927 = vunpack.c.l.b16 %v4197
    %v4928 = vunpack.c.l.b16 %v4198
    %v4929 = vunpack.c.h.b16 %v4198
    %v4930 = vunpack.c.l.b16 %v4199
    %v4931 = vunpack.c.l.b16 %v4200
    %v4932 = vunpack.c.h.b16 %v4200
    %v4933 = vunpack.c.l.b16 %v4201
    %v4934 = vunpack.c.l.b16 %v4202
    %v4935 = vunpack.c.h.b16 %v4202
    %v4936 = vunpack.c.l.b16 %v4203
    %v4937 = vunpack.c.l.b16 %v4204
    %v4938 = vunpack.c.h.b16 %v4204
    %v4939 = vunpack.c.l.b16 %v4205
    %v4940 = vunpack.c.l.b16 %v4206
    %v4941 = vunpack.c.h.b16 %v4206
    %v4942 = vunpack.c.l.b16 %v4207
    %v4943 = vunpack.c.l.b16 %v4208
    %v4944 = vunpack.c.h.b16 %v4208
    %v4945 = vunpack.c.l.b16 %v4209
    %v4946 = vunpack.c.l.b16 %v4210
    %v4947 = vunpack.c.h.b16 %v4210
    %v4948 = vunpack.c.l.b16 %v4211
    %v4949 = vunpack.c.l.b16 %v4212
    %v4950 = vunpack.c.h.b16 %v4212
    %v4951 = vunpack.c.l.b16 %v4213
    %v4952 = vunpack.c.l.b16 %v4214
    %v4953 = vunpack.c.h.b16 %v4214
    %v4954 = vunpack.c.l.b16 %v4215
    %v4955 = vunpack.c.l.b16 %v4216
    %v4956 = vunpack.c.h.b16 %v4216
    %v4957 = vunpack.c.l.b16 %v4217
    %v4958 = vunpack.c.l.b16 %v4218
    %v4959 = vunpack.c.h.b16 %v4218
    %v4960 = vunpack.c.l.b16 %v4219
    %v4961 = vunpack.c.l.b16 %v4220
    %v4962 = vunpack.c.h.b16 %v4220
    %v4963 = vunpack.c.l.b16 %v4221
    %v4964 = vunpack.c.l.b16 %v4222
    %v4965 = vunpack.c.h.b16 %v4222
    %v4966 = vunpack.c.l.b16 %v4223
    %v4967 = vunpack.c.l.b16 %v4224
    %v4968 = vunpack.c.h.b16 %v4224
    %v4969 = vunpack.c.l.b16 %v4225
    %v4970 = vunpack.c.l.b16 %v4226
    %v4971 = vunpack.c.h.b16 %v4226
    %v4972 = vunpack.c.l.b16 %v4227
    %v4973 = vunpack.c.l.b16 %v4228
    %v4974 = vunpack.c.h.b16 %v4228
    %v4975 = vunpack.c.l.b16 %v4229
    %v4976 = vunpack.c.l.b16 %v4230
    %v4977 = vunpack.c.h.b16 %v4230
    %v4978 = vunpack.c.l.b16 %v4231
    %v4979 = vunpack.c.l.b16 %v4232
    %v4980 = vunpack.c.h.b16 %v4232
    %v4981 = vunpack.c.l.b16 %v4233
    %v4982 = vunpack.c.l.b16 %v4234
    %v4983 = vunpack.c.h.b16 %v4234
    %v4984 = vunpack.c.l.b16 %v4235
    %v4985 = vunpack.c.l.b16 %v4236
    %v4986 = vunpack.c.h.b16 %v4236
    %v4987 = vunpack.c.l.b16 %v4237
    %v4988 = vunpack.c.l.b16 %v4238
    %v4989 = vunpack.c.h.b16 %v4238
    %v4990 = vunpack.c.l.b16 %v4239
    %v4991 = vunpack.c.l.b16 %v4240
    %v4992 = vunpack.c.h.b16 %v4240
    %v4993 = vunpack.c.l.b16 %v4241
    %v4994 = vunpack.c.l.b16 %v4242
    %v4995 = vunpack.c.h.b16 %v4242
    %v4996 = vunpack.c.l.b16 %v4243
    %v4997 = vunpack.c.l.b16 %v4244
    %v4998 = vunpack.c.h.b16 %v4244
    %v4999 = vunpack.c.l.b16 %v4245
    %v5000 = vunpack.c.l.b16 %v4246
    %v5001 = vunpack.c.h.b16 %v4246
    %v5002 = vunpack.c.l.b16 %v4247
    %v5003 = vunpack.c.l.b16 %v4248
    %v5004 = vunpack.c.h.b16 %v4248
    %v5005 = vunpack.c.l.b16 %v4249
    %v5006 = vunpack.c.l.b16 %v4250
    %v5007 = vunpack.c.h.b16 %v4250
    %v5008 = vunpack.c.l.b16 %v4251
    %v5009 = vunpack.c.l.b16 %v4252
    %v5010 = vunpack.c.h.b16 %v4252
    %v5011 = vunpack.c.l.b16 %v4253
    %v5012 = vunpack.c.l.b16 %v4254
    %v5013 = vunpack.c.h.b16 %v4254
    %v5014 = vunpack.c.l.b16 %v4255
    %v5015 = vunpack.c.l.b16 %v4256
    %v5016 = vunpack.c.h.b16 %v4256
    %v5017 = vunpack.c.l.b16 %v4257
    %v5018 = vunpack.c.l.b16 %v4258
    %v5019 = vunpack.c.h.b16 %v4258
    %v5020 = vunpack.c.l.b16 %v4259
    %v5021 = vunpack.c.l.b16 %v4260
    %v5022 = vunpack.c.h.b16 %v4260
    %v5023 = vunpack.c.l.b16 %v4261
    %v5024 = vunpack.c.l.b16 %v4262
    %v5025 = vunpack.c.h.b16 %v4262
    %v5026 = vunpack.c.l.b16 %v4263
    %v5027 = vunpack.c.l.b16 %v4264
    %v5028 = vunpack.c.h.b16 %v4264
    %v5029 = vunpack.c.l.b16 %v4265
    %v5030 = vunpack.c.l.b16 %v4266
    %v5031 = vunpack.c.h.b16 %v4266
    %v5032 = vunpack.c.l.b16 %v4267
    %v5033 = vunpack.c.l.b16 %v4268
    %v5034 = vunpack.c.h.b16 %v4268
    %v5035 = vunpack.c.l.b16 %v4269
    %v5036 = vunpack.c.l.b16 %v4270
    %v5037 = vunpack.c.h.b16 %v4270
    %v5038 = vunpack.c.l.b16 %v4271
    %v5039 = vunpack.c.l.b16 %v4272
    %v5040 = vunpack.c.h.b16 %v4272
    %v5041 = vunpack.c.l.b16 %v4273
    %v5042 = vunpack.c.l.b16 %v4274
    %v5043 = vunpack.c.h.b16 %v4274
    %v5044 = vunpack.c.l.b16 %v4275
    %v5045 = vunpack.c.l.b16 %v4276
    %v5046 = vunpack.c.h.b16 %v4276
    %v5047 = vunpack.c.l.b16 %v4277
    %v5048 = vunpack.c.l.b16 %v4278
    %v5049 = vunpack.c.h.b16 %v4278
    %v5050 = vunpack.c.l.b16 %v4279
    %v5051 = vunpack.c.l.b16 %v4280
    %v5052 = vunpack.c.h.b16 %v4280
    %v5053 = vunpack.c.l.b16 %v4281
    %v5054 = vunpack.c.l.b16 %v4282
    %v5055 = vunpack.c.h.b16 %v4282
    %v5056 = vunpack.c.l.b16 %v4283
    %v5057 = vunpack.c.l.b16 %v4284
    %v5058 = vunpack.c.h.b16 %v4284
    %v5059 = vunpack.c.l.b16 %v4285
    %v5060 = vunpack.c.l.b16 %v4286
    %v5061 = vunpack.c.h.b16 %v4286
    %v5062 = vunpack.c.l.b16 %v4287
    %v5063 = vunpack.c.l.b16 %v4288
    %v5064 = vunpack.c.h.b16 %v4288
    %v5065 = vunpack.c.l.b16 %v4289
    %v5066 = vunpack.c.l.b16 %v4290
    %v5067 = vunpack.c.h.b16 %v4290
    %v5068 = vunpack.c.l.b16 %v4291
    %v5069 = vunpack.c.l.b16 %v4292
    %v5070 = vunpack.c.h.b16 %v4292
    %v5071 = vunpack.c.l.b16 %v4293
    %v5072 = vunpack.c.l.b16 %v4294
    %v5073 = vunpack.c.h.b16 %v4294
    %v5074 = vunpack.c.l.b16 %v4295
    %v5075 = vunpack.c.l.b16 %v4296
    %v5076 = vunpack.c.h.b16 %v4296
    %v5077 = vunpack.c.l.b16 %v4297
    %v5078 = vunpack.c.l.b16 %v4298
    %v5079 = vunpack.c.h.b16 %v4298
    %v5080 = vunpack.c.l.b16 %v4299
    %v5081 = vunpack.c.l.b16 %v4300
    %v5082 = vunpack.c.h.b16 %v4300
    %v5083 = vunpack.c.l.b16 %v4301
    %v5084 = vunpack.c.l.b16 %v4302
    %v5085 = vunpack.c.h.b16 %v4302
    %v5086 = vunpack.c.l.b16 %v4303
    %v5087 = vunpack.c.l.b16 %v4304
    %v5088 = vunpack.c.h.b16 %v4304
    %v5089 = vunpack.c.l.b16 %v4305
    %v5090 = vunpack.c.l.b16 %v4306
    %v5091 = vunpack.c.h.b16 %v4306
    %v5092 = vunpack.c.l.b16 %v4307
    %v5093 = vunpack.c.l.b16 %v4308
    %v5094 = vunpack.c.h.b16 %v4308
    %v5095 = vunpack.c.l.b16 %v4309
    %v5096 = vunpack.c.l.b16 %v4310
    %v5097 = vunpack.c.h.b16 %v4310
    %v5098 = vunpack.c.l.b16 %v4311
    %v5099 = vunpack.c.l.b16 %v4312
    %v5100 = vunpack.c.h.b16 %v4312
    %v5101 = vunpack.c.l.b16 %v4313
    %v5102 = vunpack.c.l.b16 %v4314
    %v5103 = vunpack.c.h.b16 %v4314
    %v5104 = vunpack.c.l.b16 %v4315
    %v5105 = vunpack.c.l.b16 %v4316
    %v5106 = vunpack.c.h.b16 %v4316
    %v5107 = vunpack.c.l.b16 %v4317
    %v5108 = vunpack.c.l.b16 %v4318
    %v5109 = vunpack.c.h.b16 %v4318
    %v5110 = vunpack.c.l.b16 %v4319
    %v5111 = vunpack.c.l.b16 %v4320
    %v5112 = vunpack.c.h.b16 %v4320
    %v5113 = vunpack.c.l.b16 %v4321
    %v5114 = vunpack.c.l.b16 %v4322
    %v5115 = vunpack.c.h.b16 %v4322
    %v5116 = vunpack.c.l.b16 %v4323
    %v5117 = vunpack.c.l.b16 %v4324
    %v5118 = vunpack.c.h.b16 %v4324
    %v5119 = vunpack.c.l.b16 %v4325
    %v5120 = vunpack.c.l.b16 %v4326
    %v5121 = vunpack.c.h.b16 %v4326
    %v5122 = vunpack.c.l.b16 %v4327
    %v5123 = vunpack.c.l.b16 %v4328
    %v5124 = vunpack.c.h.b16 %v4328
    %v5125 = vunpack.c.l.b16 %v4329
    %v5126 = vunpack.c.l.b16 %v4330
    %v5127 = vunpack.c.h.b16 %v4330
    %v5128 = vunpack.c.l.b16 %v4331
    %v5129 = vunpack.c.l.b16 %v4332
    %v5130 = vunpack.c.h.b16 %v4332
    %v5131 = vunpack.c.l.b16 %v4333
    %v5132 = vunpack.c.l.b16 %v4334
    %v5133 = vunpack.c.h.b16 %v4334
    %v5134 = vunpack.c.l.b16 %v4335
    %v5135 = vunpack.c.l.b16 %v4336
    %v5136 = vunpack.c.h.b16 %v4336
    %v5137 = vunpack.c.l.b16 %v4337
    %v5138 = vunpack.c.l.b16 %v4338
    %v5139 = vunpack.c.h.b16 %v4338
    %v5140 = vunpack.c.l.b16 %v4339
    %v5141 = vunpack.c.l.b16 %v4340
    %v5142 = vunpack.c.h.b16 %v4340
    %v5143 = vunpack.c.l.b16 %v4341
    %v5144 = vunpack.c.l.b16 %v4342
    %v5145 = vunpack.c.h.b16 %v4342
    %v5146 = vunpack.c.l.b16 %v4343
    %v5147 = vunpack.c.l.b16 %v4344
    %v5148 = vunpack.c.h.b16 %v4344
    %v5149 = vunpack.c.l.b16 %v4345
    %v5150 = vunpack.c.l.b16 %v4346
    %v5151 = vunpack.c.h.b16 %v4346
    %v5152 = vunpack.c.l.b16 %v4347
    %v5153 = vunpack.c.l.b16 %v4348
    %v5154 = vunpack.c.h.b16 %v4348
    %v5155 = vunpack.c.l.b16 %v4349
    %v5156 = vunpack.c.l.b16 %v4350
    %v5157 = vunpack.c.h.b16 %v4350
    %v5158 = vunpack.c.l.b16 %v4351
    %v5159 = vunpack.c.l.b16 %v4352
    %v5160 = vunpack.c.h.b16 %v4352
    %v5161 = vunpack.c.l.b16 %v4353
    %v5162 = vunpack.c.l.b16 %v4354
    %v5163 = vunpack.c.h.b16 %v4354
    %v5164 = vunpack.c.l.b16 %v4355
    %v5165 = vunpack.c.l.b16 %v4356
    %v5166 = vunpack.c.h.b16 %v4356
    %v5167 = vunpack.c.l.b16 %v4357
    %v5168 = vunpack.c.l.b16 %v4358
    %v5169 = vunpack.c.h.b16 %v4358
    %v5170 = vunpack.c.l.b16 %v4359
    %v5171 = vunpack.c.l.b16 %v4360
    %v5172 = vunpack.c.h.b16 %v4360
    %v5173 = vunpack.c.l.b16 %v4361
    %v5174 = vunpack.c.l.b16 %v4362
    %v5175 = vunpack.c.h.b16 %v4362
    %v5176 = vunpack.c.l.b16 %v4363
    %v5177 = vunpack.c.l.b16 %v4364
    %v5178 = vunpack.c.h.b16 %v4364
    %v5179 = vunpack.c.l.b16 %v4365
    %v5180 = vunpack.c.l.b16 %v4366
    %v5181 = vunpack.c.h.b16 %v4366
    %v5182 = vunpack.c.l.b16 %v4367
    %v5183 = vunpack.c.l.b16 %v4368
    %v5184 = vunpack.c.h.b16 %v4368
    %v5185 = vunpack.c.l.b16 %v4369
    %v5186 = vunpack.c.l.b16 %v4370
    %v5187 = vunpack.c.h.b16 %v4370
    %v5188 = vunpack.c.l.b16 %v4371
    %v5189 = vpack.c.b16 %v4712, %v4709
    %v5190 = vpack.c.b16 %v4713, %v4710
    %v5191 = vpack.c.b16 %v4714, %v4711
    %v5192 = vpack.c.b16 %v4718, %v4715
    %v5193 = vpack.c.b16 %v4719, %v4716
    %v5194 = vpack.c.b16 %v4720, %v4717
    %v5195 = vpack.c.b16 %v4724, %v4721
    %v5196 = vpack.c.b16 %v4725, %v4722
    %v5197 = vpack.c.b16 %v4726, %v4723
    %v5198 = vpack.c.b16 %v4730, %v4727
    %v5199 = vpack.c.b16 %v4731, %v4728
    %v5200 = vpack.c.b16 %v4732, %v4729
    %v5201 = vpack.c.b16 %v4736, %v4733
    %v5202 = vpack.c.b16 %v4737, %v4734
    %v5203 = vpack.c.b16 %v4738, %v4735
    %v5204 = vpack.c.b16 %v4742, %v4739
    %v5205 = vpack.c.b16 %v4743, %v4740
    %v5206 = vpack.c.b16 %v4744, %v4741
    %v5207 = vpack.c.b16 %v4748, %v4745
    %v5208 = vpack.c.b16 %v4749, %v4746
    %v5209 = vpack.c.b16 %v4750, %v4747
    %v5210 = vpack.c.b16 %v4754, %v4751
    %v5211 = vpack.c.b16 %v4755, %v4752
    %v5212 = vpack.c.b16 %v4756, %v4753
    %v5213 = vpack.c.b16 %v4760, %v4757
    %v5214 = vpack.c.b16 %v4761, %v4758
    %v5215 = vpack.c.b16 %v4762, %v4759
    %v5216 = vpack.c.b16 %v4766, %v4763
    %v5217 = vpack.c.b16 %v4767, %v4764
    %v5218 = vpack.c.b16 %v4768, %v4765
    %v5219 = vpack.c.b16 %v4772, %v4769
    %v5220 = vpack.c.b16 %v4773, %v4770
    %v5221 = vpack.c.b16 %v4774, %v4771
    %v5222 = vpack.c.b16 %v4778, %v4775
    %v5223 = vpack.c.b16 %v4779, %v4776
    %v5224 = vpack.c.b16 %v4780, %v4777
    %v5225 = vpack.c.b16 %v4784, %v4781
    %v5226 = vpack.c.b16 %v4785, %v4782
    %v5227 = vpack.c.b16 %v4786, %v4783
    %v5228 = vpack.c.b16 %v4790, %v4787
    %v5229 = vpack.c.b16 %v4791, %v4788
    %v5230 = vpack.c.b16 %v4792, %v4789
    %v5231 = vpack.c.b16 %v4796, %v4793
    %v5232 = vpack.c.b16 %v4797, %v4794
    %v5233 = vpack.c.b16 %v4798, %v4795
    %v5234 = vpack.c.b16 %v4802, %v4799
    %v5235 = vpack.c.b16 %v4803, %v4800
    %v5236 = vpack.c.b16 %v4804, %v4801
    %v5237 = vpack.c.b16 %v4808, %v4805
    %v5238 = vpack.c.b16 %v4809, %v4806
    %v5239 = vpack.c.b16 %v4810, %v4807
    %v5240 = vpack.c.b16 %v4814, %v4811
    %v5241 = vpack.c.b16 %v4815, %v4812
    %v5242 = vpack.c.b16 %v4816, %v4813
    %v5243 = vpack.c.b16 %v4820, %v4817
    %v5244 = vpack.c.b16 %v4821, %v4818
    %v5245 = vpack.c.b16 %v4822, %v4819
    %v5246 = vpack.c.b16 %v4826, %v4823
    %v5247 = vpack.c.b16 %v4827, %v4824
    %v5248 = vpack.c.b16 %v4828, %v4825
    %v5249 = vpack.c.b16 %v4832, %v4829
    %v5250 = vpack.c.b16 %v4833, %v4830
    %v5251 = vpack.c.b16 %v4834, %v4831
    %v5252 = vpack.c.b16 %v4838, %v4835
    %v5253 = vpack.c.b16 %v4839, %v4836
    %v5254 = vpack.c.b16 %v4840, %v4837
    %v5255 = vpack.c.b16 %v4844, %v4841
    %v5256 = vpack.c.b16 %v4845, %v4842
    %v5257 = vpack.c.b16 %v4846, %v4843
    %v5258 = vpack.c.b16 %v4850, %v4847
    %v5259 = vpack.c.b16 %v4851, %v4848
    %v5260 = vpack.c.b16 %v4852, %v4849
    %v5261 = vpack.c.b16 %v4856, %v4853
    %v5262 = vpack.c.b16 %v4857, %v4854
    %v5263 = vpack.c.b16 %v4858, %v4855
    %v5264 = vpack.c.b16 %v4862, %v4859
    %v5265 = vpack.c.b16 %v4863, %v4860
    %v5266 = vpack.c.b16 %v4864, %v4861
    %v5267 = vpack.c.b16 %v4868, %v4865
    %v5268 = vpack.c.b16 %v4869, %v4866
    %v5269 = vpack.c.b16 %v4870, %v4867
    %v5270 = vpack.c.b16 %v4874, %v4871
    %v5271 = vpack.c.b16 %v4875, %v4872
    %v5272 = vpack.c.b16 %v4876, %v4873
    %v5273 = vpack.c.b16 %v4880, %v4877
    %v5274 = vpack.c.b16 %v4881, %v4878
    %v5275 = vpack.c.b16 %v4882, %v4879
    %v5276 = vpack.c.b16 %v4886, %v4883
    %v5277 = vpack.c.b16 %v4887, %v4884
    %v5278 = vpack.c.b16 %v4888, %v4885
    %v5279 = vpack.c.b16 %v4892, %v4889
    %v5280 = vpack.c.b16 %v4893, %v4890
    %v5281 = vpack.c.b16 %v4894, %v4891
    %v5282 = vpack.c.b16 %v4898, %v4895
    %v5283 = vpack.c.b16 %v4899, %v4896
    %v5284 = vpack.c.b16 %v4900, %v4897
    %v5285 = vpack.c.b16 %v4904, %v4901
    %v5286 = vpack.c.b16 %v4905, %v4902
    %v5287 = vpack.c.b16 %v4906, %v4903
    %v5288 = vpack.c.b16 %v4910, %v4907
    %v5289 = vpack.c.b16 %v4911, %v4908
    %v5290 = vpack.c.b16 %v4912, %v4909
    %v5291 = vpack.c.b16 %v4916, %v4913
    %v5292 = vpack.c.b16 %v4917, %v4914
    %v5293 = vpack.c.b16 %v4918, %v4915
    %v5294 = vpack.c.b16 %v4922, %v4919
    %v5295 = vpack.c.b16 %v4923, %v4920
    %v5296 = vpack.c.b16 %v4924, %v4921
    %v5297 = vpack.c.b16 %v4928, %v4925
    %v5298 = vpack.c.b16 %v4929, %v4926
    %v5299 = vpack.c.b16 %v4930, %v4927
    %v5300 = vpack.c.b16 %v4934, %v4931
    %v5301 = vpack.c.b16 %v4935, %v4932
    %v5302 = vpack.c.b16 %v4936, %v4933
    %v5303 = vpack.c.b16 %v4940, %v4937
    %v5304 = vpack.c.b16 %v4941, %v4938
    %v5305 = vpack.c.b16 %v4942, %v4939
    %v5306 = vpack.c.b16 %v4946, %v4943
    %v5307 = vpack.c.b16 %v4947, %v4944
    %v5308 = vpack.c.b16 %v4948, %v4945
    %v5309 = vpack.c.b16 %v4952, %v4949
    %v5310 = vpack.c.b16 %v4953, %v4950
    %v5311 = vpack.c.b16 %v4954, %v4951
    %v5312 = vpack.c.b16 %v4958, %v4955
    %v5313 = vpack.c.b16 %v4959, %v4956
    %v5314 = vpack.c.b16 %v4960, %v4957
    %v5315 = vpack.c.b16 %v4964, %v4961
    %v5316 = vpack.c.b16 %v4965, %v4962
    %v5317 = vpack.c.b16 %v4966, %v4963
    %v5318 = vpack.c.b16 %v4970, %v4967
    %v5319 = vpack.c.b16 %v4971, %v4968
    %v5320 = vpack.c.b16 %v4972, %v4969
    %v5321 = vpack.c.b16 %v4976, %v4973
    %v5322 = vpack.c.b16 %v4977, %v4974
    %v5323 = vpack.c.b16 %v4978, %v4975
    %v5324 = vpack.c.b16 %v4982, %v4979
    %v5325 = vpack.c.b16 %v4983, %v4980
    %v5326 = vpack.c.b16 %v4984, %v4981
    %v5327 = vpack.c.b16 %v4988, %v4985
    %v5328 = vpack.c.b16 %v4989, %v4986
    %v5329 = vpack.c.b16 %v4990, %v4987
    %v5330 = vpack.c.b16 %v4994, %v4991
    %v5331 = vpack.c.b16 %v4995, %v4992
    %v5332 = vpack.c.b16 %v4996, %v4993
    %v5333 = vpack.c.b16 %v5000, %v4997
    %v5334 = vpack.c.b16 %v5001, %v4998
    %v5335 = vpack.c.b16 %v5002, %v4999
    %v5336 = vpack.c.b16 %v5006, %v5003
    %v5337 = vpack.c.b16 %v5007, %v5004
    %v5338 = vpack.c.b16 %v5008, %v5005
    %v5339 = vpack.c.b16 %v5012, %v5009
    %v5340 = vpack.c.b16 %v5013, %v5010
    %v5341 = vpack.c.b16 %v5014, %v5011
    %v5342 = vpack.c.b16 %v5018, %v5015
    %v5343 = vpack.c.b16 %v5019, %v5016
    %v5344 = vpack.c.b16 %v5020, %v5017
    %v5345 = vpack.c.b16 %v5024, %v5021
    %v5346 = vpack.c.b16 %v5025, %v5022
    %v5347 = vpack.c.b16 %v5026, %v5023
    %v5348 = vpack.c.b16 %v5030, %v5027
    %v5349 = vpack.c.b16 %v5031, %v5028
    %v5350 = vpack.c.b16 %v5032, %v5029
    %v5351 = vpack.c.b16 %v5036, %v5033
    %v5352 = vpack.c.b16 %v5037, %v5034
    %v5353 = vpack.c.b16 %v5038, %v5035
    %v5354 = vpack.c.b16 %v5042, %v5039
    %v5355 = vpack.c.b16 %v5043, %v5040
    %v5356 = vpack.c.b16 %v5044, %v5041
    %v5357 = vpack.c.b16 %v5048, %v5045
    %v5358 = vpack.c.b16 %v5049, %v5046
    %v5359 = vpack.c.b16 %v5050, %v5047
    %v5360 = vpack.c.b16 %v5054, %v5051
    %v5361 = vpack.c.b16 %v5055, %v5052
    %v5362 = vpack.c.b16 %v5056, %v5053
    %v5363 = vpack.c.b16 %v5060, %v5057
    %v5364 = vpack.c.b16 %v5061, %v5058
    %v5365 = vpack.c.b16 %v5062, %v5059
    %v5366 = vpack.c.b16 %v5066, %v5063
    %v5367 = vpack.c.b16 %v5067, %v5064
    %v5368 = vpack.c.b16 %v5068, %v5065
    %v5369 = vpack.c.b16 %v5072, %v5069
    %v5370 = vpack.c.b16 %v5073, %v5070
    %v5371 = vpack.c.b16 %v5074, %v5071
    %v5372 = vpack.c.b16 %v5078, %v5075
    %v5373 = vpack.c.b16 %v5079, %v5076
    %v5374 = vpack.c.b16 %v5080, %v5077
    %v5375 = vpack.c.b16 %v5084, %v5081
    %v5376 = vpack.c.b16 %v5085, %v5082
    %v5377 = vpack.c.b16 %v5086, %v5083
    %v5378 = vpack.c.b16 %v5090, %v5087
    %v5379 = vpack.c.b16 %v5091, %v5088
    %v5380 = vpack.c.b16 %v5092, %v5089
    %v5381 = vpack.c.b16 %v5096, %v5093
    %v5382 = vpack.c.b16 %v5097, %v5094
    %v5383 = vpack.c.b16 %v5098, %v5095
    %v5384 = vpack.c.b16 %v5102, %v5099
    %v5385 = vpack.c.b16 %v5103, %v5100
    %v5386 = vpack.c.b16 %v5104, %v5101
    %v5387 = vpack.c.b16 %v5108, %v5105
    %v5388 = vpack.c.b16 %v5109, %v5106
    %v5389 = vpack.c.b16 %v5110, %v5107
    %v5390 = vpack.c.b16 %v5114, %v5111
    %v5391 = vpack.c.b16 %v5115, %v5112
    %v5392 = vpack.c.b16 %v5116, %v5113
    %v5393 = vpack.c.b16 %v5120, %v5117
    %v5394 = vpack.c.b16 %v5121, %v5118
    %v5395 = vpack.c.b16 %v5122, %v5119
    %v5396 = vpack.c.b16 %v5126, %v5123
    %v5397 = vpack.c.b16 %v5127, %v5124
    %v5398 = vpack.c.b16 %v5128, %v5125
    %v5399 = vpack.c.b16 %v5132, %v5129
    %v5400 = vpack.c.b16 %v5133, %v5130
    %v5401 = vpack.c.b16 %v5134, %v5131
    %v5402 = vpack.c.b16 %v5138, %v5135
    %v5403 = vpack.c.b16 %v5139, %v5136
    %v5404 = vpack.c.b16 %v5140, %v5137
    %v5405 = vpack.c.b16 %v5144, %v5141
    %v5406 = vpack.c.b16 %v5145, %v5142
    %v5407 = vpack.c.b16 %v5146, %v5143
    %v5408 = vpack.c.b16 %v5150, %v5147
    %v5409 = vpack.c.b16 %v5151, %v5148
    %v5410 = vpack.c.b16 %v5152, %v5149
    %v5411 = vpack.c.b16 %v5156, %v5153
    %v5412 = vpack.c.b16 %v5157, %v5154
    %v5413 = vpack.c.b16 %v5158, %v5155
    %v5414 = vpack.c.b16 %v5162, %v5159
    %v5415 = vpack.c.b16 %v5163, %v5160
    %v5416 = vpack.c.b16 %v5164, %v5161
    %v5417 = vpack.c.b16 %v5168, %v5165
    %v5418 = vpack.c.b16 %v5169, %v5166
    %v5419 = vpack.c.b16 %v5170, %v5167
    %v5420 = vpack.c.b16 %v5174, %v5171
    %v5421 = vpack.c.b16 %v5175, %v5172
    %v5422 = vpack.c.b16 %v5176, %v5173
    %v5423 = vpack.c.b16 %v5180, %v5177
    %v5424 = vpack.c.b16 %v5181, %v5178
    %v5425 = vpack.c.b16 %v5182, %v5179
    %v5426 = vpack.c.b16 %v5186, %v5183
    %v5427 = vpack.c.b16 %v5187, %v5184
    %v5428 = vpack.c.b16 %v5188, %v5185
    %5669 = vmatprep.subr.bf16.mxu0 %v5211
    %5670 = vmatpush1.bf16.msra.mxu0 %v5210
    %5671 = vmatprep.subr.bf16.mxu0 %v5208
    %5672 = vmatpush1.bf16.msra.mxu0 %v5207
    %5673 = vmatprep.subr.bf16.mxu0 %v5205
    %5674 = vmatpush1.bf16.msra.mxu0 %v5204
    %5675 = vmatprep.subr.bf16.mxu0 %v5202
    %5676 = vmatpush1.bf16.msra.mxu0 %v5201
    %5677 = vmatprep.subr.bf16.mxu0 %v5199
    %5678 = vmatpush1.bf16.msra.mxu0 %v5198
    %5679 = vmatprep.subr.bf16.mxu0 %v5196
    %5680 = vmatpush1.bf16.msra.mxu0 %v5195
    %5681 = vmatprep.subr.bf16.mxu0 %v5193
    %5682 = vmatpush1.bf16.msra.mxu0 %v5192
    %5683 = vmatprep.subr.bf16.mxu0 %v5190
    %5684 = vmatpush1.bf16.msra.mxu0 %v5189
    %5685 = vmatprep.subr.bf16.mxu0 %v5235
    %5686 = vmatpush2.bf16.msra.mxu0 %v5234
    %5687 = vmatprep.subr.bf16.mxu0 %v5232
    %5688 = vmatpush2.bf16.msra.mxu0 %v5231
    %5689 = vmatprep.subr.bf16.mxu0 %v5229
    %5690 = vmatpush2.bf16.msra.mxu0 %v5228
    %5691 = vmatprep.subr.bf16.mxu0 %v5226
    %5692 = vmatpush2.bf16.msra.mxu0 %v5225
    %5693 = vmatprep.subr.bf16.mxu0 %v5223
    %5694 = vmatpush2.bf16.msra.mxu0 %v5222
    %5695 = vmatprep.subr.bf16.mxu0 %v5220
    %5696 = vmatpush2.bf16.msra.mxu0 %v5219
    %5697 = vmatprep.subr.bf16.mxu0 %v5217
    %5698 = vmatpush2.bf16.msra.mxu0 %v5216
    %5699 = vmatprep.subr.bf16.mxu0 %v5214
    %5700 = vmatpush2.bf16.msra.mxu0 %v5213
    %5701 = vmatprep.mubr.bf16.mxu0 %v4043
    %5702 = vmatmul.mubr.bf16.gmra.mxu0 %v4042
    %v5703 = vpop.f32.mrf.mxu0
    %v5704 = vadd.f32 %v4377, %v5703
    %v5705 = vpop.f32.mrf.mxu0
    %v5706 = vadd.f32 %v4381, %v5705
    %v5707 = vpop.f32.mrf.mxu0
    %v5708 = vadd.f32 %v4377, %v5707
    %v5709 = vpop.f32.mrf.mxu0
    %v5710 = vadd.f32 %v4381, %v5709
    %5711 = vdwg.mxu0
    %5712 = vmatprep.subr.bf16.mxu0 %v5259
    %5713 = vmatpush1.bf16.msra.mxu0 %v5258
    %5714 = vmatprep.subr.bf16.mxu0 %v5256
    %5715 = vmatpush1.bf16.msra.mxu0 %v5255
    %5716 = vmatprep.subr.bf16.mxu0 %v5253
    %5717 = vmatpush1.bf16.msra.mxu0 %v5252
    %5718 = vmatprep.subr.bf16.mxu0 %v5250
    %5719 = vmatpush1.bf16.msra.mxu0 %v5249
    %5720 = vmatprep.subr.bf16.mxu0 %v5247
    %5721 = vmatpush1.bf16.msra.mxu0 %v5246
    %5722 = vmatprep.subr.bf16.mxu0 %v5244
    %5723 = vmatpush1.bf16.msra.mxu0 %v5243
    %5724 = vmatprep.subr.bf16.mxu0 %v5241
    %5725 = vmatpush1.bf16.msra.mxu0 %v5240
    %5726 = vmatprep.subr.bf16.mxu0 %v5238
    %5727 = vmatpush1.bf16.msra.mxu0 %v5237
    %5728 = vmatprep.subr.bf16.mxu0 %v5283
    %5729 = vmatpush2.bf16.msra.mxu0 %v5282
    %5730 = vmatprep.subr.bf16.mxu0 %v5280
    %5731 = vmatpush2.bf16.msra.mxu0 %v5279
    %5732 = vmatprep.subr.bf16.mxu0 %v5277
    %5733 = vmatpush2.bf16.msra.mxu0 %v5276
    %5734 = vmatprep.subr.bf16.mxu0 %v5274
    %5735 = vmatpush2.bf16.msra.mxu0 %v5273
    %5736 = vmatprep.subr.bf16.mxu0 %v5271
    %5737 = vmatpush2.bf16.msra.mxu0 %v5270
    %5738 = vmatprep.subr.bf16.mxu0 %v5268
    %5739 = vmatpush2.bf16.msra.mxu0 %v5267
    %5740 = vmatprep.subr.bf16.mxu0 %v5265
    %5741 = vmatpush2.bf16.msra.mxu0 %v5264
    %5742 = vmatprep.subr.bf16.mxu0 %v5262
    %5743 = vmatpush2.bf16.msra.mxu0 %v5261
    %5744 = vmatprep.mubr.bf16.mxu0 %v4045
    %5745 = vmatmul.mubr.bf16.gmra.mxu0 %v4044
    %v5746 = vpop.f32.mrf.mxu0
    %v5747 = vadd.f32 %v5704, %v5746
    %v5748 = vpop.f32.mrf.mxu0
    %v5749 = vadd.f32 %v5706, %v5748
    %v5750 = vpop.f32.mrf.mxu0
    %v5751 = vadd.f32 %v5708, %v5750
    %v5752 = vpop.f32.mrf.mxu0
    %v5753 = vadd.f32 %v5710, %v5752
    %5754 = vdwg.mxu0
    %5755 = vmatprep.subr.bf16.mxu0 %v5307
    %5756 = vmatpush1.bf16.msra.mxu0 %v5306
    %5757 = vmatprep.subr.bf16.mxu0 %v5304
    %5758 = vmatpush1.bf16.msra.mxu0 %v5303
    %5759 = vmatprep.subr.bf16.mxu0 %v5301
    %5760 = vmatpush1.bf16.msra.mxu0 %v5300
    %5761 = vmatprep.subr.bf16.mxu0 %v5298
    %5762 = vmatpush1.bf16.msra.mxu0 %v5297
    %5763 = vmatprep.subr.bf16.mxu0 %v5295
    %5764 = vmatpush1.bf16.msra.mxu0 %v5294
    %5765 = vmatprep.subr.bf16.mxu0 %v5292
    %5766 = vmatpush1.bf16.msra.mxu0 %v5291
    %5767 = vmatprep.subr.bf16.mxu0 %v5289
    %5768 = vmatpush1.bf16.msra.mxu0 %v5288
    %5769 = vmatprep.subr.bf16.mxu0 %v5286
    %5770 = vmatpush1.bf16.msra.mxu0 %v5285
    %5771 = vmatprep.subr.bf16.mxu0 %v5331
    %5772 = vmatpush2.bf16.msra.mxu0 %v5330
    %5773 = vmatprep.subr.bf16.mxu0 %v5328
    %5774 = vmatpush2.bf16.msra.mxu0 %v5327
    %5775 = vmatprep.subr.bf16.mxu0 %v5325
    %5776 = vmatpush2.bf16.msra.mxu0 %v5324
    %5777 = vmatprep.subr.bf16.mxu0 %v5322
    %5778 = vmatpush2.bf16.msra.mxu0 %v5321
    %5779 = vmatprep.subr.bf16.mxu0 %v5319
    %5780 = vmatpush2.bf16.msra.mxu0 %v5318
    %5781 = vmatprep.subr.bf16.mxu0 %v5316
    %5782 = vmatpush2.bf16.msra.mxu0 %v5315
    %5783 = vmatprep.subr.bf16.mxu0 %v5313
    %5784 = vmatpush2.bf16.msra.mxu0 %v5312
    %5785 = vmatprep.subr.bf16.mxu0 %v5310
    %5786 = vmatpush2.bf16.msra.mxu0 %v5309
    %5787 = vmatprep.mubr.bf16.mxu0 %v4047
    %5788 = vmatmul.mubr.bf16.gmra.mxu0 %v4046
    %v5789 = vpop.f32.mrf.mxu0
    %v5790 = vadd.f32 %v5747, %v5789
    %v5791 = vpop.f32.mrf.mxu0
    %v5792 = vadd.f32 %v5749, %v5791
    %v5793 = vpop.f32.mrf.mxu0
    %v5794 = vadd.f32 %v5751, %v5793
    %v5795 = vpop.f32.mrf.mxu0
    %v5796 = vadd.f32 %v5753, %v5795
    %5797 = vdwg.mxu0
    %5798 = vmatprep.subr.bf16.mxu0 %v5355
    %5799 = vmatpush1.bf16.msra.mxu0 %v5354
    %5800 = vmatprep.subr.bf16.mxu0 %v5352
    %5801 = vmatpush1.bf16.msra.mxu0 %v5351
    %5802 = vmatprep.subr.bf16.mxu0 %v5349
    %5803 = vmatpush1.bf16.msra.mxu0 %v5348
    %5804 = vmatprep.subr.bf16.mxu0 %v5346
    %5805 = vmatpush1.bf16.msra.mxu0 %v5345
    %5806 = vmatprep.subr.bf16.mxu0 %v5343
    %5807 = vmatpush1.bf16.msra.mxu0 %v5342
    %5808 = vmatprep.subr.bf16.mxu0 %v5340
    %5809 = vmatpush1.bf16.msra.mxu0 %v5339
    %5810 = vmatprep.subr.bf16.mxu0 %v5337
    %5811 = vmatpush1.bf16.msra.mxu0 %v5336
    %5812 = vmatprep.subr.bf16.mxu0 %v5334
    %5813 = vmatpush1.bf16.msra.mxu0 %v5333
    %5814 = vmatprep.subr.bf16.mxu0 %v5379
    %5815 = vmatpush2.bf16.msra.mxu0 %v5378
    %5816 = vmatprep.subr.bf16.mxu0 %v5376
    %5817 = vmatpush2.bf16.msra.mxu0 %v5375
    %5818 = vmatprep.subr.bf16.mxu0 %v5373
    %5819 = vmatpush2.bf16.msra.mxu0 %v5372
    %5820 = vmatprep.subr.bf16.mxu0 %v5370
    %5821 = vmatpush2.bf16.msra.mxu0 %v5369
    %5822 = vmatprep.subr.bf16.mxu0 %v5367
    %5823 = vmatpush2.bf16.msra.mxu0 %v5366
    %5824 = vmatprep.subr.bf16.mxu0 %v5364
    %5825 = vmatpush2.bf16.msra.mxu0 %v5363
    %5826 = vmatprep.subr.bf16.mxu0 %v5361
    %5827 = vmatpush2.bf16.msra.mxu0 %v5360
    %5828 = vmatprep.subr.bf16.mxu0 %v5358
    %5829 = vmatpush2.bf16.msra.mxu0 %v5357
    %5830 = vmatprep.mubr.bf16.mxu0 %v4049
    %5831 = vmatmul.mubr.bf16.gmra.mxu0 %v4048
    %v5832 = vpop.f32.mrf.mxu0
    %v5833 = vadd.f32 %v5790, %v5832
    %v5834 = vpop.f32.mrf.mxu0
    %v5835 = vadd.f32 %v5792, %v5834
    %v5836 = vpop.f32.mrf.mxu0
    %v5837 = vadd.f32 %v5794, %v5836
    %v5838 = vpop.f32.mrf.mxu0
    %v5839 = vadd.f32 %v5796, %v5838
    %5840 = vdwg.mxu0
    %5841 = vmatprep.subr.bf16.mxu0 %v5403
    %5842 = vmatpush1.bf16.msra.mxu0 %v5402
    %5843 = vmatprep.subr.bf16.mxu0 %v5400
    %5844 = vmatpush1.bf16.msra.mxu0 %v5399
    %5845 = vmatprep.subr.bf16.mxu0 %v5397
    %5846 = vmatpush1.bf16.msra.mxu0 %v5396
    %5847 = vmatprep.subr.bf16.mxu0 %v5394
    %5848 = vmatpush1.bf16.msra.mxu0 %v5393
    %5849 = vmatprep.subr.bf16.mxu0 %v5391
    %5850 = vmatpush1.bf16.msra.mxu0 %v5390
    %5851 = vmatprep.subr.bf16.mxu0 %v5388
    %5852 = vmatpush1.bf16.msra.mxu0 %v5387
    %5853 = vmatprep.subr.bf16.mxu0 %v5385
    %5854 = vmatpush1.bf16.msra.mxu0 %v5384
    %5855 = vmatprep.subr.bf16.mxu0 %v5382
    %5856 = vmatpush1.bf16.msra.mxu0 %v5381
    %5857 = vmatprep.subr.bf16.mxu0 %v5427
    %5858 = vmatpush2.bf16.msra.mxu0 %v5426
    %5859 = vmatprep.subr.bf16.mxu0 %v5424
    %5860 = vmatpush2.bf16.msra.mxu0 %v5423
    %5861 = vmatprep.subr.bf16.mxu0 %v5421
    %5862 = vmatpush2.bf16.msra.mxu0 %v5420
    %5863 = vmatprep.subr.bf16.mxu0 %v5418
    %5864 = vmatpush2.bf16.msra.mxu0 %v5417
    %5865 = vmatprep.subr.bf16.mxu0 %v5415
    %5866 = vmatpush2.bf16.msra.mxu0 %v5414
    %5867 = vmatprep.subr.bf16.mxu0 %v5412
    %5868 = vmatpush2.bf16.msra.mxu0 %v5411
    %5869 = vmatprep.subr.bf16.mxu0 %v5409
    %5870 = vmatpush2.bf16.msra.mxu0 %v5408
    %5871 = vmatprep.subr.bf16.mxu0 %v5406
    %5872 = vmatpush2.bf16.msra.mxu0 %v5405
    %5873 = vmatprep.mubr.bf16.mxu0 %v4051
    %5874 = vmatmul.mubr.bf16.gmra.mxu0 %v4050
    %v5875 = vpop.f32.mrf.mxu0
    %v5876 = vadd.f32 %v5833, %v5875
    %v5877 = vpop.f32.mrf.mxu0
    %v5878 = vadd.f32 %v5835, %v5877
    %v5879 = vpop.f32.mrf.mxu0
    %v5880 = vadd.f32 %v5837, %v5879
    %v5881 = vpop.f32.mrf.mxu0
    %v5882 = vadd.f32 %v5839, %v5881
    %5883 = vdwg.mxu0
    %5884 = vmatprep.subr.bf16.mxu0 0
    %5885 = vmatpush1.bf16.msra.mxu0 %v5212
    %5886 = vmatprep.subr.bf16.mxu0 0
    %5887 = vmatpush1.bf16.msra.mxu0 %v5209
    %5888 = vmatprep.subr.bf16.mxu0 0
    %5889 = vmatpush1.bf16.msra.mxu0 %v5206
    %5890 = vmatprep.subr.bf16.mxu0 0
    %5891 = vmatpush1.bf16.msra.mxu0 %v5203
    %5892 = vmatprep.subr.bf16.mxu0 0
    %5893 = vmatpush1.bf16.msra.mxu0 %v5200
    %5894 = vmatprep.subr.bf16.mxu0 0
    %5895 = vmatpush1.bf16.msra.mxu0 %v5197
    %5896 = vmatprep.subr.bf16.mxu0 0
    %5897 = vmatpush1.bf16.msra.mxu0 %v5194
    %5898 = vmatprep.subr.bf16.mxu0 0
    %5899 = vmatpush1.bf16.msra.mxu0 %v5191
    %5900 = vmatprep.subr.bf16.mxu0 0
    %5901 = vmatpush2.bf16.msra.mxu0 %v5236
    %5902 = vmatprep.subr.bf16.mxu0 0
    %5903 = vmatpush2.bf16.msra.mxu0 %v5233
    %5904 = vmatprep.subr.bf16.mxu0 0
    %5905 = vmatpush2.bf16.msra.mxu0 %v5230
    %5906 = vmatprep.subr.bf16.mxu0 0
    %5907 = vmatpush2.bf16.msra.mxu0 %v5227
    %5908 = vmatprep.subr.bf16.mxu0 0
    %5909 = vmatpush2.bf16.msra.mxu0 %v5224
    %5910 = vmatprep.subr.bf16.mxu0 0
    %5911 = vmatpush2.bf16.msra.mxu0 %v5221
    %5912 = vmatprep.subr.bf16.mxu0 0
    %5913 = vmatpush2.bf16.msra.mxu0 %v5218
    %5914 = vmatprep.subr.bf16.mxu0 0
    %5915 = vmatpush2.bf16.msra.mxu0 %v5215
    %5916 = vmatprep.mubr.bf16.mxu0 %v4043
    %5917 = vmatmul.mubr.bf16.gmra.mxu0 %v4042
    %v5918 = vpop.f32.mrf.mxu0
    %v5919 = vadd.f32 %v4385, %v5918
    %v5920 = vpop.f32.mrf.mxu0
    %v5921 = vpop.f32.mrf.mxu0
    %v5922 = vadd.f32 %v4385, %v5921
    %v5923 = vpop.f32.mrf.mxu0
    %5924 = vdwg.mxu0
    %5925 = vmatprep.subr.bf16.mxu0 0
    %5926 = vmatpush1.bf16.msra.mxu0 %v5260
    %5927 = vmatprep.subr.bf16.mxu0 0
    %5928 = vmatpush1.bf16.msra.mxu0 %v5257
    %5929 = vmatprep.subr.bf16.mxu0 0
    %5930 = vmatpush1.bf16.msra.mxu0 %v5254
    %5931 = vmatprep.subr.bf16.mxu0 0
    %5932 = vmatpush1.bf16.msra.mxu0 %v5251
    %5933 = vmatprep.subr.bf16.mxu0 0
    %5934 = vmatpush1.bf16.msra.mxu0 %v5248
    %5935 = vmatprep.subr.bf16.mxu0 0
    %5936 = vmatpush1.bf16.msra.mxu0 %v5245
    %5937 = vmatprep.subr.bf16.mxu0 0
    %5938 = vmatpush1.bf16.msra.mxu0 %v5242
    %5939 = vmatprep.subr.bf16.mxu0 0
    %5940 = vmatpush1.bf16.msra.mxu0 %v5239
    %5941 = vmatprep.subr.bf16.mxu0 0
    %5942 = vmatpush2.bf16.msra.mxu0 %v5284
    %5943 = vmatprep.subr.bf16.mxu0 0
    %5944 = vmatpush2.bf16.msra.mxu0 %v5281
    %5945 = vmatprep.subr.bf16.mxu0 0
    %5946 = vmatpush2.bf16.msra.mxu0 %v5278
    %5947 = vmatprep.subr.bf16.mxu0 0
    %5948 = vmatpush2.bf16.msra.mxu0 %v5275
    %5949 = vmatprep.subr.bf16.mxu0 0
    %5950 = vmatpush2.bf16.msra.mxu0 %v5272
    %5951 = vmatprep.subr.bf16.mxu0 0
    %5952 = vmatpush2.bf16.msra.mxu0 %v5269
    %5953 = vmatprep.subr.bf16.mxu0 0
    %5954 = vmatpush2.bf16.msra.mxu0 %v5266
    %5955 = vmatprep.subr.bf16.mxu0 0
    %5956 = vmatpush2.bf16.msra.mxu0 %v5263
    %5957 = vmatprep.mubr.bf16.mxu0 %v4045
    %5958 = vmatmul.mubr.bf16.gmra.mxu0 %v4044
    %v5959 = vpop.f32.mrf.mxu0
    %v5960 = vadd.f32 %v5919, %v5959
    %v5961 = vpop.f32.mrf.mxu0
    %v5962 = vpop.f32.mrf.mxu0
    %v5963 = vadd.f32 %v5922, %v5962
    %v5964 = vpop.f32.mrf.mxu0
    %5965 = vdwg.mxu0
    %5966 = vmatprep.subr.bf16.mxu0 0
    %5967 = vmatpush1.bf16.msra.mxu0 %v5308
    %5968 = vmatprep.subr.bf16.mxu0 0
    %5969 = vmatpush1.bf16.msra.mxu0 %v5305
    %5970 = vmatprep.subr.bf16.mxu0 0
    %5971 = vmatpush1.bf16.msra.mxu0 %v5302
    %5972 = vmatprep.subr.bf16.mxu0 0
    %5973 = vmatpush1.bf16.msra.mxu0 %v5299
    %5974 = vmatprep.subr.bf16.mxu0 0
    %5975 = vmatpush1.bf16.msra.mxu0 %v5296
    %5976 = vmatprep.subr.bf16.mxu0 0
    %5977 = vmatpush1.bf16.msra.mxu0 %v5293
    %5978 = vmatprep.subr.bf16.mxu0 0
    %5979 = vmatpush1.bf16.msra.mxu0 %v5290
    %5980 = vmatprep.subr.bf16.mxu0 0
    %5981 = vmatpush1.bf16.msra.mxu0 %v5287
    %5982 = vmatprep.subr.bf16.mxu0 0
    %5983 = vmatpush2.bf16.msra.mxu0 %v5332
    %5984 = vmatprep.subr.bf16.mxu0 0
    %5985 = vmatpush2.bf16.msra.mxu0 %v5329
    %5986 = vmatprep.subr.bf16.mxu0 0
    %5987 = vmatpush2.bf16.msra.mxu0 %v5326
    %5988 = vmatprep.subr.bf16.mxu0 0
    %5989 = vmatpush2.bf16.msra.mxu0 %v5323
    %5990 = vmatprep.subr.bf16.mxu0 0
    %5991 = vmatpush2.bf16.msra.mxu0 %v5320
    %5992 = vmatprep.subr.bf16.mxu0 0
    %5993 = vmatpush2.bf16.msra.mxu0 %v5317
    %5994 = vmatprep.subr.bf16.mxu0 0
    %5995 = vmatpush2.bf16.msra.mxu0 %v5314
    %5996 = vmatprep.subr.bf16.mxu0 0
    %5997 = vmatpush2.bf16.msra.mxu0 %v5311
    %5998 = vmatprep.mubr.bf16.mxu0 %v4047
    %5999 = vmatmul.mubr.bf16.gmra.mxu0 %v4046
    %v6000 = vpop.f32.mrf.mxu0
    %v6001 = vadd.f32 %v5960, %v6000
    %v6002 = vpop.f32.mrf.mxu0
    %v6003 = vpop.f32.mrf.mxu0
    %v6004 = vadd.f32 %v5963, %v6003
    %v6005 = vpop.f32.mrf.mxu0
    %6006 = vdwg.mxu0
    %6007 = vmatprep.subr.bf16.mxu0 0
    %6008 = vmatpush1.bf16.msra.mxu0 %v5356
    %6009 = vmatprep.subr.bf16.mxu0 0
    %6010 = vmatpush1.bf16.msra.mxu0 %v5353
    %6011 = vmatprep.subr.bf16.mxu0 0
    %6012 = vmatpush1.bf16.msra.mxu0 %v5350
    %6013 = vmatprep.subr.bf16.mxu0 0
    %6014 = vmatpush1.bf16.msra.mxu0 %v5347
    %6015 = vmatprep.subr.bf16.mxu0 0
    %6016 = vmatpush1.bf16.msra.mxu0 %v5344
    %6017 = vmatprep.subr.bf16.mxu0 0
    %6018 = vmatpush1.bf16.msra.mxu0 %v5341
    %6019 = vmatprep.subr.bf16.mxu0 0
    %6020 = vmatpush1.bf16.msra.mxu0 %v5338
    %6021 = vmatprep.subr.bf16.mxu0 0
    %6022 = vmatpush1.bf16.msra.mxu0 %v5335
    %6023 = vmatprep.subr.bf16.mxu0 0
    %6024 = vmatpush2.bf16.msra.mxu0 %v5380
    %6025 = vmatprep.subr.bf16.mxu0 0
    %6026 = vmatpush2.bf16.msra.mxu0 %v5377
    %6027 = vmatprep.subr.bf16.mxu0 0
    %6028 = vmatpush2.bf16.msra.mxu0 %v5374
    %6029 = vmatprep.subr.bf16.mxu0 0
    %6030 = vmatpush2.bf16.msra.mxu0 %v5371
    %6031 = vmatprep.subr.bf16.mxu0 0
    %6032 = vmatpush2.bf16.msra.mxu0 %v5368
    %6033 = vmatprep.subr.bf16.mxu0 0
    %6034 = vmatpush2.bf16.msra.mxu0 %v5365
    %6035 = vmatprep.subr.bf16.mxu0 0
    %6036 = vmatpush2.bf16.msra.mxu0 %v5362
    %6037 = vmatprep.subr.bf16.mxu0 0
    %6038 = vmatpush2.bf16.msra.mxu0 %v5359
    %6039 = vmatprep.mubr.bf16.mxu0 %v4049
    %6040 = vmatmul.mubr.bf16.gmra.mxu0 %v4048
    %v6041 = vpop.f32.mrf.mxu0
    %v6042 = vadd.f32 %v6001, %v6041
    %v6043 = vpop.f32.mrf.mxu0
    %v6044 = vpop.f32.mrf.mxu0
    %v6045 = vadd.f32 %v6004, %v6044
    %v6046 = vpop.f32.mrf.mxu0
    %6047 = vdwg.mxu0
    %6048 = vmatprep.subr.bf16.mxu0 0
    %6049 = vmatpush1.bf16.msra.mxu0 %v5404
    %6050 = vmatprep.subr.bf16.mxu0 0
    %6051 = vmatpush1.bf16.msra.mxu0 %v5401
    %6052 = vmatprep.subr.bf16.mxu0 0
    %6053 = vmatpush1.bf16.msra.mxu0 %v5398
    %6054 = vmatprep.subr.bf16.mxu0 0
    %6055 = vmatpush1.bf16.msra.mxu0 %v5395
    %6056 = vmatprep.subr.bf16.mxu0 0
    %6057 = vmatpush1.bf16.msra.mxu0 %v5392
    %6058 = vmatprep.subr.bf16.mxu0 0
    %6059 = vmatpush1.bf16.msra.mxu0 %v5389
    %6060 = vmatprep.subr.bf16.mxu0 0
    %6061 = vmatpush1.bf16.msra.mxu0 %v5386
    %6062 = vmatprep.subr.bf16.mxu0 0
    %6063 = vmatpush1.bf16.msra.mxu0 %v5383
    %6064 = vmatprep.subr.bf16.mxu0 0
    %6065 = vmatpush2.bf16.msra.mxu0 %v5428
    %6066 = vmatprep.subr.bf16.mxu0 0
    %6067 = vmatpush2.bf16.msra.mxu0 %v5425
    %6068 = vmatprep.subr.bf16.mxu0 0
    %6069 = vmatpush2.bf16.msra.mxu0 %v5422
    %6070 = vmatprep.subr.bf16.mxu0 0
    %6071 = vmatpush2.bf16.msra.mxu0 %v5419
    %6072 = vmatprep.subr.bf16.mxu0 0
    %6073 = vmatpush2.bf16.msra.mxu0 %v5416
    %6074 = vmatprep.subr.bf16.mxu0 0
    %6075 = vmatpush2.bf16.msra.mxu0 %v5413
    %6076 = vmatprep.subr.bf16.mxu0 0
    %6077 = vmatpush2.bf16.msra.mxu0 %v5410
    %6078 = vmatprep.subr.bf16.mxu0 0
    %6079 = vmatpush2.bf16.msra.mxu0 %v5407
    %6080 = vmatprep.mubr.bf16.mxu0 %v4051
    %6081 = vmatmul.mubr.bf16.gmra.mxu0 %v4050
    %v6082 = vpop.f32.mrf.mxu0
    %v6083 = vadd.f32 %v6042, %v6082
    %v6084 = vpop.f32.mrf.mxu0
    %v6085 = vpop.f32.mrf.mxu0
    %v6086 = vadd.f32 %v6045, %v6085
    %v6087 = vpop.f32.mrf.mxu0
    %6088 = vdwg.mxu0
    %v6089 = vpack.c.bf16 %v5880, %v5876
    %v6090 = vpack.c.bf16 %v5882, %v5878
    %v6091 = vpack.c.bf16 %v6086, %v6083
    %v6092 = vmax.bf16 %v6089, 0
    %v6093 = vmax.bf16 %v6090, 0
    %v6094 = vmax.bf16 %v6091, 0
    %v6095 = vld [vmem:[#allocation14] sm:$0xf]
    %v6096 = vld [vmem:[#allocation14 + $0x4] sm:$0xf]
    %v6097 = vld [vmem:[#allocation14 + $0x8] sm:$0xf]
    %v6098 = vld [vmem:[#allocation14 + $0xc] sm:$0xf]
    %v6099 = vld [vmem:[#allocation14 + $0x10] sm:$0xf]
    %v6100 = vld [vmem:[#allocation14 + $0x14] sm:$0xf]
    %v6101 = vld [vmem:[#allocation14 + $0x18] sm:$0xf]
    %v6102 = vld [vmem:[#allocation14 + $0x1c] sm:$0xf]
    %v6103 = vld [vmem:[#allocation14 + $0x20] sm:$0xf]
    %v6104 = vld [vmem:[#allocation14 + $0x24] sm:$0xf]
    %v6105 = vld [vmem:[#allocation14 + $0x28] sm:$0xf]
    %v6106 = vld [vmem:[#allocation14 + $0x2c] sm:$0xf]
    %v6107 = vld [vmem:[#allocation14 + $0x30] sm:$0xf]
    %v6108 = vld [vmem:[#allocation14 + $0x34] sm:$0xf]
    %v6109 = vld [vmem:[#allocation14 + $0x38] sm:$0xf]
    %v6110 = vld [vmem:[#allocation14 + $0x3c] sm:$0xf]
    %v6111 = vld [vmem:[#allocation14 + $0x40] sm:$0xf]
    %v6112 = vld [vmem:[#allocation14 + $0x44] sm:$0xf]
    %v6113 = vld [vmem:[#allocation14 + $0x48] sm:$0xf]
    %v6114 = vld [vmem:[#allocation14 + $0x4c] sm:$0xf]
    %v6115 = vld [vmem:[#allocation14 + $0x50] sm:$0xf]
    %v6116 = vld [vmem:[#allocation14 + $0x54] sm:$0xf]
    %v6117 = vld [vmem:[#allocation14 + $0x58] sm:$0xf]
    %v6118 = vld [vmem:[#allocation14 + $0x5c] sm:$0xf]
    %v6119 = vld [vmem:[#allocation14 + $0x60] sm:$0xf]
    %v6120 = vld [vmem:[#allocation14 + $0x64] sm:$0xf]
    %v6121 = vld [vmem:[#allocation14 + $0x68] sm:$0xf]
    %v6122 = vld [vmem:[#allocation14 + $0x6c] sm:$0xf]
    %v6123 = vld [vmem:[#allocation14 + $0x70] sm:$0xf]
    %v6124 = vld [vmem:[#allocation14 + $0x74] sm:$0xf]
    %v6125 = vld [vmem:[#allocation14 + $0x78] sm:$0xf]
    %v6126 = vld [vmem:[#allocation14 + $0x7c] sm:$0xf]
    %v6127 = vld [vmem:[#allocation14 + $0x80] sm:$0xf]
    %v6128 = vld [vmem:[#allocation14 + $0x84] sm:$0xf]
    %v6129 = vld [vmem:[#allocation14 + $0x88] sm:$0xf]
    %v6130 = vld [vmem:[#allocation14 + $0x8c] sm:$0xf]
    %v6131 = vld [vmem:[#allocation14 + $0x90] sm:$0xf]
    %v6132 = vld [vmem:[#allocation14 + $0x94] sm:$0xf]
    %v6133 = vld [vmem:[#allocation14 + $0x98] sm:$0xf]
    %v6134 = vld [vmem:[#allocation14 + $0x9c] sm:$0xf]
    %v6135 = vld [vmem:[#allocation14 + $0xa0] sm:$0xf]
    %v6136 = vld [vmem:[#allocation14 + $0xa4] sm:$0xf]
    %v6137 = vld [vmem:[#allocation14 + $0xa8] sm:$0xf]
    %v6138 = vld [vmem:[#allocation14 + $0xac] sm:$0xf]
    %v6139 = vld [vmem:[#allocation14 + $0xb0] sm:$0xf]
    %v6140 = vld [vmem:[#allocation14 + $0xb4] sm:$0xf]
    %v6141 = vld [vmem:[#allocation14 + $0xb8] sm:$0xf]
    %v6142 = vld [vmem:[#allocation14 + $0xbc] sm:$0xf]
    %v6143 = vld [vmem:[%s12] sm:$0x1]
    %v6145 = vlaneseq
    %v6146 = vshrl.u32 %v6145, 7
    %v6147 = vsub.s32 0, %v6146
    %v6148 = vrot.slane %v6143, %v6147
    %v6198 = vunpack.c.l.b16 %v6095
    %v6199 = vunpack.c.l.b16 %v6096
    %v6200 = vunpack.c.l.b16 %v6097
    %v6201 = vunpack.c.l.b16 %v6098
    %v6202 = vunpack.c.l.b16 %v6099
    %v6203 = vunpack.c.l.b16 %v6100
    %v6204 = vunpack.c.l.b16 %v6101
    %v6205 = vunpack.c.l.b16 %v6102
    %v6206 = vunpack.c.l.b16 %v6103
    %v6207 = vunpack.c.l.b16 %v6104
    %v6208 = vunpack.c.l.b16 %v6105
    %v6209 = vunpack.c.l.b16 %v6106
    %v6210 = vunpack.c.l.b16 %v6107
    %v6211 = vunpack.c.l.b16 %v6108
    %v6212 = vunpack.c.l.b16 %v6109
    %v6213 = vunpack.c.l.b16 %v6110
    %v6214 = vunpack.c.l.b16 %v6111
    %v6215 = vunpack.c.l.b16 %v6112
    %v6216 = vunpack.c.l.b16 %v6113
    %v6217 = vunpack.c.l.b16 %v6114
    %v6218 = vunpack.c.l.b16 %v6115
    %v6219 = vunpack.c.l.b16 %v6116
    %v6220 = vunpack.c.l.b16 %v6117
    %v6221 = vunpack.c.l.b16 %v6118
    %v6222 = vunpack.c.l.b16 %v6119
    %v6223 = vunpack.c.l.b16 %v6120
    %v6224 = vunpack.c.l.b16 %v6121
    %v6225 = vunpack.c.l.b16 %v6122
    %v6226 = vunpack.c.l.b16 %v6123
    %v6227 = vunpack.c.l.b16 %v6124
    %v6228 = vunpack.c.l.b16 %v6125
    %v6229 = vunpack.c.l.b16 %v6126
    %v6230 = vunpack.c.l.b16 %v6127
    %v6231 = vunpack.c.l.b16 %v6128
    %v6232 = vunpack.c.l.b16 %v6129
    %v6233 = vunpack.c.l.b16 %v6130
    %v6234 = vunpack.c.l.b16 %v6131
    %v6235 = vunpack.c.l.b16 %v6132
    %v6236 = vunpack.c.l.b16 %v6133
    %v6237 = vunpack.c.l.b16 %v6134
    %v6238 = vunpack.c.l.b16 %v6135
    %v6239 = vunpack.c.l.b16 %v6136
    %v6240 = vunpack.c.l.b16 %v6137
    %v6241 = vunpack.c.l.b16 %v6138
    %v6242 = vunpack.c.l.b16 %v6139
    %v6243 = vunpack.c.l.b16 %v6140
    %v6244 = vunpack.c.l.b16 %v6141
    %v6245 = vunpack.c.l.b16 %v6142
    %v6246 = vpack.c.b16 %v6199, %v6198
    %v6247 = vpack.c.b16 %v6201, %v6200
    %v6248 = vpack.c.b16 %v6203, %v6202
    %v6249 = vpack.c.b16 %v6205, %v6204
    %v6250 = vpack.c.b16 %v6207, %v6206
    %v6251 = vpack.c.b16 %v6209, %v6208
    %v6252 = vpack.c.b16 %v6211, %v6210
    %v6253 = vpack.c.b16 %v6213, %v6212
    %v6254 = vpack.c.b16 %v6215, %v6214
    %v6255 = vpack.c.b16 %v6217, %v6216
    %v6256 = vpack.c.b16 %v6219, %v6218
    %v6257 = vpack.c.b16 %v6221, %v6220
    %v6258 = vpack.c.b16 %v6223, %v6222
    %v6259 = vpack.c.b16 %v6225, %v6224
    %v6260 = vpack.c.b16 %v6227, %v6226
    %v6261 = vpack.c.b16 %v6229, %v6228
    %v6262 = vpack.c.b16 %v6231, %v6230
    %v6263 = vpack.c.b16 %v6233, %v6232
    %v6264 = vpack.c.b16 %v6235, %v6234
    %v6265 = vpack.c.b16 %v6237, %v6236
    %v6266 = vpack.c.b16 %v6239, %v6238
    %v6267 = vpack.c.b16 %v6241, %v6240
    %v6268 = vpack.c.b16 %v6243, %v6242
    %v6269 = vpack.c.b16 %v6245, %v6244
    %6294 = vmatprep.subr.bf16.mxu0 0
    %6295 = vmatpush1.bf16.msra.mxu0 %v6253
    %6296 = vmatprep.subr.bf16.mxu0 0
    %6297 = vmatpush1.bf16.msra.mxu0 %v6252
    %6298 = vmatprep.subr.bf16.mxu0 0
    %6299 = vmatpush1.bf16.msra.mxu0 %v6251
    %6300 = vmatprep.subr.bf16.mxu0 0
    %6301 = vmatpush1.bf16.msra.mxu0 %v6250
    %6302 = vmatprep.subr.bf16.mxu0 0
    %6303 = vmatpush1.bf16.msra.mxu0 %v6249
    %6304 = vmatprep.subr.bf16.mxu0 0
    %6305 = vmatpush1.bf16.msra.mxu0 %v6248
    %6306 = vmatprep.subr.bf16.mxu0 0
    %6307 = vmatpush1.bf16.msra.mxu0 %v6247
    %6308 = vmatprep.subr.bf16.mxu0 0
    %6309 = vmatpush1.bf16.msra.mxu0 %v6246
    %6310 = vmatprep.subr.bf16.mxu0 0
    %6311 = vmatpush2.bf16.msra.mxu0 %v6261
    %6312 = vmatprep.subr.bf16.mxu0 0
    %6313 = vmatpush2.bf16.msra.mxu0 %v6260
    %6314 = vmatprep.subr.bf16.mxu0 0
    %6315 = vmatpush2.bf16.msra.mxu0 %v6259
    %6316 = vmatprep.subr.bf16.mxu0 0
    %6317 = vmatpush2.bf16.msra.mxu0 %v6258
    %6318 = vmatprep.subr.bf16.mxu0 0
    %6319 = vmatpush2.bf16.msra.mxu0 %v6257
    %6320 = vmatprep.subr.bf16.mxu0 0
    %6321 = vmatpush2.bf16.msra.mxu0 %v6256
    %6322 = vmatprep.subr.bf16.mxu0 0
    %6323 = vmatpush2.bf16.msra.mxu0 %v6255
    %6324 = vmatprep.subr.bf16.mxu0 0
    %6325 = vmatpush2.bf16.msra.mxu0 %v6254
    %6326 = vmatprep.mubr.bf16.mxu0 %v6093
    %6327 = vmatmul.mubr.bf16.gmra.mxu0 %v6092
    %v6328 = vpop.f32.mrf.mxu0
    %v6329 = vadd.f32 %v6148, %v6328
    %v6330 = vpop.f32.mrf.mxu0
    %v6331 = vpop.f32.mrf.mxu0
    %v6332 = vadd.f32 %v6148, %v6331
    %v6333 = vpop.f32.mrf.mxu0
    %6334 = vdwg.mxu0
    %6335 = vmatprep.subr.bf16.mxu0 0
    %6336 = vmatpush1.bf16.msra.mxu0 %v6269
    %6337 = vmatprep.subr.bf16.mxu0 0
    %6338 = vmatpush1.bf16.msra.mxu0 %v6268
    %6339 = vmatprep.subr.bf16.mxu0 0
    %6340 = vmatpush1.bf16.msra.mxu0 %v6267
    %6341 = vmatprep.subr.bf16.mxu0 0
    %6342 = vmatpush1.bf16.msra.mxu0 %v6266
    %6343 = vmatprep.subr.bf16.mxu0 0
    %6344 = vmatpush1.bf16.msra.mxu0 %v6265
    %6345 = vmatprep.subr.bf16.mxu0 0
    %6346 = vmatpush1.bf16.msra.mxu0 %v6264
    %6347 = vmatprep.subr.bf16.mxu0 0
    %6348 = vmatpush1.bf16.msra.mxu0 %v6263
    %6349 = vmatprep.subr.bf16.mxu0 0
    %6350 = vmatpush1.bf16.msra.mxu0 %v6262
    %6351 = vmatprep.subr.bf16.mxu0 0
    %6352 = vmatpush2.bf16.msra.mxu0 0
    %6353 = vmatprep.subr.bf16.mxu0 0
    %6354 = vmatpush2.bf16.msra.mxu0 0
    %6355 = vmatprep.subr.bf16.mxu0 0
    %6356 = vmatpush2.bf16.msra.mxu0 0
    %6357 = vmatprep.subr.bf16.mxu0 0
    %6358 = vmatpush2.bf16.msra.mxu0 0
    %6359 = vmatprep.subr.bf16.mxu0 0
    %6360 = vmatpush2.bf16.msra.mxu0 0
    %6361 = vmatprep.subr.bf16.mxu0 0
    %6362 = vmatpush2.bf16.msra.mxu0 0
    %6363 = vmatprep.subr.bf16.mxu0 0
    %6364 = vmatpush2.bf16.msra.mxu0 0
    %6365 = vmatprep.subr.bf16.mxu0 0
    %6366 = vmatpush2.bf16.msra.mxu0 0
    %6367 = vmatprep.mubr.bf16.mxu0 0
    %6368 = vmatmul.mubr.bf16.gmra.mxu0 %v6094
    %v6369 = vpop.f32.mrf.mxu0
    %v6370 = vadd.f32 %v6329, %v6369
    %v6371 = vpop.f32.mrf.mxu0
    %v6372 = vpop.f32.mrf.mxu0
    %v6373 = vadd.f32 %v6332, %v6372
    %v6374 = vpop.f32.mrf.mxu0
    %6375 = vdwg.mxu0
    %v6376 = vpack.c.bf16 %v6373, %v6370
    %v6377 = vmax.bf16 %v6376, 0
    %v6378 = vld [vmem:[#allocation16] sm:$0xf]
    %v6379 = vld [vmem:[#allocation16 + $0x4] sm:$0xf]
    %v6380 = vld [vmem:[#allocation16 + $0x8] sm:$0xf]
    %v6381 = vld [vmem:[#allocation16 + $0xc] sm:$0xf]
    %v6382 = vld [vmem:[#allocation16 + $0x10] sm:$0xf]
    %v6383 = vld [vmem:[#allocation16 + $0x14] sm:$0xf]
    %v6384 = vld [vmem:[#allocation16 + $0x18] sm:$0xf]
    %v6385 = vld [vmem:[#allocation16 + $0x1c] sm:$0xf]
    %v6386 = vld [vmem:[#allocation16 + $0x20] sm:$0xf]
    %v6387 = vld [vmem:[#allocation16 + $0x24] sm:$0xf]
    %v6388 = vld [vmem:[#allocation16 + $0x28] sm:$0xf]
    %v6389 = vld [vmem:[#allocation16 + $0x2c] sm:$0xf]
    %v6390 = vld [vmem:[#allocation16 + $0x30] sm:$0xf]
    %v6391 = vld [vmem:[#allocation16 + $0x34] sm:$0xf]
    %v6392 = vld [vmem:[#allocation16 + $0x38] sm:$0xf]
    %v6393 = vld [vmem:[#allocation16 + $0x3c] sm:$0xf]
    %v6394 = vld [vmem:[%s14] sm:$0x1]
    %v6396 = vlaneseq
    %v6397 = vshrl.u32 %v6396, 7
    %v6398 = vsub.s32 0, %v6397
    %v6399 = vrot.slane %v6394, %v6398
    %v6417 = vunpack.c.l.b16 %v6378
    %v6418 = vunpack.c.l.b16 %v6379
    %v6419 = vunpack.c.l.b16 %v6380
    %v6420 = vunpack.c.l.b16 %v6381
    %v6421 = vunpack.c.l.b16 %v6382
    %v6422 = vunpack.c.l.b16 %v6383
    %v6423 = vunpack.c.l.b16 %v6384
    %v6424 = vunpack.c.l.b16 %v6385
    %v6425 = vunpack.c.l.b16 %v6386
    %v6426 = vunpack.c.l.b16 %v6387
    %v6427 = vunpack.c.l.b16 %v6388
    %v6428 = vunpack.c.l.b16 %v6389
    %v6429 = vunpack.c.l.b16 %v6390
    %v6430 = vunpack.c.l.b16 %v6391
    %v6431 = vunpack.c.l.b16 %v6392
    %v6432 = vunpack.c.l.b16 %v6393
    %v6433 = vpack.c.b16 %v6418, %v6417
    %v6434 = vpack.c.b16 %v6420, %v6419
    %v6435 = vpack.c.b16 %v6422, %v6421
    %v6436 = vpack.c.b16 %v6424, %v6423
    %v6437 = vpack.c.b16 %v6426, %v6425
    %v6438 = vpack.c.b16 %v6428, %v6427
    %v6439 = vpack.c.b16 %v6430, %v6429
    %v6440 = vpack.c.b16 %v6432, %v6431
    %6449 = vmatprep.subr.bf16.mxu0 0
    %6450 = vmatpush1.bf16.msra.mxu0 %v6440
    %6451 = vmatprep.subr.bf16.mxu0 0
    %6452 = vmatpush1.bf16.msra.mxu0 %v6439
    %6453 = vmatprep.subr.bf16.mxu0 0
    %6454 = vmatpush1.bf16.msra.mxu0 %v6438
    %6455 = vmatprep.subr.bf16.mxu0 0
    %6456 = vmatpush1.bf16.msra.mxu0 %v6437
    %6457 = vmatprep.subr.bf16.mxu0 0
    %6458 = vmatpush1.bf16.msra.mxu0 %v6436
    %6459 = vmatprep.subr.bf16.mxu0 0
    %6460 = vmatpush1.bf16.msra.mxu0 %v6435
    %6461 = vmatprep.subr.bf16.mxu0 0
    %6462 = vmatpush1.bf16.msra.mxu0 %v6434
    %6463 = vmatprep.subr.bf16.mxu0 0
    %6464 = vmatpush1.bf16.msra.mxu0 %v6433
    %6465 = vmatprep.subr.bf16.mxu0 0
    %6466 = vmatpush2.bf16.msra.mxu0 0
    %6467 = vmatprep.subr.bf16.mxu0 0
    %6468 = vmatpush2.bf16.msra.mxu0 0
    %6469 = vmatprep.subr.bf16.mxu0 0
    %6470 = vmatpush2.bf16.msra.mxu0 0
    %6471 = vmatprep.subr.bf16.mxu0 0
    %6472 = vmatpush2.bf16.msra.mxu0 0
    %6473 = vmatprep.subr.bf16.mxu0 0
    %6474 = vmatpush2.bf16.msra.mxu0 0
    %6475 = vmatprep.subr.bf16.mxu0 0
    %6476 = vmatpush2.bf16.msra.mxu0 0
    %6477 = vmatprep.subr.bf16.mxu0 0
    %6478 = vmatpush2.bf16.msra.mxu0 0
    %6479 = vmatprep.subr.bf16.mxu0 0
    %6480 = vmatpush2.bf16.msra.mxu0 0
    %6481 = vmatprep.mubr.bf16.mxu0 0
    %6482 = vmatmul.mubr.bf16.gmra.mxu0 %v6377
    %v6483 = vpop.f32.mrf.mxu0
    %v6484 = vadd.f32 %v6399, %v6483
    %v6485 = vpop.f32.mrf.mxu0
    %v6486 = vpop.f32.mrf.mxu0
    %v6487 = vadd.f32 %v6399, %v6486
    %v6488 = vpop.f32.mrf.mxu0
    %6489 = vdwg.mxu0
    %v6490 = vadd.f32 %v3329, %v6484
    %v6491 = vadd.f32 %v3332, %v6487
    %6492 = vst [vmem:[#allocation17] sm:$0xff] %v6490
    %6493 = vst [vmem:[#allocation17 + $0x8] sm:$0xff] %v6491
    // Predicated region
    $region98: #{tpu_custom_call.1} parent=1 // pred_check
      _
    $region99: #{tpu_custom_call.1} parent=1 // pred_check_branch
      %6495 = sbr.rel (0) target = $region101
    $region100: #{tpu_custom_call.1} parent=1 // pred_region
      %s6497 = ssub.s32 256, 256
      %6498 = vsyncadd [#allocation4], %s6497
      %s6499 = sshll.u32 [#allocation17], 4
      %s6500 = int_to_ptr.vmem [resolvable:$true] %s6499
      %6505 = dma.vmem_to_hbm [thread:$0]  %s6500, 256, %s15, [#allocation4], 128, 128, 8
    $region101: #{tpu_custom_call.1} parent=1 // pred_fallthru
      _
    // Predicated region
    $region102: #{tpu_custom_call.1} parent=1 // pred_check
      _
    $region103: #{tpu_custom_call.1} parent=1 // pred_check_branch
      %6507 = sbr.rel (0) target = $region105
    $region104: #{tpu_custom_call.1} parent=1 // pred_region
      %6508 = dma.done [#allocation4], 256
    $region105: #{tpu_custom_call.1} parent=1 // pred_fallthru
      _
    %6509 = vsyncpa [#allocation3], 1
    %6510 = vsyncpa [#allocation6], 1
    %6511 = vsyncpa [#allocation9], 1
    %6512 = vsyncpa [#allocation12], 1
    %6513 = vsyncpa [#allocation15], 1
    %6514 = vsyncpa [#allocation4], 1

</llo_original>
